<compile_context>
chip_gen: v5e
topology: v5e:2x2
jax: 0.10.0
libtpu: 0.0.40
codegen_flags: <defaults>
</compile_context>

<pallas_src>
import jax
import jax.numpy as jnp
from jax import lax
from jax.experimental import pallas as pl
from jax.experimental.pallas import tpu as pltpu

EPS_BN = 1e-5


# ------------------------------ Pallas kernel -------------------------------

def _softmax_last(z):
    z = z - jnp.max(z, axis=-1, keepdims=True)
    e = jnp.exp(z)
    return e * pl.reciprocal(jnp.sum(e, axis=-1, keepdims=True), approx=True)


def _danet_kernel(g_ref, x_ref,
                  wg_ref, bg_ref, wx_ref, bx_ref,
                  wb_ref, bb_ref, wc_ref, bc_ref, wd_ref, bd_ref,
                  wpsi_ref, bpsi_ref, alpha_ref, beta_ref,
                  o_ref):
    f32 = jnp.float32
    g = g_ref[0]                      # (N, F_g)   channel-last tokens
    x = x_ref[0]                      # (N, F_l)

    # W_g / W_x : 1x1 conv (+bias) with eval-mode BatchNorm folded in.
    g1 = jnp.dot(g, wg_ref[...], preferred_element_type=f32) + bg_ref[...]
    x1 = jnp.dot(x, wx_ref[...], preferred_element_type=f32) + bx_ref[...]
    psi = jnp.maximum(g1 + x1, 0.0)   # ReLU, (N, C)

    # ---- CAM: channel attention --------------------------------------------
    # torch: att[c1,c2] = sum_n psi[c1,n]*psi[c2,n]  ==  psi_nc^T @ psi_nc
    att = lax.dot_general(psi, psi, (((0,), (0,)), ((), ())),
                          preferred_element_type=f32)              # (C, C)
    att = jnp.max(att, axis=-1, keepdims=True) - att
    att = _softmax_last(att)
    # torch: out[c1,n] = sum_c2 att[c1,c2]*psi[c2,n]  ==  psi_nc @ att^T
    cam_out = lax.dot_general(psi, att, (((1,), (1,)), ((), ())),
                              preferred_element_type=f32)          # (N, C)
    cam = beta_ref[...] * cam_out + psi

    # ---- PAM: position attention -------------------------------------------
    fb = jnp.dot(psi, wb_ref[...], preferred_element_type=f32) + bb_ref[...]   # (N, Cb)
    fc = jnp.dot(psi, wc_ref[...], preferred_element_type=f32) + bc_ref[...]   # (N, Cb)
    fd = jnp.dot(psi, wd_ref[...], preferred_element_type=f32) + bd_ref[...]   # (N, C)
    # torch: energy = feat_b @ feat_c == fb @ fc^T
    energy = lax.dot_general(fb, fc, (((1,), (1,)), ((), ())),
                             preferred_element_type=f32)                       # (N, N)
    attn = _softmax_last(energy)
    # torch: out[c,i] = sum_j fd[c,j]*attn[i,j]  ==  attn @ fd_nc
    pam_out = jnp.dot(attn, fd, preferred_element_type=f32)                    # (N, C)
    pam = alpha_ref[...] * pam_out + psi

    # ---- psi head: 1x1 conv (C->1) + BN(1) + sigmoid, then gate x -----------
    z = jnp.dot(cam * pam, wpsi_ref[...], preferred_element_type=f32) + bpsi_ref[...]  # (N, 1)
    da = 1.0 / (1.0 + jnp.exp(-z))
    o_ref[0] = x * da


# ------------------------------ host wrapper --------------------------------

def danet_forward(params, g_nchw, x_nchw):
    B, F_g, H, W = g_nchw.shape
    F_l = x_nchw.shape[1]
    C = params["wg"].shape[1]
    Cb = params["wb"].shape[1]
    N = H * W

    # One-time boundary layout change: NCHW -> (B, H*W, C) channel-last.
    g2 = jnp.transpose(g_nchw, (0, 2, 3, 1)).reshape(B, N, F_g)
    x2 = jnp.transpose(x_nchw, (0, 2, 3, 1)).reshape(B, N, F_l)

    out = pl.pallas_call(
        _danet_kernel,
        out_shape=jax.ShapeDtypeStruct((B, N, F_l), jnp.float32),
        grid=(B,),
        in_specs=[
            pl.BlockSpec((1, N, F_g), lambda b: (b, 0, 0)),
            pl.BlockSpec((1, N, F_l), lambda b: (b, 0, 0)),
            pl.BlockSpec((F_g, C), lambda b: (0, 0)),
            pl.BlockSpec((1, C), lambda b: (0, 0)),
            pl.BlockSpec((F_l, C), lambda b: (0, 0)),
            pl.BlockSpec((1, C), lambda b: (0, 0)),
            pl.BlockSpec((C, Cb), lambda b: (0, 0)),
            pl.BlockSpec((1, Cb), lambda b: (0, 0)),
            pl.BlockSpec((C, Cb), lambda b: (0, 0)),
            pl.BlockSpec((1, Cb), lambda b: (0, 0)),
            pl.BlockSpec((C, C), lambda b: (0, 0)),
            pl.BlockSpec((1, C), lambda b: (0, 0)),
            pl.BlockSpec((C, 1), lambda b: (0, 0)),
            pl.BlockSpec((1, 1), lambda b: (0, 0)),
            pl.BlockSpec((1, 1), lambda b: (0, 0)),
            pl.BlockSpec((1, 1), lambda b: (0, 0)),
        ],
        out_specs=pl.BlockSpec((1, N, F_l), lambda b: (b, 0, 0)),
        compiler_params=pltpu.CompilerParams(
            dimension_semantics=("parallel",)),
    )(g2, x2,
      params["wg"], params["bg"], params["wx"], params["bx"],
      params["wb"], params["bb"], params["wc"], params["bc"],
      params["wd"], params["bd"], params["wpsi"], params["bpsi"],
      params["alpha"], params["beta"])

    # Back to the module's NCHW output layout.
    return jnp.transpose(out.reshape(B, H, W, F_l), (0, 3, 1, 2))


# --------------------------- parameter creation -----------------------------

def _fold_conv_bn(w, b, gamma, beta, mean, var):
    # w: (out, in) 1x1-conv weight (torch layout, spatial dims squeezed), b: (out,)
    s = gamma / jnp.sqrt(var + EPS_BN)
    w_eff = (w * s[:, None]).T            # (in, out)
    b_eff = (b - mean) * s + beta         # (out,)
    return w_eff.astype(jnp.float32), b_eff.astype(jnp.float32)


def init_danet_params(key, F_g, F_l, F_int):
    Cb = F_int // 8
    ks = jax.random.split(key, 16)

    def nrm(k, shape, s=0.1):
        return (s * jax.random.normal(k, shape)).astype(jnp.float32)

    def bn_stats(k, c):
        k1, k2, k3, k4 = jax.random.split(k, 4)
        gamma = 1.0 + 0.1 * jax.random.normal(k1, (c,))
        beta = 0.1 * jax.random.normal(k2, (c,))
        mean = 0.1 * jax.random.normal(k3, (c,))
        var = 1.0 + 0.1 * jax.random.uniform(k4, (c,))
        return gamma, beta, mean, var

    p = {}
    # W_g = Conv2d(F_g, F_int, 1, bias=True) + BatchNorm2d(F_int)   (eval fold)
    wg, bg = _fold_conv_bn(nrm(ks[0], (F_int, F_g)), nrm(ks[1], (F_int,)),
                           *bn_stats(ks[2], F_int))
    p["wg"], p["bg"] = wg, bg.reshape(1, F_int)
    # W_x = Conv2d(F_l, F_int, 1, bias=True) + BatchNorm2d(F_int)
    wx, bx = _fold_conv_bn(nrm(ks[3], (F_int, F_l)), nrm(ks[4], (F_int,)),
                           *bn_stats(ks[5], F_int))
    p["wx"], p["bx"] = wx, bx.reshape(1, F_int)
    # psi = Conv2d(F_int, 1, 1, bias=True) + BatchNorm2d(1)  (+ sigmoid in-kernel)
    wp, bp = _fold_conv_bn(nrm(ks[6], (1, F_int)), nrm(ks[7], (1,)),
                           *bn_stats(ks[8], 1))
    p["wpsi"], p["bpsi"] = wp, bp.reshape(1, 1)
    # PAM 1x1 convs (bias, no BN), stored transposed as (in, out)
    p["wb"] = nrm(ks[9], (F_int, Cb))
    p["bb"] = nrm(ks[10], (Cb,)).reshape(1, Cb)
    p["wc"] = nrm(ks[11], (F_int, Cb))
    p["bc"] = nrm(ks[12], (Cb,)).reshape(1, Cb)
    p["wd"] = nrm(ks[13], (F_int, F_int))
    p["bd"] = nrm(ks[14], (F_int,)).reshape(1, F_int)
    # torch initializes PAM.alpha / CAM.beta to 0 (identity residual scaling);
    # nonzero values are used here so the attention paths are exercised numerically.
    p["alpha"] = jnp.full((1, 1), 0.5, jnp.float32)
    p["beta"] = jnp.full((1, 1), 0.3, jnp.float32)
    return {k: jnp.asarray(v, jnp.float32) for k, v in p.items()}


# ---------------------------------- main -------------------------------------

if __name__ == "__main__":
    B, H, W = 2, 16, 16
    F_g, F_l, F_int = 32, 32, 32

    key = jax.random.PRNGKey(0)
    kg, kx, kp = jax.random.split(key, 3)
    g = jax.random.normal(kg, (B, F_g, H, W), dtype=jnp.float32)   # NCHW like torch
    x = jax.random.normal(kx, (B, F_l, H, W), dtype=jnp.float32)
    params = init_danet_params(kp, F_g, F_l, F_int)

    fwd = jax.jit(danet_forward)
    out = fwd(params, g, x)
    jax.block_until_ready(out)
    assert out.shape == (B, F_l, H, W) and out.dtype == jnp.float32
    print("KERNEL_OK")
</pallas_src>

<mosaic_0001>
module attributes {stable_mosaic.version = 11 : i64} {
  func.func @_danet_kernel(%arg0: i32, %arg1: memref<1x256x32xf32, #tpu.memory_space<vmem>>, %arg2: memref<1x256x32xf32, #tpu.memory_space<vmem>>, %arg3: memref<32x32xf32, #tpu.memory_space<vmem>>, %arg4: memref<1x32xf32, #tpu.memory_space<vmem>>, %arg5: memref<32x32xf32, #tpu.memory_space<vmem>>, %arg6: memref<1x32xf32, #tpu.memory_space<vmem>>, %arg7: memref<32x4xf32, #tpu.memory_space<vmem>>, %arg8: memref<1x4xf32, #tpu.memory_space<vmem>>, %arg9: memref<32x4xf32, #tpu.memory_space<vmem>>, %arg10: memref<1x4xf32, #tpu.memory_space<vmem>>, %arg11: memref<32x32xf32, #tpu.memory_space<vmem>>, %arg12: memref<1x32xf32, #tpu.memory_space<vmem>>, %arg13: memref<32x1xf32, #tpu.memory_space<vmem>>, %arg14: memref<1x1xf32, #tpu.memory_space<vmem>>, %arg15: memref<1x1xf32, #tpu.memory_space<vmem>>, %arg16: memref<1x1xf32, #tpu.memory_space<vmem>>, %arg17: memref<1x256x32xf32, #tpu.memory_space<vmem>>) attributes {dimension_semantics = [#tpu.dimension_semantics<parallel>], iteration_bounds = array<i64: 2>, scalar_prefetch = 0 : i64, scratch_operands = 0 : i64, tpu.core_type = #tpu.core_type<tc>, window_params = [{transform_indices = @transform_0, window_bounds = array<i64: 1, 256, 32>}, {transform_indices = @transform_1, window_bounds = array<i64: 1, 256, 32>}, {pipeline_mode = #tpu.pipeline_mode<synchronous>, transform_indices = @transform_2, window_bounds = array<i64: 32, 32>}, {pipeline_mode = #tpu.pipeline_mode<synchronous>, transform_indices = @transform_3, window_bounds = array<i64: 1, 32>}, {pipeline_mode = #tpu.pipeline_mode<synchronous>, transform_indices = @transform_4, window_bounds = array<i64: 32, 32>}, {pipeline_mode = #tpu.pipeline_mode<synchronous>, transform_indices = @transform_5, window_bounds = array<i64: 1, 32>}, {pipeline_mode = #tpu.pipeline_mode<synchronous>, transform_indices = @transform_6, window_bounds = array<i64: 32, 4>}, {pipeline_mode = #tpu.pipeline_mode<synchronous>, transform_indices = @transform_7, window_bounds = array<i64: 1, 4>}, {pipeline_mode = #tpu.pipeline_mode<synchronous>, transform_indices = @transform_8, window_bounds = array<i64: 32, 4>}, {pipeline_mode = #tpu.pipeline_mode<synchronous>, transform_indices = @transform_9, window_bounds = array<i64: 1, 4>}, {pipeline_mode = #tpu.pipeline_mode<synchronous>, transform_indices = @transform_10, window_bounds = array<i64: 32, 32>}, {pipeline_mode = #tpu.pipeline_mode<synchronous>, transform_indices = @transform_11, window_bounds = array<i64: 1, 32>}, {pipeline_mode = #tpu.pipeline_mode<synchronous>, transform_indices = @transform_12, window_bounds = array<i64: 32, 1>}, {pipeline_mode = #tpu.pipeline_mode<synchronous>, transform_indices = @transform_13, window_bounds = array<i64: 1, 1>}, {pipeline_mode = #tpu.pipeline_mode<synchronous>, transform_indices = @transform_14, window_bounds = array<i64: 1, 1>}, {pipeline_mode = #tpu.pipeline_mode<synchronous>, transform_indices = @transform_15, window_bounds = array<i64: 1, 1>}, {transform_indices = @transform_16, window_bounds = array<i64: 1, 256, 32>}]} {
    %c0 = arith.constant 0 : index
    %c0_0 = arith.constant 0 : index
    %c0_1 = arith.constant 0 : index
    %0 = vector.load %arg1[%c0, %c0_0, %c0_1] : memref<1x256x32xf32, #tpu.memory_space<vmem>>, vector<1x256x32xf32>
    %1 = vector.shape_cast %0 : vector<1x256x32xf32> to vector<256x32xf32>
    %c0_2 = arith.constant 0 : index
    %c0_3 = arith.constant 0 : index
    %c0_4 = arith.constant 0 : index
    %2 = vector.load %arg2[%c0_2, %c0_3, %c0_4] : memref<1x256x32xf32, #tpu.memory_space<vmem>>, vector<1x256x32xf32>
    %3 = vector.shape_cast %2 : vector<1x256x32xf32> to vector<256x32xf32>
    %c0_5 = arith.constant 0 : index
    %c0_6 = arith.constant 0 : index
    %4 = vector.load %arg3[%c0_5, %c0_6] : memref<32x32xf32, #tpu.memory_space<vmem>>, vector<32x32xf32>
    %cst = arith.constant dense<0.000000e+00> : vector<256x32xf32>
    %5 = tpu.matmul %1, %4, %cst {dimension_numbers = #tpu.dot_dimension_numbers<[1], [0], [0], [1], [0, 0, 1, 1], [], []>} : vector<256x32xf32>, vector<32x32xf32>, vector<256x32xf32> -> vector<256x32xf32>
    %c0_7 = arith.constant 0 : index
    %c0_8 = arith.constant 0 : index
    %6 = vector.load %arg4[%c0_7, %c0_8] : memref<1x32xf32, #tpu.memory_space<vmem>>, vector<1x32xf32>
    %7 = vector.broadcast %6 : vector<1x32xf32> to vector<256x32xf32>
    %8 = arith.addf %5, %7 : vector<256x32xf32>
    %c0_9 = arith.constant 0 : index
    %c0_10 = arith.constant 0 : index
    %9 = vector.load %arg5[%c0_9, %c0_10] : memref<32x32xf32, #tpu.memory_space<vmem>>, vector<32x32xf32>
    %cst_11 = arith.constant dense<0.000000e+00> : vector<256x32xf32>
    %10 = tpu.matmul %3, %9, %cst_11 {dimension_numbers = #tpu.dot_dimension_numbers<[1], [0], [0], [1], [0, 0, 1, 1], [], []>} : vector<256x32xf32>, vector<32x32xf32>, vector<256x32xf32> -> vector<256x32xf32>
    %c0_12 = arith.constant 0 : index
    %c0_13 = arith.constant 0 : index
    %11 = vector.load %arg6[%c0_12, %c0_13] : memref<1x32xf32, #tpu.memory_space<vmem>>, vector<1x32xf32>
    %12 = vector.broadcast %11 : vector<1x32xf32> to vector<256x32xf32>
    %13 = arith.addf %10, %12 : vector<256x32xf32>
    %14 = arith.addf %8, %13 : vector<256x32xf32>
    %cst_14 = arith.constant 0.000000e+00 : f32
    %15 = vector.broadcast %cst_14 : f32 to vector<256x32xf32>
    %16 = arith.maximumf %14, %15 : vector<256x32xf32>
    %cst_15 = arith.constant dense<0.000000e+00> : vector<32x32xf32>
    %17 = tpu.matmul %16, %16, %cst_15 {dimension_numbers = #tpu.dot_dimension_numbers<[0], [0], [1], [1], [0, 1, 1, 1], [], []>} : vector<256x32xf32>, vector<256x32xf32>, vector<32x32xf32> -> vector<32x32xf32>
    %cst_16 = arith.constant dense<0xFF800000> : vector<32xf32>
    %18 = vector.multi_reduction <maximumf>, %17, %cst_16 [1] : vector<32x32xf32> to vector<32xf32>
    %19 = vector.shape_cast %18 : vector<32xf32> to vector<32x1xf32>
    %20 = vector.broadcast %19 : vector<32x1xf32> to vector<32x32xf32>
    %21 = arith.subf %20, %17 : vector<32x32xf32>
    %cst_17 = arith.constant dense<0xFF800000> : vector<32xf32>
    %22 = vector.multi_reduction <maximumf>, %21, %cst_17 [1] : vector<32x32xf32> to vector<32xf32>
    %23 = vector.shape_cast %22 : vector<32xf32> to vector<32x1xf32>
    %24 = vector.broadcast %23 : vector<32x1xf32> to vector<32x32xf32>
    %25 = arith.subf %21, %24 : vector<32x32xf32>
    %26 = math.exp %25 : vector<32x32xf32>
    %cst_18 = arith.constant dense<0.000000e+00> : vector<32xf32>
    %27 = vector.multi_reduction <add>, %26, %cst_18 [1] : vector<32x32xf32> to vector<32xf32>
    %28 = vector.shape_cast %27 : vector<32xf32> to vector<32x1xf32>
    %29 = tpu.reciprocal %28 {approx = true} : vector<32x1xf32> -> vector<32x1xf32>
    %30 = vector.broadcast %29 : vector<32x1xf32> to vector<32x32xf32>
    %31 = arith.mulf %26, %30 : vector<32x32xf32>
    %cst_19 = arith.constant dense<0.000000e+00> : vector<256x32xf32>
    %32 = tpu.matmul %16, %31, %cst_19 {dimension_numbers = #tpu.dot_dimension_numbers<[1], [1], [0], [0], [0, 0, 1, 0], [], []>} : vector<256x32xf32>, vector<32x32xf32>, vector<256x32xf32> -> vector<256x32xf32>
    %c0_20 = arith.constant 0 : index
    %c0_21 = arith.constant 0 : index
    %33 = vector.load %arg16[%c0_20, %c0_21] : memref<1x1xf32, #tpu.memory_space<vmem>>, vector<1x1xf32>
    %34 = vector.broadcast %33 : vector<1x1xf32> to vector<256x32xf32>
    %35 = arith.mulf %34, %32 : vector<256x32xf32>
    %36 = arith.addf %35, %16 : vector<256x32xf32>
    %c0_22 = arith.constant 0 : index
    %c0_23 = arith.constant 0 : index
    %37 = vector.load %arg7[%c0_22, %c0_23] : memref<32x4xf32, #tpu.memory_space<vmem>>, vector<32x4xf32>
    %cst_24 = arith.constant dense<0.000000e+00> : vector<256x4xf32>
    %38 = tpu.matmul %16, %37, %cst_24 {dimension_numbers = #tpu.dot_dimension_numbers<[1], [0], [0], [1], [0, 0, 1, 1], [], []>} : vector<256x32xf32>, vector<32x4xf32>, vector<256x4xf32> -> vector<256x4xf32>
    %c0_25 = arith.constant 0 : index
    %c0_26 = arith.constant 0 : index
    %39 = vector.load %arg8[%c0_25, %c0_26] : memref<1x4xf32, #tpu.memory_space<vmem>>, vector<1x4xf32>
    %40 = vector.broadcast %39 : vector<1x4xf32> to vector<256x4xf32>
    %41 = arith.addf %38, %40 : vector<256x4xf32>
    %c0_27 = arith.constant 0 : index
    %c0_28 = arith.constant 0 : index
    %42 = vector.load %arg9[%c0_27, %c0_28] : memref<32x4xf32, #tpu.memory_space<vmem>>, vector<32x4xf32>
    %cst_29 = arith.constant dense<0.000000e+00> : vector<256x4xf32>
    %43 = tpu.matmul %16, %42, %cst_29 {dimension_numbers = #tpu.dot_dimension_numbers<[1], [0], [0], [1], [0, 0, 1, 1], [], []>} : vector<256x32xf32>, vector<32x4xf32>, vector<256x4xf32> -> vector<256x4xf32>
    %c0_30 = arith.constant 0 : index
    %c0_31 = arith.constant 0 : index
    %44 = vector.load %arg10[%c0_30, %c0_31] : memref<1x4xf32, #tpu.memory_space<vmem>>, vector<1x4xf32>
    %45 = vector.broadcast %44 : vector<1x4xf32> to vector<256x4xf32>
    %46 = arith.addf %43, %45 : vector<256x4xf32>
    %c0_32 = arith.constant 0 : index
    %c0_33 = arith.constant 0 : index
    %47 = vector.load %arg11[%c0_32, %c0_33] : memref<32x32xf32, #tpu.memory_space<vmem>>, vector<32x32xf32>
    %cst_34 = arith.constant dense<0.000000e+00> : vector<256x32xf32>
    %48 = tpu.matmul %16, %47, %cst_34 {dimension_numbers = #tpu.dot_dimension_numbers<[1], [0], [0], [1], [0, 0, 1, 1], [], []>} : vector<256x32xf32>, vector<32x32xf32>, vector<256x32xf32> -> vector<256x32xf32>
    %c0_35 = arith.constant 0 : index
    %c0_36 = arith.constant 0 : index
    %49 = vector.load %arg12[%c0_35, %c0_36] : memref<1x32xf32, #tpu.memory_space<vmem>>, vector<1x32xf32>
    %50 = vector.broadcast %49 : vector<1x32xf32> to vector<256x32xf32>
    %51 = arith.addf %48, %50 : vector<256x32xf32>
    %cst_37 = arith.constant dense<0.000000e+00> : vector<256x256xf32>
    %52 = tpu.matmul %41, %46, %cst_37 {dimension_numbers = #tpu.dot_dimension_numbers<[1], [1], [0], [0], [0, 0, 1, 0], [], []>} : vector<256x4xf32>, vector<256x4xf32>, vector<256x256xf32> -> vector<256x256xf32>
    %cst_38 = arith.constant dense<0xFF800000> : vector<256xf32>
    %53 = vector.multi_reduction <maximumf>, %52, %cst_38 [1] : vector<256x256xf32> to vector<256xf32>
    %54 = vector.shape_cast %53 : vector<256xf32> to vector<256x1xf32>
    %55 = vector.broadcast %54 : vector<256x1xf32> to vector<256x256xf32>
    %56 = arith.subf %52, %55 : vector<256x256xf32>
    %57 = math.exp %56 : vector<256x256xf32>
    %cst_39 = arith.constant dense<0.000000e+00> : vector<256xf32>
    %58 = vector.multi_reduction <add>, %57, %cst_39 [1] : vector<256x256xf32> to vector<256xf32>
    %59 = vector.shape_cast %58 : vector<256xf32> to vector<256x1xf32>
    %60 = tpu.reciprocal %59 {approx = true} : vector<256x1xf32> -> vector<256x1xf32>
    %61 = vector.broadcast %60 : vector<256x1xf32> to vector<256x256xf32>
    %62 = arith.mulf %57, %61 : vector<256x256xf32>
    %cst_40 = arith.constant dense<0.000000e+00> : vector<256x32xf32>
    %63 = tpu.matmul %62, %51, %cst_40 {dimension_numbers = #tpu.dot_dimension_numbers<[1], [0], [0], [1], [0, 0, 1, 1], [], []>} : vector<256x256xf32>, vector<256x32xf32>, vector<256x32xf32> -> vector<256x32xf32>
    %c0_41 = arith.constant 0 : index
    %c0_42 = arith.constant 0 : index
    %64 = vector.load %arg15[%c0_41, %c0_42] : memref<1x1xf32, #tpu.memory_space<vmem>>, vector<1x1xf32>
    %65 = vector.broadcast %64 : vector<1x1xf32> to vector<256x32xf32>
    %66 = arith.mulf %65, %63 : vector<256x32xf32>
    %67 = arith.addf %66, %16 : vector<256x32xf32>
    %68 = arith.mulf %36, %67 : vector<256x32xf32>
    %c0_43 = arith.constant 0 : index
    %c0_44 = arith.constant 0 : index
    %69 = vector.load %arg13[%c0_43, %c0_44] : memref<32x1xf32, #tpu.memory_space<vmem>>, vector<32x1xf32>
    %cst_45 = arith.constant dense<0.000000e+00> : vector<256x1xf32>
    %70 = tpu.matmul %68, %69, %cst_45 {dimension_numbers = #tpu.dot_dimension_numbers<[1], [0], [0], [1], [0, 0, 1, 1], [], []>} : vector<256x32xf32>, vector<32x1xf32>, vector<256x1xf32> -> vector<256x1xf32>
    %c0_46 = arith.constant 0 : index
    %c0_47 = arith.constant 0 : index
    %71 = vector.load %arg14[%c0_46, %c0_47] : memref<1x1xf32, #tpu.memory_space<vmem>>, vector<1x1xf32>
    %72 = vector.broadcast %71 : vector<1x1xf32> to vector<256x1xf32>
    %73 = arith.addf %70, %72 : vector<256x1xf32>
    %cst_48 = arith.constant 0.000000e+00 : f32
    %74 = vector.broadcast %cst_48 : f32 to vector<256x1xf32>
    %75 = arith.subf %74, %73 : vector<256x1xf32>
    %76 = math.exp %75 : vector<256x1xf32>
    %cst_49 = arith.constant 1.000000e+00 : f32
    %77 = vector.broadcast %cst_49 : f32 to vector<256x1xf32>
    %78 = arith.addf %77, %76 : vector<256x1xf32>
    %cst_50 = arith.constant 1.000000e+00 : f32
    %79 = vector.broadcast %cst_50 : f32 to vector<256x1xf32>
    %80 = arith.divf %79, %78 : vector<256x1xf32>
    %81 = vector.broadcast %80 : vector<256x1xf32> to vector<256x32xf32>
    %82 = arith.mulf %3, %81 : vector<256x32xf32>
    %c0_51 = arith.constant 0 : index
    %c0_52 = arith.constant 0 : index
    %c0_53 = arith.constant 0 : index
    %83 = vector.load %arg17[%c0_51, %c0_52, %c0_53] : memref<1x256x32xf32, #tpu.memory_space<vmem>>, vector<1x256x32xf32>
    %84 = vector.shape_cast %83 : vector<1x256x32xf32> to vector<256x32xf32>
    %85 = vector.shape_cast %82 : vector<256x32xf32> to vector<1x256x32xf32>
    tpu.vector_store %arg17[%c0_51, %c0_52, %c0_53], %85 {strides = array<i32>} : memref<1x256x32xf32, #tpu.memory_space<vmem>>, vector<1x256x32xf32>,
    return
  }
  func.func @transform_0(%arg0: i32) -> (i32, i32, i32) {
    %c0_i32 = arith.constant 0 : i32
    %c0_i32_0 = arith.constant 0 : i32
    %c0_i32_1 = arith.constant 0 : i32
    return %arg0, %c0_i32, %c0_i32_0 : i32, i32, i32
  }
  func.func @transform_1(%arg0: i32) -> (i32, i32, i32) {
    %c0_i32 = arith.constant 0 : i32
    %c0_i32_0 = arith.constant 0 : i32
    %c0_i32_1 = arith.constant 0 : i32
    return %arg0, %c0_i32, %c0_i32_0 : i32, i32, i32
  }
  func.func @transform_2(%arg0: i32) -> (i32, i32) {
    %c0_i32 = arith.constant 0 : i32
    %c0_i32_0 = arith.constant 0 : i32
    %c0_i32_1 = arith.constant 0 : i32
    return %c0_i32, %c0_i32_0 : i32, i32
  }
  func.func @transform_3(%arg0: i32) -> (i32, i32) {
    %c0_i32 = arith.constant 0 : i32
    %c0_i32_0 = arith.constant 0 : i32
    %c0_i32_1 = arith.constant 0 : i32
    return %c0_i32, %c0_i32_0 : i32, i32
  }
  func.func @transform_4(%arg0: i32) -> (i32, i32) {
    %c0_i32 = arith.constant 0 : i32
    %c0_i32_0 = arith.constant 0 : i32
    %c0_i32_1 = arith.constant 0 : i32
    return %c0_i32, %c0_i32_0 : i32, i32
  }
  func.func @transform_5(%arg0: i32) -> (i32, i32) {
    %c0_i32 = arith.constant 0 : i32
    %c0_i32_0 = arith.constant 0 : i32
    %c0_i32_1 = arith.constant 0 : i32
    return %c0_i32, %c0_i32_0 : i32, i32
  }
  func.func @transform_6(%arg0: i32) -> (i32, i32) {
    %c0_i32 = arith.constant 0 : i32
    %c0_i32_0 = arith.constant 0 : i32
    %c0_i32_1 = arith.constant 0 : i32
    return %c0_i32, %c0_i32_0 : i32, i32
  }
  func.func @transform_7(%arg0: i32) -> (i32, i32) {
    %c0_i32 = arith.constant 0 : i32
    %c0_i32_0 = arith.constant 0 : i32
    %c0_i32_1 = arith.constant 0 : i32
    return %c0_i32, %c0_i32_0 : i32, i32
  }
  func.func @transform_8(%arg0: i32) -> (i32, i32) {
    %c0_i32 = arith.constant 0 : i32
    %c0_i32_0 = arith.constant 0 : i32
    %c0_i32_1 = arith.constant 0 : i32
    return %c0_i32, %c0_i32_0 : i32, i32
  }
  func.func @transform_9(%arg0: i32) -> (i32, i32) {
    %c0_i32 = arith.constant 0 : i32
    %c0_i32_0 = arith.constant 0 : i32
    %c0_i32_1 = arith.constant 0 : i32
    return %c0_i32, %c0_i32_0 : i32, i32
  }
  func.func @transform_10(%arg0: i32) -> (i32, i32) {
    %c0_i32 = arith.constant 0 : i32
    %c0_i32_0 = arith.constant 0 : i32
    %c0_i32_1 = arith.constant 0 : i32
    return %c0_i32, %c0_i32_0 : i32, i32
  }
  func.func @transform_11(%arg0: i32) -> (i32, i32) {
    %c0_i32 = arith.constant 0 : i32
    %c0_i32_0 = arith.constant 0 : i32
    %c0_i32_1 = arith.constant 0 : i32
    return %c0_i32, %c0_i32_0 : i32, i32
  }
  func.func @transform_12(%arg0: i32) -> (i32, i32) {
    %c0_i32 = arith.constant 0 : i32
    %c0_i32_0 = arith.constant 0 : i32
    %c0_i32_1 = arith.constant 0 : i32
    return %c0_i32, %c0_i32_0 : i32, i32
  }
  func.func @transform_13(%arg0: i32) -> (i32, i32) {
    %c0_i32 = arith.constant 0 : i32
    %c0_i32_0 = arith.constant 0 : i32
    %c0_i32_1 = arith.constant 0 : i32
    return %c0_i32, %c0_i32_0 : i32, i32
  }
  func.func @transform_14(%arg0: i32) -> (i32, i32) {
    %c0_i32 = arith.constant 0 : i32
    %c0_i32_0 = arith.constant 0 : i32
    %c0_i32_1 = arith.constant 0 : i32
    return %c0_i32, %c0_i32_0 : i32, i32
  }
  func.func @transform_15(%arg0: i32) -> (i32, i32) {
    %c0_i32 = arith.constant 0 : i32
    %c0_i32_0 = arith.constant 0 : i32
    %c0_i32_1 = arith.constant 0 : i32
    return %c0_i32, %c0_i32_0 : i32, i32
  }
  func.func @transform_16(%arg0: i32) -> (i32, i32, i32) {
    %c0_i32 = arith.constant 0 : i32
    %c0_i32_0 = arith.constant 0 : i32
    %c0_i32_1 = arith.constant 0 : i32
    return %arg0, %c0_i32, %c0_i32_0 : i32, i32, i32
  }
}

</mosaic_0001>

<llo_original>
// kernel: danet_forward.1
$region0: #{danet_forward.1}
  #allocation0 [shape = 'u32[]', space=smem, size = 0x4, offset = 0x4, fixed_abs, tag = 'smem constant byte address 0x4 - core index']
  #allocation1 [shape = 'u32[72,128]{1,0:T(1,128)}', space=vmem, size = 0x9000, scoped, tag = 'internal scratch']
  #allocation2 [shape = 'f32[1,1]{1,0:T(1,128)S(1)}', space=vmem, size = 0x200, scoped, tag = 'scoped memory for danet_forward.1']
  #allocation3 [shape = 'f32[1,1]{1,0:T(1,128)S(1)}', space=vmem, size = 0x200, scoped, tag = 'scoped memory for danet_forward.1']
  #allocation4 [shape = 'f32[1,1]{1,0:T(1,128)S(1)}', space=vmem, size = 0x200, scoped, tag = 'scoped memory for danet_forward.1']
  %s0 = inlined_call_operand.hbm [shape: f32[2,256,32], index: 0, kind: input, shape index: {}]
  %s1 = inlined_call_operand.hbm [shape: f32[2,256,32], index: 1, kind: input, shape index: {}]
  %s2 = inlined_call_operand.vmem [shape: f32[32,32], index: 2, kind: input, shape index: {}]
  %s3 = inlined_call_operand.vmem [shape: f32[1,32], index: 3, kind: input, shape index: {}]
  %s4 = inlined_call_operand.vmem [shape: f32[32,32], index: 4, kind: input, shape index: {}]
  %s5 = inlined_call_operand.vmem [shape: f32[1,32], index: 5, kind: input, shape index: {}]
  %s6 = inlined_call_operand.vmem [shape: f32[32,4], index: 6, kind: input, shape index: {}]
  %s7 = inlined_call_operand.vmem [shape: f32[1,4], index: 7, kind: input, shape index: {}]
  %s8 = inlined_call_operand.vmem [shape: f32[32,4], index: 8, kind: input, shape index: {}]
  %s9 = inlined_call_operand.vmem [shape: f32[1,4], index: 9, kind: input, shape index: {}]
  %s10 = inlined_call_operand.vmem [shape: f32[32,32], index: 10, kind: input, shape index: {}]
  %s11 = inlined_call_operand.vmem [shape: f32[1,32], index: 11, kind: input, shape index: {}]
  %s12 = inlined_call_operand.vmem [shape: f32[32,1], index: 12, kind: input, shape index: {}]
  %s13 = inlined_call_operand.<no memory space> [shape: f32[1,1], index: 13, kind: input, shape index: {}]
  %s14 = inlined_call_operand.<no memory space> [shape: f32[1,1], index: 14, kind: input, shape index: {}]
  %s15 = inlined_call_operand.<no memory space> [shape: f32[1,1], index: 15, kind: input, shape index: {}]
  %s16 = inlined_call_operand.hbm [shape: f32[2,256,32], index: 16, kind: output, shape index: {}]
  %s17 = sld [smem:[#allocation0]]
  $region105: #{danet_forward.1} parent=0
    _
  %s19 = ssub.s32 1, %s17
  %s20 = scalar_select 0, %s19, %s17
  %v21 = vstv %s13
  %22 = vst [vmem:[#allocation2] sm:$0x1] %v21
  %v23 = vstv %s14
  %24 = vst [vmem:[#allocation3] sm:$0x1] %v23
  %v25 = vstv %s15
  %26 = vst [vmem:[#allocation4] sm:$0x1] %v25
  $region1: #{danet_forward.1} parent=0
    #allocation5 [shape = 'u8[262144]{0}', space=vmem, size = 0x40000, scoped, tag = 'input window, operand 0']
    #allocation6 [shape = 's32[2]{0}', space=sflag, size = 0x8, scoped, tag = 'scoped memory for danet_forward.1']
    #allocation7 [shape = 's32[2]{0}', space=sflag, size = 0x8, scoped, tag = 'scoped memory for danet_forward.1']
    #allocation8 [shape = 'u8[262144]{0}', space=vmem, size = 0x40000, scoped, tag = 'input window, operand 1']
    #allocation9 [shape = 's32[2]{0}', space=sflag, size = 0x8, scoped, tag = 'scoped memory for danet_forward.1']
    #allocation10 [shape = 'u8[262144]{0}', space=vmem, size = 0x40000, scoped, tag = 'output window, operand 0']
    %27 = vsyncpa [#allocation6], 0
    %s28 = scalar_lea.sflag [#allocation6], 1
    %29 = vsyncpa %s28, 0
    %30 = vsyncpa [#allocation9], 0
    %s31 = scalar_lea.sflag [#allocation9], 1
    %32 = vsyncpa %s31, 0
    %33 = vsyncpa [#allocation7], 0
    %s34 = scalar_lea.sflag [#allocation7], 1
    %35 = vsyncpa %s34, 0
    loop: start=0, step=1, limit=4
    $region2: #{danet_forward.1} parent=1 // loop_pre_header
      _
    $region3: #{danet_forward.1} parent=1 // loop_header
      %s37 = sphi 0, %s41
      %p38 = scmp.ge.s32.totalorder %s37, 4
      %s47 = sphi 0, %s49
      %s50 = sphi 0, %s47
      %s51 = sphi 0, %s50
      %s67 = sphi 0, %s51
      %s73 = sphi 0, %s75
      %s76 = sphi 0, %s73
      %s77 = sphi 0, %s76
      %s93 = sphi 0, %s77
      %s97 = sphi 0, %s97
      %s99 = sphi 0, %s97
      %s100 = sphi 0, %s99
      %s114 = sphi 0, %s100
      %s118 = sphi 0, %s118
      %s120 = sphi 0, %s118
      %s121 = sphi 0, %s120
      %s135 = sphi 0, %s121
      %s139 = sphi 0, %s139
      %s141 = sphi 0, %s139
      %s142 = sphi 0, %s141
      %s156 = sphi 0, %s142
      %s160 = sphi 0, %s160
      %s162 = sphi 0, %s160
      %s163 = sphi 0, %s162
      %s177 = sphi 0, %s163
      %s181 = sphi 0, %s181
      %s183 = sphi 0, %s181
      %s184 = sphi 0, %s183
      %s198 = sphi 0, %s184
      %s202 = sphi 0, %s202
      %s204 = sphi 0, %s202
      %s205 = sphi 0, %s204
      %s219 = sphi 0, %s205
      %s223 = sphi 0, %s223
      %s225 = sphi 0, %s223
      %s226 = sphi 0, %s225
      %s240 = sphi 0, %s226
      %s244 = sphi 0, %s244
      %s246 = sphi 0, %s244
      %s247 = sphi 0, %s246
      %s261 = sphi 0, %s247
      %s265 = sphi 0, %s265
      %s267 = sphi 0, %s265
      %s268 = sphi 0, %s267
      %s282 = sphi 0, %s268
      %s286 = sphi 0, %s286
      %s288 = sphi 0, %s286
      %s289 = sphi 0, %s288
      %s303 = sphi 0, %s289
      %s307 = sphi 0, %s307
      %s309 = sphi 0, %s307
      %s310 = sphi 0, %s309
      %s324 = sphi 0, %s310
      %s328 = sphi 0, %s328
      %s330 = sphi 0, %s328
      %s331 = sphi 0, %s330
      %s345 = sphi 0, %s331
      %s349 = sphi 0, %s349
      %s351 = sphi 0, %s349
      %s352 = sphi 0, %s351
      %s366 = sphi 0, %s352
      %s370 = sphi 0, %s370
      %s372 = sphi 0, %s370
      %s373 = sphi 0, %s372
      %s387 = sphi 0, %s373
      %s393 = sphi 0, %s395
      %s396 = sphi 0, %s393
      %s397 = sphi 0, %s396
      %s413 = sphi 0, %s397
    $region4: #{danet_forward.1} parent=1 // loop_header_branch
      %40 = sbr.rel (%p38) target = $region8
    $region5: #{danet_forward.1} parent=1 // loop_body
      %s42 = ssub.s32 %s37, 1
      %s43 = ssub.s32 %s37, 2
      %s44 = sadd.s32 %s37, 1
      %s45 = ssub.s32 %s37, %s44
      %p46 = scmp.eq.s32.totalorder %s45, 0
      %s48 = sadd.s32 %s47, 1
      %s49 = scalar_select %p46, %s47, %s48
      %p52 = pneg %p46
      %p53 = scmp.eq.s32.totalorder %s37, 1
      %p54 = por %p52, %p53
      %p55 = scmp.ne.s32.totalorder %s47, %s50
      %p56 = scmp.eq.s32.totalorder %s37, 0
      %p57 = por %p55, %p56
      %p58 = scmp.ne.s32.totalorder %s47, %s50
      %p59 = scmp.eq.s32.totalorder %s42, 1
      %p60 = por %p58, %p59
      %p61 = scmp.ne.s32.totalorder %s50, %s51
      %p62 = scmp.eq.s32.totalorder %s42, 0
      %p63 = por %p61, %p62
      %p64 = scmp.ne.s32.totalorder %s50, %s51
      %p65 = scmp.eq.s32.totalorder %s43, 1
      %p66 = por %p64, %p65
      %p68 = scmp.ne.s32.totalorder %s51, %s67
      %p69 = scmp.eq.s32.totalorder %s43, 0
      %p70 = por %p68, %p69
      %s71 = ssub.s32 %s37, %s44
      %p72 = scmp.eq.s32.totalorder %s71, 0
      %s74 = sadd.s32 %s73, 1
      %s75 = scalar_select %p72, %s73, %s74
      %p78 = pneg %p72
      %p79 = scmp.eq.s32.totalorder %s37, 1
      %p80 = por %p78, %p79
      %p81 = scmp.ne.s32.totalorder %s73, %s76
      %p82 = scmp.eq.s32.totalorder %s37, 0
      %p83 = por %p81, %p82
      %p84 = scmp.ne.s32.totalorder %s73, %s76
      %p85 = scmp.eq.s32.totalorder %s42, 1
      %p86 = por %p84, %p85
      %p87 = scmp.ne.s32.totalorder %s76, %s77
      %p88 = scmp.eq.s32.totalorder %s42, 0
      %p89 = por %p87, %p88
      %p90 = scmp.ne.s32.totalorder %s76, %s77
      %p91 = scmp.eq.s32.totalorder %s43, 1
      %p92 = por %p90, %p91
      %p94 = scmp.ne.s32.totalorder %s77, %s93
      %p95 = scmp.eq.s32.totalorder %s43, 0
      %p96 = por %p94, %p95
      %s98 = sadd.s32 %s97, 1
      %p101 = scmp.eq.s32.totalorder %s37, 1
      %p102 = scmp.ne.s32.totalorder %s97, %s99
      %p103 = scmp.eq.s32.totalorder %s37, 0
      %p104 = por %p102, %p103
      %p105 = scmp.ne.s32.totalorder %s97, %s99
      %p106 = scmp.eq.s32.totalorder %s42, 1
      %p107 = por %p105, %p106
      %p108 = scmp.ne.s32.totalorder %s99, %s100
      %p109 = scmp.eq.s32.totalorder %s42, 0
      %p110 = por %p108, %p109
      %p111 = scmp.ne.s32.totalorder %s99, %s100
      %p112 = scmp.eq.s32.totalorder %s43, 1
      %p113 = por %p111, %p112
      %p115 = scmp.ne.s32.totalorder %s100, %s114
      %p116 = scmp.eq.s32.totalorder %s43, 0
      %p117 = por %p115, %p116
      %s119 = sadd.s32 %s118, 1
      %p122 = scmp.eq.s32.totalorder %s37, 1
      %p123 = scmp.ne.s32.totalorder %s118, %s120
      %p124 = scmp.eq.s32.totalorder %s37, 0
      %p125 = por %p123, %p124
      %p126 = scmp.ne.s32.totalorder %s118, %s120
      %p127 = scmp.eq.s32.totalorder %s42, 1
      %p128 = por %p126, %p127
      %p129 = scmp.ne.s32.totalorder %s120, %s121
      %p130 = scmp.eq.s32.totalorder %s42, 0
      %p131 = por %p129, %p130
      %p132 = scmp.ne.s32.totalorder %s120, %s121
      %p133 = scmp.eq.s32.totalorder %s43, 1
      %p134 = por %p132, %p133
      %p136 = scmp.ne.s32.totalorder %s121, %s135
      %p137 = scmp.eq.s32.totalorder %s43, 0
      %p138 = por %p136, %p137
      %s140 = sadd.s32 %s139, 1
      %p143 = scmp.eq.s32.totalorder %s37, 1
      %p144 = scmp.ne.s32.totalorder %s139, %s141
      %p145 = scmp.eq.s32.totalorder %s37, 0
      %p146 = por %p144, %p145
      %p147 = scmp.ne.s32.totalorder %s139, %s141
      %p148 = scmp.eq.s32.totalorder %s42, 1
      %p149 = por %p147, %p148
      %p150 = scmp.ne.s32.totalorder %s141, %s142
      %p151 = scmp.eq.s32.totalorder %s42, 0
      %p152 = por %p150, %p151
      %p153 = scmp.ne.s32.totalorder %s141, %s142
      %p154 = scmp.eq.s32.totalorder %s43, 1
      %p155 = por %p153, %p154
      %p157 = scmp.ne.s32.totalorder %s142, %s156
      %p158 = scmp.eq.s32.totalorder %s43, 0
      %p159 = por %p157, %p158
      %s161 = sadd.s32 %s160, 1
      %p164 = scmp.eq.s32.totalorder %s37, 1
      %p165 = scmp.ne.s32.totalorder %s160, %s162
      %p166 = scmp.eq.s32.totalorder %s37, 0
      %p167 = por %p165, %p166
      %p168 = scmp.ne.s32.totalorder %s160, %s162
      %p169 = scmp.eq.s32.totalorder %s42, 1
      %p170 = por %p168, %p169
      %p171 = scmp.ne.s32.totalorder %s162, %s163
      %p172 = scmp.eq.s32.totalorder %s42, 0
      %p173 = por %p171, %p172
      %p174 = scmp.ne.s32.totalorder %s162, %s163
      %p175 = scmp.eq.s32.totalorder %s43, 1
      %p176 = por %p174, %p175
      %p178 = scmp.ne.s32.totalorder %s163, %s177
      %p179 = scmp.eq.s32.totalorder %s43, 0
      %p180 = por %p178, %p179
      %s182 = sadd.s32 %s181, 1
      %p185 = scmp.eq.s32.totalorder %s37, 1
      %p186 = scmp.ne.s32.totalorder %s181, %s183
      %p187 = scmp.eq.s32.totalorder %s37, 0
      %p188 = por %p186, %p187
      %p189 = scmp.ne.s32.totalorder %s181, %s183
      %p190 = scmp.eq.s32.totalorder %s42, 1
      %p191 = por %p189, %p190
      %p192 = scmp.ne.s32.totalorder %s183, %s184
      %p193 = scmp.eq.s32.totalorder %s42, 0
      %p194 = por %p192, %p193
      %p195 = scmp.ne.s32.totalorder %s183, %s184
      %p196 = scmp.eq.s32.totalorder %s43, 1
      %p197 = por %p195, %p196
      %p199 = scmp.ne.s32.totalorder %s184, %s198
      %p200 = scmp.eq.s32.totalorder %s43, 0
      %p201 = por %p199, %p200
      %s203 = sadd.s32 %s202, 1
      %p206 = scmp.eq.s32.totalorder %s37, 1
      %p207 = scmp.ne.s32.totalorder %s202, %s204
      %p208 = scmp.eq.s32.totalorder %s37, 0
      %p209 = por %p207, %p208
      %p210 = scmp.ne.s32.totalorder %s202, %s204
      %p211 = scmp.eq.s32.totalorder %s42, 1
      %p212 = por %p210, %p211
      %p213 = scmp.ne.s32.totalorder %s204, %s205
      %p214 = scmp.eq.s32.totalorder %s42, 0
      %p215 = por %p213, %p214
      %p216 = scmp.ne.s32.totalorder %s204, %s205
      %p217 = scmp.eq.s32.totalorder %s43, 1
      %p218 = por %p216, %p217
      %p220 = scmp.ne.s32.totalorder %s205, %s219
      %p221 = scmp.eq.s32.totalorder %s43, 0
      %p222 = por %p220, %p221
      %s224 = sadd.s32 %s223, 1
      %p227 = scmp.eq.s32.totalorder %s37, 1
      %p228 = scmp.ne.s32.totalorder %s223, %s225
      %p229 = scmp.eq.s32.totalorder %s37, 0
      %p230 = por %p228, %p229
      %p231 = scmp.ne.s32.totalorder %s223, %s225
      %p232 = scmp.eq.s32.totalorder %s42, 1
      %p233 = por %p231, %p232
      %p234 = scmp.ne.s32.totalorder %s225, %s226
      %p235 = scmp.eq.s32.totalorder %s42, 0
      %p236 = por %p234, %p235
      %p237 = scmp.ne.s32.totalorder %s225, %s226
      %p238 = scmp.eq.s32.totalorder %s43, 1
      %p239 = por %p237, %p238
      %p241 = scmp.ne.s32.totalorder %s226, %s240
      %p242 = scmp.eq.s32.totalorder %s43, 0
      %p243 = por %p241, %p242
      %s245 = sadd.s32 %s244, 1
      %p248 = scmp.eq.s32.totalorder %s37, 1
      %p249 = scmp.ne.s32.totalorder %s244, %s246
      %p250 = scmp.eq.s32.totalorder %s37, 0
      %p251 = por %p249, %p250
      %p252 = scmp.ne.s32.totalorder %s244, %s246
      %p253 = scmp.eq.s32.totalorder %s42, 1
      %p254 = por %p252, %p253
      %p255 = scmp.ne.s32.totalorder %s246, %s247
      %p256 = scmp.eq.s32.totalorder %s42, 0
      %p257 = por %p255, %p256
      %p258 = scmp.ne.s32.totalorder %s246, %s247
      %p259 = scmp.eq.s32.totalorder %s43, 1
      %p260 = por %p258, %p259
      %p262 = scmp.ne.s32.totalorder %s247, %s261
      %p263 = scmp.eq.s32.totalorder %s43, 0
      %p264 = por %p262, %p263
      %s266 = sadd.s32 %s265, 1
      %p269 = scmp.eq.s32.totalorder %s37, 1
      %p270 = scmp.ne.s32.totalorder %s265, %s267
      %p271 = scmp.eq.s32.totalorder %s37, 0
      %p272 = por %p270, %p271
      %p273 = scmp.ne.s32.totalorder %s265, %s267
      %p274 = scmp.eq.s32.totalorder %s42, 1
      %p275 = por %p273, %p274
      %p276 = scmp.ne.s32.totalorder %s267, %s268
      %p277 = scmp.eq.s32.totalorder %s42, 0
      %p278 = por %p276, %p277
      %p279 = scmp.ne.s32.totalorder %s267, %s268
      %p280 = scmp.eq.s32.totalorder %s43, 1
      %p281 = por %p279, %p280
      %p283 = scmp.ne.s32.totalorder %s268, %s282
      %p284 = scmp.eq.s32.totalorder %s43, 0
      %p285 = por %p283, %p284
      %s287 = sadd.s32 %s286, 1
      %p290 = scmp.eq.s32.totalorder %s37, 1
      %p291 = scmp.ne.s32.totalorder %s286, %s288
      %p292 = scmp.eq.s32.totalorder %s37, 0
      %p293 = por %p291, %p292
      %p294 = scmp.ne.s32.totalorder %s286, %s288
      %p295 = scmp.eq.s32.totalorder %s42, 1
      %p296 = por %p294, %p295
      %p297 = scmp.ne.s32.totalorder %s288, %s289
      %p298 = scmp.eq.s32.totalorder %s42, 0
      %p299 = por %p297, %p298
      %p300 = scmp.ne.s32.totalorder %s288, %s289
      %p301 = scmp.eq.s32.totalorder %s43, 1
      %p302 = por %p300, %p301
      %p304 = scmp.ne.s32.totalorder %s289, %s303
      %p305 = scmp.eq.s32.totalorder %s43, 0
      %p306 = por %p304, %p305
      %s308 = sadd.s32 %s307, 1
      %p311 = scmp.eq.s32.totalorder %s37, 1
      %p312 = scmp.ne.s32.totalorder %s307, %s309
      %p313 = scmp.eq.s32.totalorder %s37, 0
      %p314 = por %p312, %p313
      %p315 = scmp.ne.s32.totalorder %s307, %s309
      %p316 = scmp.eq.s32.totalorder %s42, 1
      %p317 = por %p315, %p316
      %p318 = scmp.ne.s32.totalorder %s309, %s310
      %p319 = scmp.eq.s32.totalorder %s42, 0
      %p320 = por %p318, %p319
      %p321 = scmp.ne.s32.totalorder %s309, %s310
      %p322 = scmp.eq.s32.totalorder %s43, 1
      %p323 = por %p321, %p322
      %p325 = scmp.ne.s32.totalorder %s310, %s324
      %p326 = scmp.eq.s32.totalorder %s43, 0
      %p327 = por %p325, %p326
      %s329 = sadd.s32 %s328, 1
      %p332 = scmp.eq.s32.totalorder %s37, 1
      %p333 = scmp.ne.s32.totalorder %s328, %s330
      %p334 = scmp.eq.s32.totalorder %s37, 0
      %p335 = por %p333, %p334
      %p336 = scmp.ne.s32.totalorder %s328, %s330
      %p337 = scmp.eq.s32.totalorder %s42, 1
      %p338 = por %p336, %p337
      %p339 = scmp.ne.s32.totalorder %s330, %s331
      %p340 = scmp.eq.s32.totalorder %s42, 0
      %p341 = por %p339, %p340
      %p342 = scmp.ne.s32.totalorder %s330, %s331
      %p343 = scmp.eq.s32.totalorder %s43, 1
      %p344 = por %p342, %p343
      %p346 = scmp.ne.s32.totalorder %s331, %s345
      %p347 = scmp.eq.s32.totalorder %s43, 0
      %p348 = por %p346, %p347
      %s350 = sadd.s32 %s349, 1
      %p353 = scmp.eq.s32.totalorder %s37, 1
      %p354 = scmp.ne.s32.totalorder %s349, %s351
      %p355 = scmp.eq.s32.totalorder %s37, 0
      %p356 = por %p354, %p355
      %p357 = scmp.ne.s32.totalorder %s349, %s351
      %p358 = scmp.eq.s32.totalorder %s42, 1
      %p359 = por %p357, %p358
      %p360 = scmp.ne.s32.totalorder %s351, %s352
      %p361 = scmp.eq.s32.totalorder %s42, 0
      %p362 = por %p360, %p361
      %p363 = scmp.ne.s32.totalorder %s351, %s352
      %p364 = scmp.eq.s32.totalorder %s43, 1
      %p365 = por %p363, %p364
      %p367 = scmp.ne.s32.totalorder %s352, %s366
      %p368 = scmp.eq.s32.totalorder %s43, 0
      %p369 = por %p367, %p368
      %s371 = sadd.s32 %s370, 1
      %p374 = scmp.eq.s32.totalorder %s37, 1
      %p375 = scmp.ne.s32.totalorder %s370, %s372
      %p376 = scmp.eq.s32.totalorder %s37, 0
      %p377 = por %p375, %p376
      %p378 = scmp.ne.s32.totalorder %s370, %s372
      %p379 = scmp.eq.s32.totalorder %s42, 1
      %p380 = por %p378, %p379
      %p381 = scmp.ne.s32.totalorder %s372, %s373
      %p382 = scmp.eq.s32.totalorder %s42, 0
      %p383 = por %p381, %p382
      %p384 = scmp.ne.s32.totalorder %s372, %s373
      %p385 = scmp.eq.s32.totalorder %s43, 1
      %p386 = por %p384, %p385
      %p388 = scmp.ne.s32.totalorder %s373, %s387
      %p389 = scmp.eq.s32.totalorder %s43, 0
      %p390 = por %p388, %p389
      %s391 = ssub.s32 %s37, %s44
      %p392 = scmp.eq.s32.totalorder %s391, 0
      %s394 = sadd.s32 %s393, 1
      %s395 = scalar_select %p392, %s393, %s394
      %p398 = pneg %p392
      %p399 = scmp.eq.s32.totalorder %s37, 1
      %p400 = por %p398, %p399
      %p401 = scmp.ne.s32.totalorder %s393, %s396
      %p402 = scmp.eq.s32.totalorder %s37, 0
      %p403 = por %p401, %p402
      %p404 = scmp.ne.s32.totalorder %s393, %s396
      %p405 = scmp.eq.s32.totalorder %s42, 1
      %p406 = por %p404, %p405
      %p407 = scmp.ne.s32.totalorder %s396, %s397
      %p408 = scmp.eq.s32.totalorder %s42, 0
      %p409 = por %p407, %p408
      %p410 = scmp.ne.s32.totalorder %s396, %s397
      %p411 = scmp.eq.s32.totalorder %s43, 1
      %p412 = por %p410, %p411
      %p414 = scmp.ne.s32.totalorder %s397, %s413
      %p415 = scmp.eq.s32.totalorder %s43, 0
      %p416 = por %p414, %p415
      %p417 = scmp.le.s32.totalorder 1, %s37
      %p418 = scmp.lt.s32.totalorder %s37, 3
      %p419 = pnand %p417, %p418
      %p420 = pneg %p419
      // Predicated region
      $region9: #{danet_forward.1} parent=5 // pred_check
        _
      $region10: #{danet_forward.1} parent=5 // pred_check_branch
        %422 = sbr.rel (%p419) target = $region12
      $region11: #{danet_forward.1} parent=5 // pred_region
        %s423 = ssub.s32 %s37, 1
        // Predicated region
        $region13: #{danet_forward.1} parent=11 // pred_check
          %p424 = pneg %p110
        $region14: #{danet_forward.1} parent=11 // pred_check_branch
          %426 = sbr.rel (%p424) target = $region16
        $region15: #{danet_forward.1} parent=11 // pred_region
          _
        $region16: #{danet_forward.1} parent=11 // pred_fallthru
          _
        // Predicated region
        $region17: #{danet_forward.1} parent=11 // pred_check
          %p427 = pneg %p131
        $region18: #{danet_forward.1} parent=11 // pred_check_branch
          %429 = sbr.rel (%p427) target = $region20
        $region19: #{danet_forward.1} parent=11 // pred_region
          _
        $region20: #{danet_forward.1} parent=11 // pred_fallthru
          _
        // Predicated region
        $region21: #{danet_forward.1} parent=11 // pred_check
          %p430 = pneg %p152
        $region22: #{danet_forward.1} parent=11 // pred_check_branch
          %432 = sbr.rel (%p430) target = $region24
        $region23: #{danet_forward.1} parent=11 // pred_region
          _
        $region24: #{danet_forward.1} parent=11 // pred_fallthru
          _
        // Predicated region
        $region25: #{danet_forward.1} parent=11 // pred_check
          %p433 = pneg %p173
        $region26: #{danet_forward.1} parent=11 // pred_check_branch
          %435 = sbr.rel (%p433) target = $region28
        $region27: #{danet_forward.1} parent=11 // pred_region
          _
        $region28: #{danet_forward.1} parent=11 // pred_fallthru
          _
        // Predicated region
        $region29: #{danet_forward.1} parent=11 // pred_check
          %p436 = pneg %p194
        $region30: #{danet_forward.1} parent=11 // pred_check_branch
          %438 = sbr.rel (%p436) target = $region32
        $region31: #{danet_forward.1} parent=11 // pred_region
          _
        $region32: #{danet_forward.1} parent=11 // pred_fallthru
          _
        // Predicated region
        $region33: #{danet_forward.1} parent=11 // pred_check
          %p439 = pneg %p215
        $region34: #{danet_forward.1} parent=11 // pred_check_branch
          %441 = sbr.rel (%p439) target = $region36
        $region35: #{danet_forward.1} parent=11 // pred_region
          _
        $region36: #{danet_forward.1} parent=11 // pred_fallthru
          _
        // Predicated region
        $region37: #{danet_forward.1} parent=11 // pred_check
          %p442 = pneg %p236
        $region38: #{danet_forward.1} parent=11 // pred_check_branch
          %444 = sbr.rel (%p442) target = $region40
        $region39: #{danet_forward.1} parent=11 // pred_region
          _
        $region40: #{danet_forward.1} parent=11 // pred_fallthru
          _
        // Predicated region
        $region41: #{danet_forward.1} parent=11 // pred_check
          %p445 = pneg %p257
        $region42: #{danet_forward.1} parent=11 // pred_check_branch
          %447 = sbr.rel (%p445) target = $region44
        $region43: #{danet_forward.1} parent=11 // pred_region
          _
        $region44: #{danet_forward.1} parent=11 // pred_fallthru
          _
        // Predicated region
        $region45: #{danet_forward.1} parent=11 // pred_check
          %p448 = pneg %p278
        $region46: #{danet_forward.1} parent=11 // pred_check_branch
          %450 = sbr.rel (%p448) target = $region48
        $region47: #{danet_forward.1} parent=11 // pred_region
          _
        $region48: #{danet_forward.1} parent=11 // pred_fallthru
          _
        // Predicated region
        $region49: #{danet_forward.1} parent=11 // pred_check
          %p451 = pneg %p299
        $region50: #{danet_forward.1} parent=11 // pred_check_branch
          %453 = sbr.rel (%p451) target = $region52
        $region51: #{danet_forward.1} parent=11 // pred_region
          _
        $region52: #{danet_forward.1} parent=11 // pred_fallthru
          _
        // Predicated region
        $region53: #{danet_forward.1} parent=11 // pred_check
          %p454 = pneg %p320
        $region54: #{danet_forward.1} parent=11 // pred_check_branch
          %456 = sbr.rel (%p454) target = $region56
        $region55: #{danet_forward.1} parent=11 // pred_region
          _
        $region56: #{danet_forward.1} parent=11 // pred_fallthru
          _
        // Predicated region
        $region57: #{danet_forward.1} parent=11 // pred_check
          %p457 = pneg %p341
        $region58: #{danet_forward.1} parent=11 // pred_check_branch
          %459 = sbr.rel (%p457) target = $region60
        $region59: #{danet_forward.1} parent=11 // pred_region
          _
        $region60: #{danet_forward.1} parent=11 // pred_fallthru
          _
        // Predicated region
        $region61: #{danet_forward.1} parent=11 // pred_check
          %p460 = pneg %p362
        $region62: #{danet_forward.1} parent=11 // pred_check_branch
          %462 = sbr.rel (%p460) target = $region64
        $region63: #{danet_forward.1} parent=11 // pred_region
          _
        $region64: #{danet_forward.1} parent=11 // pred_fallthru
          _
        // Predicated region
        $region65: #{danet_forward.1} parent=11 // pred_check
          %p463 = pneg %p383
        $region66: #{danet_forward.1} parent=11 // pred_check_branch
          %465 = sbr.rel (%p463) target = $region68
        $region67: #{danet_forward.1} parent=11 // pred_region
          _
        $region68: #{danet_forward.1} parent=11 // pred_fallthru
          _
      $region12: #{danet_forward.1} parent=5 // pred_fallthru
        _
      %p466 = scmp.lt.s32.totalorder %s37, 2
      // Predicated region
      $region69: #{danet_forward.1} parent=5 // pred_check
        %p467 = pneg %p466
      $region70: #{danet_forward.1} parent=5 // pred_check_branch
        %469 = sbr.rel (%p467) target = $region72
      $region71: #{danet_forward.1} parent=5 // pred_region
        // Predicated region
        $region73: #{danet_forward.1} parent=71 // pred_check
          %p470 = pneg %p57
        $region74: #{danet_forward.1} parent=71 // pred_check_branch
          %472 = sbr.rel (%p470) target = $region76
        $region75: #{danet_forward.1} parent=71 // pred_region
          %s473 = sand.u32 %s47, 1
          %s474 = scalar_lea.sflag [#allocation6], %s473
          %s475 = sand.u32 %s47, 1
          %s476 = smul.addr %s475, 256
          %s477 = scalar_lea.vmem [#allocation5], %s476
          %479 = vsyncadd %s474, 0
          %s480 = smul.addr %s37, 32
          %s481 = smul.addr %s480, 8
          %s482 = scalar_lea.hbm %s0, %s481
          %s483 = sshll.u32 %s482, 4
          %s484 = int_to_ptr.hbm [resolvable:$true] %s483
          %s485 = sshll.u32 %s477, 4
          %s486 = int_to_ptr.vmem [resolvable:$true] %s485
          %491 = dma.hbm_to_vmem [thread:$0]  %s484, 4096, %s486, %s474, 128, 128, 8
        $region76: #{danet_forward.1} parent=71 // pred_fallthru
          _
        // Predicated region
        $region77: #{danet_forward.1} parent=71 // pred_check
          %p492 = pneg %p83
        $region78: #{danet_forward.1} parent=71 // pred_check_branch
          %494 = sbr.rel (%p492) target = $region80
        $region79: #{danet_forward.1} parent=71 // pred_region
          %s495 = sand.u32 %s73, 1
          %s496 = scalar_lea.sflag [#allocation9], %s495
          %s497 = sand.u32 %s73, 1
          %s498 = smul.addr %s497, 256
          %s499 = scalar_lea.vmem [#allocation8], %s498
          %501 = vsyncadd %s496, 0
          %s502 = smul.addr %s37, 32
          %s503 = smul.addr %s502, 8
          %s504 = scalar_lea.hbm %s1, %s503
          %s505 = sshll.u32 %s504, 4
          %s506 = int_to_ptr.hbm [resolvable:$true] %s505
          %s507 = sshll.u32 %s499, 4
          %s508 = int_to_ptr.vmem [resolvable:$true] %s507
          %513 = dma.hbm_to_vmem [thread:$0]  %s506, 4096, %s508, %s496, 128, 128, 8
        $region80: #{danet_forward.1} parent=71 // pred_fallthru
          _
      $region72: #{danet_forward.1} parent=5 // pred_fallthru
        _
      %p514 = scmp.le.s32.totalorder 1, %s37
      %p515 = scmp.lt.s32.totalorder %s37, 3
      %p516 = pnand %p514, %p515
      %p517 = pneg %p516
      // Predicated region
      $region81: #{danet_forward.1} parent=5 // pred_check
        _
      $region82: #{danet_forward.1} parent=5 // pred_check_branch
        %519 = sbr.rel (%p516) target = $region84
      $region83: #{danet_forward.1} parent=5 // pred_region
        %s520 = ssub.s32 %s37, 1
        %s521 = sand.u32 %s50, 1
        %s522 = scalar_lea.sflag [#allocation6], %s521
        %s523 = sand.u32 %s50, 1
        %s524 = smul.addr %s523, 256
        %s525 = scalar_lea.vmem [#allocation5], %s524
        // Predicated region
        $region85: #{danet_forward.1} parent=83 // pred_check
          %p526 = pneg %p63
        $region86: #{danet_forward.1} parent=83 // pred_check_branch
          %528 = sbr.rel (%p526) target = $region88
        $region87: #{danet_forward.1} parent=83 // pred_region
          %530 = dma.done %s522, 4096
        $region88: #{danet_forward.1} parent=83 // pred_fallthru
          _
        %s531 = sand.u32 %s76, 1
        %s532 = scalar_lea.sflag [#allocation9], %s531
        %s533 = sand.u32 %s76, 1
        %s534 = smul.addr %s533, 256
        %s535 = scalar_lea.vmem [#allocation8], %s534
        // Predicated region
        $region89: #{danet_forward.1} parent=83 // pred_check
          %p536 = pneg %p89
        $region90: #{danet_forward.1} parent=83 // pred_check_branch
          %538 = sbr.rel (%p536) target = $region92
        $region91: #{danet_forward.1} parent=83 // pred_region
          %540 = dma.done %s532, 4096
        $region92: #{danet_forward.1} parent=83 // pred_fallthru
          _
        %s541 = sand.u32 %s50, 1
        %s542 = scalar_lea.sflag [#allocation6], %s541
        %s543 = sand.u32 %s50, 1
        %s544 = smul.addr %s543, 256
        %s545 = scalar_lea.vmem [#allocation5], %s544
        %p546 = pneg %p63
        %p547 = pneg %p60
        %s548 = sand.u32 %s76, 1
        %s549 = scalar_lea.sflag [#allocation9], %s548
        %s550 = sand.u32 %s76, 1
        %s551 = smul.addr %s550, 256
        %s552 = scalar_lea.vmem [#allocation8], %s551
        %p553 = pneg %p89
        %p554 = pneg %p86
        %p555 = pneg %p110
        %p556 = pneg %p107
        %p557 = pneg %p131
        %p558 = pneg %p128
        %p559 = pneg %p152
        %p560 = pneg %p149
        %p561 = pneg %p173
        %p562 = pneg %p170
        %p563 = pneg %p194
        %p564 = pneg %p191
        %p565 = pneg %p215
        %p566 = pneg %p212
        %p567 = pneg %p236
        %p568 = pneg %p233
        %p569 = pneg %p257
        %p570 = pneg %p254
        %p571 = pneg %p278
        %p572 = pneg %p275
        %p573 = pneg %p299
        %p574 = pneg %p296
        %p575 = pneg %p320
        %p576 = pneg %p317
        %p577 = pneg %p341
        %p578 = pneg %p338
        %p579 = pneg %p362
        %p580 = pneg %p359
        %p581 = pneg %p383
        %p582 = pneg %p380
        %p583 = pneg %p409
        %p584 = pneg %p406
        %s585 = sand.u32 %s396, 1
        %s586 = scalar_lea.sflag [#allocation7], %s585
        %s587 = sand.u32 %s396, 1
        %s588 = smul.addr %s587, 256
        %s589 = scalar_lea.vmem [#allocation10], %s588
        %v590 = vld [vmem:[%s525] sm:$0xff]
        %v591 = vld [vmem:[%s525 + $0x8] sm:$0xff]
        %v592 = vld [vmem:[%s525 + $0x10] sm:$0xff]
        %v593 = vld [vmem:[%s525 + $0x18] sm:$0xff]
        %v594 = vld [vmem:[%s525 + $0x20] sm:$0xff]
        %v595 = vld [vmem:[%s525 + $0x28] sm:$0xff]
        %v596 = vld [vmem:[%s525 + $0x30] sm:$0xff]
        %v597 = vld [vmem:[%s525 + $0x38] sm:$0xff]
        %v598 = vld [vmem:[%s525 + $0x40] sm:$0xff]
        %v599 = vld [vmem:[%s525 + $0x48] sm:$0xff]
        %v600 = vld [vmem:[%s525 + $0x50] sm:$0xff]
        %v601 = vld [vmem:[%s525 + $0x58] sm:$0xff]
        %v602 = vld [vmem:[%s525 + $0x60] sm:$0xff]
        %v603 = vld [vmem:[%s525 + $0x68] sm:$0xff]
        %v604 = vld [vmem:[%s525 + $0x70] sm:$0xff]
        %v605 = vld [vmem:[%s525 + $0x78] sm:$0xff]
        %v606 = vld [vmem:[%s525 + $0x80] sm:$0xff]
        %v607 = vld [vmem:[%s525 + $0x88] sm:$0xff]
        %v608 = vld [vmem:[%s525 + $0x90] sm:$0xff]
        %v609 = vld [vmem:[%s525 + $0x98] sm:$0xff]
        %v610 = vld [vmem:[%s525 + $0xa0] sm:$0xff]
        %v611 = vld [vmem:[%s525 + $0xa8] sm:$0xff]
        %v612 = vld [vmem:[%s525 + $0xb0] sm:$0xff]
        %v613 = vld [vmem:[%s525 + $0xb8] sm:$0xff]
        %v614 = vld [vmem:[%s525 + $0xc0] sm:$0xff]
        %v615 = vld [vmem:[%s525 + $0xc8] sm:$0xff]
        %v616 = vld [vmem:[%s525 + $0xd0] sm:$0xff]
        %v617 = vld [vmem:[%s525 + $0xd8] sm:$0xff]
        %v618 = vld [vmem:[%s525 + $0xe0] sm:$0xff]
        %v619 = vld [vmem:[%s525 + $0xe8] sm:$0xff]
        %v620 = vld [vmem:[%s525 + $0xf0] sm:$0xff]
        %v621 = vld [vmem:[%s525 + $0xf8] sm:$0xff]
        %v622 = vld [vmem:[%s535] sm:$0xff]
        %v623 = vld [vmem:[%s535 + $0x8] sm:$0xff]
        %v624 = vld [vmem:[%s535 + $0x10] sm:$0xff]
        %v625 = vld [vmem:[%s535 + $0x18] sm:$0xff]
        %v626 = vld [vmem:[%s535 + $0x20] sm:$0xff]
        %v627 = vld [vmem:[%s535 + $0x28] sm:$0xff]
        %v628 = vld [vmem:[%s535 + $0x30] sm:$0xff]
        %v629 = vld [vmem:[%s535 + $0x38] sm:$0xff]
        %v630 = vld [vmem:[%s535 + $0x40] sm:$0xff]
        %v631 = vld [vmem:[%s535 + $0x48] sm:$0xff]
        %v632 = vld [vmem:[%s535 + $0x50] sm:$0xff]
        %v633 = vld [vmem:[%s535 + $0x58] sm:$0xff]
        %v634 = vld [vmem:[%s535 + $0x60] sm:$0xff]
        %v635 = vld [vmem:[%s535 + $0x68] sm:$0xff]
        %v636 = vld [vmem:[%s535 + $0x70] sm:$0xff]
        %v637 = vld [vmem:[%s535 + $0x78] sm:$0xff]
        %v638 = vld [vmem:[%s535 + $0x80] sm:$0xff]
        %v639 = vld [vmem:[%s535 + $0x88] sm:$0xff]
        %v640 = vld [vmem:[%s535 + $0x90] sm:$0xff]
        %v641 = vld [vmem:[%s535 + $0x98] sm:$0xff]
        %v642 = vld [vmem:[%s535 + $0xa0] sm:$0xff]
        %v643 = vld [vmem:[%s535 + $0xa8] sm:$0xff]
        %v644 = vld [vmem:[%s535 + $0xb0] sm:$0xff]
        %v645 = vld [vmem:[%s535 + $0xb8] sm:$0xff]
        %v646 = vld [vmem:[%s535 + $0xc0] sm:$0xff]
        %v647 = vld [vmem:[%s535 + $0xc8] sm:$0xff]
        %v648 = vld [vmem:[%s535 + $0xd0] sm:$0xff]
        %v649 = vld [vmem:[%s535 + $0xd8] sm:$0xff]
        %v650 = vld [vmem:[%s535 + $0xe0] sm:$0xff]
        %v651 = vld [vmem:[%s535 + $0xe8] sm:$0xff]
        %v652 = vld [vmem:[%s535 + $0xf0] sm:$0xff]
        %v653 = vld [vmem:[%s535 + $0xf8] sm:$0xff]
        %v654 = vld [vmem:[%s2] sm:$0xff]
        %v655 = vld [vmem:[%s2 + $0x8] sm:$0xff]
        %v656 = vld [vmem:[%s2 + $0x10] sm:$0xff]
        %v657 = vld [vmem:[%s2 + $0x18] sm:$0xff]
        %v658 = vld [vmem:[%s3] sm:$0x1]
        %v660 = vperm.slane %v658, 0
        %vm662 = vcmask 261120
        %v664 = vsel %vm662, %v590, 0
        %v667 = vsel %vm662, %v591, 0
        %v670 = vsel %vm662, %v592, 0
        %v673 = vsel %vm662, %v593, 0
        %v676 = vsel %vm662, %v594, 0
        %v679 = vsel %vm662, %v595, 0
        %v682 = vsel %vm662, %v596, 0
        %v685 = vsel %vm662, %v597, 0
        %v688 = vsel %vm662, %v598, 0
        %v691 = vsel %vm662, %v599, 0
        %v694 = vsel %vm662, %v600, 0
        %v697 = vsel %vm662, %v601, 0
        %v700 = vsel %vm662, %v602, 0
        %v703 = vsel %vm662, %v603, 0
        %v706 = vsel %vm662, %v604, 0
        %v709 = vsel %vm662, %v605, 0
        %v712 = vsel %vm662, %v606, 0
        %v715 = vsel %vm662, %v607, 0
        %v718 = vsel %vm662, %v608, 0
        %v721 = vsel %vm662, %v609, 0
        %v724 = vsel %vm662, %v610, 0
        %v727 = vsel %vm662, %v611, 0
        %v730 = vsel %vm662, %v612, 0
        %v733 = vsel %vm662, %v613, 0
        %v736 = vsel %vm662, %v614, 0
        %v739 = vsel %vm662, %v615, 0
        %v742 = vsel %vm662, %v616, 0
        %v745 = vsel %vm662, %v617, 0
        %v748 = vsel %vm662, %v618, 0
        %v751 = vsel %vm662, %v619, 0
        %v754 = vsel %vm662, %v620, 0
        %v757 = vsel %vm662, %v621, 0
        %759 = vmatpush.msra.mxu0 0.0
        %760 = vmatpush.msra.mxu0 0.0
        %761 = vmatpush.msra.mxu0 0.0
        %762 = vmatpush.msra.mxu0 0.0
        %763 = vmatpush.msra.mxu0 0.0
        %764 = vmatpush.msra.mxu0 0.0
        %765 = vmatpush.msra.mxu0 0.0
        %766 = vmatpush.msra.mxu0 0.0
        %767 = vmatpush.msra.mxu0 0.0
        %768 = vmatpush.msra.mxu0 0.0
        %769 = vmatpush.msra.mxu0 0.0
        %770 = vmatpush.msra.mxu0 0.0
        %771 = vmatpush.msra.mxu0 %v657
        %772 = vmatpush.msra.mxu0 %v656
        %773 = vmatpush.msra.mxu0 %v655
        %774 = vmatpush.msra.mxu0 %v654
        %775 = vmatmul.f32.gmra.mxu0 %v664
        %v776 = vpop.f32.mrf.mxu0
        %v777 = vadd.f32 %v660, %v776
        %778 = vmatmul.f32.gmra.mxu0 %v667
        %v779 = vpop.f32.mrf.mxu0
        %v780 = vadd.f32 %v660, %v779
        %781 = vmatmul.f32.gmra.mxu0 %v670
        %v782 = vpop.f32.mrf.mxu0
        %v783 = vadd.f32 %v660, %v782
        %784 = vmatmul.f32.gmra.mxu0 %v673
        %v785 = vpop.f32.mrf.mxu0
        %v786 = vadd.f32 %v660, %v785
        %787 = vmatmul.f32.gmra.mxu0 %v676
        %v788 = vpop.f32.mrf.mxu0
        %v789 = vadd.f32 %v660, %v788
        %790 = vmatmul.f32.gmra.mxu0 %v679
        %v791 = vpop.f32.mrf.mxu0
        %v792 = vadd.f32 %v660, %v791
        %793 = vmatmul.f32.gmra.mxu0 %v682
        %v794 = vpop.f32.mrf.mxu0
        %v795 = vadd.f32 %v660, %v794
        %796 = vmatmul.f32.gmra.mxu0 %v685
        %v797 = vpop.f32.mrf.mxu0
        %v798 = vadd.f32 %v660, %v797
        %799 = vmatmul.f32.gmra.mxu0 %v688
        %v800 = vpop.f32.mrf.mxu0
        %v801 = vadd.f32 %v660, %v800
        %802 = vmatmul.f32.gmra.mxu0 %v691
        %v803 = vpop.f32.mrf.mxu0
        %v804 = vadd.f32 %v660, %v803
        %805 = vmatmul.f32.gmra.mxu0 %v694
        %v806 = vpop.f32.mrf.mxu0
        %v807 = vadd.f32 %v660, %v806
        %808 = vmatmul.f32.gmra.mxu0 %v697
        %v809 = vpop.f32.mrf.mxu0
        %v810 = vadd.f32 %v660, %v809
        %811 = vmatmul.f32.gmra.mxu0 %v700
        %v812 = vpop.f32.mrf.mxu0
        %v813 = vadd.f32 %v660, %v812
        %814 = vmatmul.f32.gmra.mxu0 %v703
        %v815 = vpop.f32.mrf.mxu0
        %v816 = vadd.f32 %v660, %v815
        %817 = vmatmul.f32.gmra.mxu0 %v706
        %v818 = vpop.f32.mrf.mxu0
        %v819 = vadd.f32 %v660, %v818
        %820 = vmatmul.f32.gmra.mxu0 %v709
        %v821 = vpop.f32.mrf.mxu0
        %v822 = vadd.f32 %v660, %v821
        %823 = vmatmul.f32.gmra.mxu0 %v712
        %v824 = vpop.f32.mrf.mxu0
        %v825 = vadd.f32 %v660, %v824
        %826 = vmatmul.f32.gmra.mxu0 %v715
        %v827 = vpop.f32.mrf.mxu0
        %v828 = vadd.f32 %v660, %v827
        %829 = vmatmul.f32.gmra.mxu0 %v718
        %v830 = vpop.f32.mrf.mxu0
        %v831 = vadd.f32 %v660, %v830
        %832 = vmatmul.f32.gmra.mxu0 %v721
        %v833 = vpop.f32.mrf.mxu0
        %v834 = vadd.f32 %v660, %v833
        %835 = vmatmul.f32.gmra.mxu0 %v724
        %v836 = vpop.f32.mrf.mxu0
        %v837 = vadd.f32 %v660, %v836
        %838 = vmatmul.f32.gmra.mxu0 %v727
        %v839 = vpop.f32.mrf.mxu0
        %v840 = vadd.f32 %v660, %v839
        %841 = vmatmul.f32.gmra.mxu0 %v730
        %v842 = vpop.f32.mrf.mxu0
        %v843 = vadd.f32 %v660, %v842
        %844 = vmatmul.f32.gmra.mxu0 %v733
        %v845 = vpop.f32.mrf.mxu0
        %v846 = vadd.f32 %v660, %v845
        %847 = vmatmul.f32.gmra.mxu0 %v736
        %v848 = vpop.f32.mrf.mxu0
        %v849 = vadd.f32 %v660, %v848
        %850 = vmatmul.f32.gmra.mxu0 %v739
        %v851 = vpop.f32.mrf.mxu0
        %v852 = vadd.f32 %v660, %v851
        %853 = vmatmul.f32.gmra.mxu0 %v742
        %v854 = vpop.f32.mrf.mxu0
        %v855 = vadd.f32 %v660, %v854
        %856 = vmatmul.f32.gmra.mxu0 %v745
        %v857 = vpop.f32.mrf.mxu0
        %v858 = vadd.f32 %v660, %v857
        %859 = vmatmul.f32.gmra.mxu0 %v748
        %v860 = vpop.f32.mrf.mxu0
        %v861 = vadd.f32 %v660, %v860
        %862 = vmatmul.f32.gmra.mxu0 %v751
        %v863 = vpop.f32.mrf.mxu0
        %v864 = vadd.f32 %v660, %v863
        %865 = vmatmul.f32.gmra.mxu0 %v754
        %v866 = vpop.f32.mrf.mxu0
        %v867 = vadd.f32 %v660, %v866
        %868 = vmatmul.f32.gmra.mxu0 %v757
        %v869 = vpop.f32.mrf.mxu0
        %v870 = vadd.f32 %v660, %v869
        %871 = vdwg.mxu0
        %v872 = vld [vmem:[%s4] sm:$0xff]
        %v873 = vld [vmem:[%s4 + $0x8] sm:$0xff]
        %v874 = vld [vmem:[%s4 + $0x10] sm:$0xff]
        %v875 = vld [vmem:[%s4 + $0x18] sm:$0xff]
        %v876 = vld [vmem:[%s5] sm:$0x1]
        %v878 = vperm.slane %v876, 0
        %v881 = vsel %vm662, %v622, 0
        %v884 = vsel %vm662, %v623, 0
        %v887 = vsel %vm662, %v624, 0
        %v890 = vsel %vm662, %v625, 0
        %v893 = vsel %vm662, %v626, 0
        %v896 = vsel %vm662, %v627, 0
        %v899 = vsel %vm662, %v628, 0
        %v902 = vsel %vm662, %v629, 0
        %v905 = vsel %vm662, %v630, 0
        %v908 = vsel %vm662, %v631, 0
        %v911 = vsel %vm662, %v632, 0
        %v914 = vsel %vm662, %v633, 0
        %v917 = vsel %vm662, %v634, 0
        %v920 = vsel %vm662, %v635, 0
        %v923 = vsel %vm662, %v636, 0
        %v926 = vsel %vm662, %v637, 0
        %v929 = vsel %vm662, %v638, 0
        %v932 = vsel %vm662, %v639, 0
        %v935 = vsel %vm662, %v640, 0
        %v938 = vsel %vm662, %v641, 0
        %v941 = vsel %vm662, %v642, 0
        %v944 = vsel %vm662, %v643, 0
        %v947 = vsel %vm662, %v644, 0
        %v950 = vsel %vm662, %v645, 0
        %v953 = vsel %vm662, %v646, 0
        %v956 = vsel %vm662, %v647, 0
        %v959 = vsel %vm662, %v648, 0
        %v962 = vsel %vm662, %v649, 0
        %v965 = vsel %vm662, %v650, 0
        %v968 = vsel %vm662, %v651, 0
        %v971 = vsel %vm662, %v652, 0
        %v974 = vsel %vm662, %v653, 0
        %976 = vmatpush.msra.mxu0 0.0
        %977 = vmatpush.msra.mxu0 0.0
        %978 = vmatpush.msra.mxu0 0.0
        %979 = vmatpush.msra.mxu0 0.0
        %980 = vmatpush.msra.mxu0 0.0
        %981 = vmatpush.msra.mxu0 0.0
        %982 = vmatpush.msra.mxu0 0.0
        %983 = vmatpush.msra.mxu0 0.0
        %984 = vmatpush.msra.mxu0 0.0
        %985 = vmatpush.msra.mxu0 0.0
        %986 = vmatpush.msra.mxu0 0.0
        %987 = vmatpush.msra.mxu0 0.0
        %988 = vmatpush.msra.mxu0 %v875
        %989 = vmatpush.msra.mxu0 %v874
        %990 = vmatpush.msra.mxu0 %v873
        %991 = vmatpush.msra.mxu0 %v872
        %992 = vmatmul.f32.gmra.mxu0 %v881
        %v993 = vpop.f32.mrf.mxu0
        %v994 = vadd.f32 %v878, %v993
        %995 = vmatmul.f32.gmra.mxu0 %v884
        %v996 = vpop.f32.mrf.mxu0
        %v997 = vadd.f32 %v878, %v996
        %998 = vmatmul.f32.gmra.mxu0 %v887
        %v999 = vpop.f32.mrf.mxu0
        %v1000 = vadd.f32 %v878, %v999
        %1001 = vmatmul.f32.gmra.mxu0 %v890
        %v1002 = vpop.f32.mrf.mxu0
        %v1003 = vadd.f32 %v878, %v1002
        %1004 = vmatmul.f32.gmra.mxu0 %v893
        %v1005 = vpop.f32.mrf.mxu0
        %v1006 = vadd.f32 %v878, %v1005
        %1007 = vmatmul.f32.gmra.mxu0 %v896
        %v1008 = vpop.f32.mrf.mxu0
        %v1009 = vadd.f32 %v878, %v1008
        %1010 = vmatmul.f32.gmra.mxu0 %v899
        %v1011 = vpop.f32.mrf.mxu0
        %v1012 = vadd.f32 %v878, %v1011
        %1013 = vmatmul.f32.gmra.mxu0 %v902
        %v1014 = vpop.f32.mrf.mxu0
        %v1015 = vadd.f32 %v878, %v1014
        %1016 = vmatmul.f32.gmra.mxu0 %v905
        %v1017 = vpop.f32.mrf.mxu0
        %v1018 = vadd.f32 %v878, %v1017
        %1019 = vmatmul.f32.gmra.mxu0 %v908
        %v1020 = vpop.f32.mrf.mxu0
        %v1021 = vadd.f32 %v878, %v1020
        %1022 = vmatmul.f32.gmra.mxu0 %v911
        %v1023 = vpop.f32.mrf.mxu0
        %v1024 = vadd.f32 %v878, %v1023
        %1025 = vmatmul.f32.gmra.mxu0 %v914
        %v1026 = vpop.f32.mrf.mxu0
        %v1027 = vadd.f32 %v878, %v1026
        %1028 = vmatmul.f32.gmra.mxu0 %v917
        %v1029 = vpop.f32.mrf.mxu0
        %v1030 = vadd.f32 %v878, %v1029
        %1031 = vmatmul.f32.gmra.mxu0 %v920
        %v1032 = vpop.f32.mrf.mxu0
        %v1033 = vadd.f32 %v878, %v1032
        %1034 = vmatmul.f32.gmra.mxu0 %v923
        %v1035 = vpop.f32.mrf.mxu0
        %v1036 = vadd.f32 %v878, %v1035
        %1037 = vmatmul.f32.gmra.mxu0 %v926
        %v1038 = vpop.f32.mrf.mxu0
        %v1039 = vadd.f32 %v878, %v1038
        %1040 = vmatmul.f32.gmra.mxu0 %v929
        %v1041 = vpop.f32.mrf.mxu0
        %v1042 = vadd.f32 %v878, %v1041
        %1043 = vmatmul.f32.gmra.mxu0 %v932
        %v1044 = vpop.f32.mrf.mxu0
        %v1045 = vadd.f32 %v878, %v1044
        %1046 = vmatmul.f32.gmra.mxu0 %v935
        %v1047 = vpop.f32.mrf.mxu0
        %v1048 = vadd.f32 %v878, %v1047
        %1049 = vmatmul.f32.gmra.mxu0 %v938
        %v1050 = vpop.f32.mrf.mxu0
        %v1051 = vadd.f32 %v878, %v1050
        %1052 = vmatmul.f32.gmra.mxu0 %v941
        %v1053 = vpop.f32.mrf.mxu0
        %v1054 = vadd.f32 %v878, %v1053
        %1055 = vmatmul.f32.gmra.mxu0 %v944
        %v1056 = vpop.f32.mrf.mxu0
        %v1057 = vadd.f32 %v878, %v1056
        %1058 = vmatmul.f32.gmra.mxu0 %v947
        %v1059 = vpop.f32.mrf.mxu0
        %v1060 = vadd.f32 %v878, %v1059
        %1061 = vmatmul.f32.gmra.mxu0 %v950
        %v1062 = vpop.f32.mrf.mxu0
        %v1063 = vadd.f32 %v878, %v1062
        %1064 = vmatmul.f32.gmra.mxu0 %v953
        %v1065 = vpop.f32.mrf.mxu0
        %v1066 = vadd.f32 %v878, %v1065
        %1067 = vmatmul.f32.gmra.mxu0 %v956
        %v1068 = vpop.f32.mrf.mxu0
        %v1069 = vadd.f32 %v878, %v1068
        %1070 = vmatmul.f32.gmra.mxu0 %v959
        %v1071 = vpop.f32.mrf.mxu0
        %v1072 = vadd.f32 %v878, %v1071
        %1073 = vmatmul.f32.gmra.mxu0 %v962
        %v1074 = vpop.f32.mrf.mxu0
        %v1075 = vadd.f32 %v878, %v1074
        %1076 = vmatmul.f32.gmra.mxu0 %v965
        %v1077 = vpop.f32.mrf.mxu0
        %v1078 = vadd.f32 %v878, %v1077
        %1079 = vmatmul.f32.gmra.mxu0 %v968
        %v1080 = vpop.f32.mrf.mxu0
        %v1081 = vadd.f32 %v878, %v1080
        %1082 = vmatmul.f32.gmra.mxu0 %v971
        %v1083 = vpop.f32.mrf.mxu0
        %v1084 = vadd.f32 %v878, %v1083
        %1085 = vmatmul.f32.gmra.mxu0 %v974
        %v1086 = vpop.f32.mrf.mxu0
        %v1087 = vadd.f32 %v878, %v1086
        %1088 = vdwg.mxu0
        %v1089 = vadd.f32 %v777, %v994
        %v1090 = vadd.f32 %v780, %v997
        %v1091 = vadd.f32 %v783, %v1000
        %v1092 = vadd.f32 %v786, %v1003
        %v1093 = vadd.f32 %v789, %v1006
        %v1094 = vadd.f32 %v792, %v1009
        %v1095 = vadd.f32 %v795, %v1012
        %v1096 = vadd.f32 %v798, %v1015
        %v1097 = vadd.f32 %v801, %v1018
        %v1098 = vadd.f32 %v804, %v1021
        %v1099 = vadd.f32 %v807, %v1024
        %v1100 = vadd.f32 %v810, %v1027
        %v1101 = vadd.f32 %v813, %v1030
        %v1102 = vadd.f32 %v816, %v1033
        %v1103 = vadd.f32 %v819, %v1036
        %v1104 = vadd.f32 %v822, %v1039
        %v1105 = vadd.f32 %v825, %v1042
        %v1106 = vadd.f32 %v828, %v1045
        %v1107 = vadd.f32 %v831, %v1048
        %v1108 = vadd.f32 %v834, %v1051
        %v1109 = vadd.f32 %v837, %v1054
        %v1110 = vadd.f32 %v840, %v1057
        %v1111 = vadd.f32 %v843, %v1060
        %v1112 = vadd.f32 %v846, %v1063
        %v1113 = vadd.f32 %v849, %v1066
        %v1114 = vadd.f32 %v852, %v1069
        %v1115 = vadd.f32 %v855, %v1072
        %v1116 = vadd.f32 %v858, %v1075
        %v1117 = vadd.f32 %v861, %v1078
        %v1118 = vadd.f32 %v864, %v1081
        %v1119 = vadd.f32 %v867, %v1084
        %v1120 = vadd.f32 %v870, %v1087
        %v1121 = vmax.f32 %v1089, 0.0
        %v1122 = vmax.f32 %v1090, 0.0
        %v1123 = vmax.f32 %v1091, 0.0
        %v1124 = vmax.f32 %v1092, 0.0
        %v1125 = vmax.f32 %v1093, 0.0
        %v1126 = vmax.f32 %v1094, 0.0
        %v1127 = vmax.f32 %v1095, 0.0
        %v1128 = vmax.f32 %v1096, 0.0
        %v1129 = vmax.f32 %v1097, 0.0
        %v1130 = vmax.f32 %v1098, 0.0
        %v1131 = vmax.f32 %v1099, 0.0
        %v1132 = vmax.f32 %v1100, 0.0
        %v1133 = vmax.f32 %v1101, 0.0
        %v1134 = vmax.f32 %v1102, 0.0
        %v1135 = vmax.f32 %v1103, 0.0
        %v1136 = vmax.f32 %v1104, 0.0
        %v1137 = vmax.f32 %v1105, 0.0
        %v1138 = vmax.f32 %v1106, 0.0
        %v1139 = vmax.f32 %v1107, 0.0
        %v1140 = vmax.f32 %v1108, 0.0
        %v1141 = vmax.f32 %v1109, 0.0
        %v1142 = vmax.f32 %v1110, 0.0
        %v1143 = vmax.f32 %v1111, 0.0
        %v1144 = vmax.f32 %v1112, 0.0
        %v1145 = vmax.f32 %v1113, 0.0
        %v1146 = vmax.f32 %v1114, 0.0
        %v1147 = vmax.f32 %v1115, 0.0
        %v1148 = vmax.f32 %v1116, 0.0
        %v1149 = vmax.f32 %v1117, 0.0
        %v1150 = vmax.f32 %v1118, 0.0
        %v1151 = vmax.f32 %v1119, 0.0
        %v1152 = vmax.f32 %v1120, 0.0
        %1153 = vxpose.xlu0.b32.start [1/16] %v1121, 128
        %1154 = vxpose.xlu0.b32.cont [2/16] %v1122, 128
        %1155 = vxpose.xlu0.b32.cont [3/16] %v1123, 128
        %1156 = vxpose.xlu0.b32.cont [4/16] %v1124, 128
        %1157 = vxpose.xlu0.b32.cont [5/16] %v1125, 128
        %1158 = vxpose.xlu0.b32.cont [6/16] %v1126, 128
        %1159 = vxpose.xlu0.b32.cont [7/16] %v1127, 128
        %1160 = vxpose.xlu0.b32.cont [8/16] %v1128, 128
        %1161 = vxpose.xlu0.b32.cont [9/16] %v1129, 128
        %1162 = vxpose.xlu0.b32.cont [10/16] %v1130, 128
        %1163 = vxpose.xlu0.b32.cont [11/16] %v1131, 128
        %1164 = vxpose.xlu0.b32.cont [12/16] %v1132, 128
        %1165 = vxpose.xlu0.b32.cont [13/16] %v1133, 128
        %1166 = vxpose.xlu0.b32.cont [14/16] %v1134, 128
        %1167 = vxpose.xlu0.b32.cont [15/16] %v1135, 128
        %1168 = vxpose.xlu0.b32.end [16/16] %v1136, 128
        %v1169 = vpop.trf.xlu0
        %v1170 = vpop.trf.xlu0
        %v1171 = vpop.trf.xlu0
        %v1172 = vpop.trf.xlu0
        %v1173 = vpop.trf.xlu0
        %v1174 = vpop.trf.xlu0
        %v1175 = vpop.trf.xlu0
        %v1176 = vpop.trf.xlu0
        %v1177 = vpop.trf.xlu0
        %v1178 = vpop.trf.xlu0
        %v1179 = vpop.trf.xlu0
        %v1180 = vpop.trf.xlu0
        %v1181 = vpop.trf.xlu0
        %v1182 = vpop.trf.xlu0
        %v1183 = vpop.trf.xlu0
        %v1184 = vpop.trf.xlu0
        %1185 = vxpose.xlu0.b32.start [1/16] %v1137, 128
        %1186 = vxpose.xlu0.b32.cont [2/16] %v1138, 128
        %1187 = vxpose.xlu0.b32.cont [3/16] %v1139, 128
        %1188 = vxpose.xlu0.b32.cont [4/16] %v1140, 128
        %1189 = vxpose.xlu0.b32.cont [5/16] %v1141, 128
        %1190 = vxpose.xlu0.b32.cont [6/16] %v1142, 128
        %1191 = vxpose.xlu0.b32.cont [7/16] %v1143, 128
        %1192 = vxpose.xlu0.b32.cont [8/16] %v1144, 128
        %1193 = vxpose.xlu0.b32.cont [9/16] %v1145, 128
        %1194 = vxpose.xlu0.b32.cont [10/16] %v1146, 128
        %1195 = vxpose.xlu0.b32.cont [11/16] %v1147, 128
        %1196 = vxpose.xlu0.b32.cont [12/16] %v1148, 128
        %1197 = vxpose.xlu0.b32.cont [13/16] %v1149, 128
        %1198 = vxpose.xlu0.b32.cont [14/16] %v1150, 128
        %1199 = vxpose.xlu0.b32.cont [15/16] %v1151, 128
        %1200 = vxpose.xlu0.b32.end [16/16] %v1152, 128
        %v1201 = vpop.trf.xlu0
        %v1202 = vpop.trf.xlu0
        %v1203 = vpop.trf.xlu0
        %v1204 = vpop.trf.xlu0
        %v1205 = vpop.trf.xlu0
        %v1206 = vpop.trf.xlu0
        %v1207 = vpop.trf.xlu0
        %v1208 = vpop.trf.xlu0
        %v1209 = vpop.trf.xlu0
        %v1210 = vpop.trf.xlu0
        %v1211 = vpop.trf.xlu0
        %v1212 = vpop.trf.xlu0
        %v1213 = vpop.trf.xlu0
        %v1214 = vpop.trf.xlu0
        %v1215 = vpop.trf.xlu0
        %v1216 = vpop.trf.xlu0
        %1217 = vmatpush.msra.mxu0 %v1136
        %1218 = vmatpush.msra.mxu0 %v1135
        %1219 = vmatpush.msra.mxu0 %v1134
        %1220 = vmatpush.msra.mxu0 %v1133
        %1221 = vmatpush.msra.mxu0 %v1132
        %1222 = vmatpush.msra.mxu0 %v1131
        %1223 = vmatpush.msra.mxu0 %v1130
        %1224 = vmatpush.msra.mxu0 %v1129
        %1225 = vmatpush.msra.mxu0 %v1128
        %1226 = vmatpush.msra.mxu0 %v1127
        %1227 = vmatpush.msra.mxu0 %v1126
        %1228 = vmatpush.msra.mxu0 %v1125
        %1229 = vmatpush.msra.mxu0 %v1124
        %1230 = vmatpush.msra.mxu0 %v1123
        %1231 = vmatpush.msra.mxu0 %v1122
        %1232 = vmatpush.msra.mxu0 %v1121
        %1233 = vmatmul.f32.gmra.mxu0 %v1169
        %v1234 = vpop.f32.mrf.mxu0
        %v1235 = vadd.f32 0.0, %v1234
        %1236 = vmatmul.f32.gmra.mxu0 %v1170
        %v1237 = vpop.f32.mrf.mxu0
        %v1238 = vadd.f32 0.0, %v1237
        %1239 = vmatmul.f32.gmra.mxu0 %v1171
        %v1240 = vpop.f32.mrf.mxu0
        %v1241 = vadd.f32 0.0, %v1240
        %1242 = vmatmul.f32.gmra.mxu0 %v1172
        %v1243 = vpop.f32.mrf.mxu0
        %v1244 = vadd.f32 0.0, %v1243
        %1245 = vdwg.mxu0
        %1246 = vmatpush.msra.mxu0 %v1152
        %1247 = vmatpush.msra.mxu0 %v1151
        %1248 = vmatpush.msra.mxu0 %v1150
        %1249 = vmatpush.msra.mxu0 %v1149
        %1250 = vmatpush.msra.mxu0 %v1148
        %1251 = vmatpush.msra.mxu0 %v1147
        %1252 = vmatpush.msra.mxu0 %v1146
        %1253 = vmatpush.msra.mxu0 %v1145
        %1254 = vmatpush.msra.mxu0 %v1144
        %1255 = vmatpush.msra.mxu0 %v1143
        %1256 = vmatpush.msra.mxu0 %v1142
        %1257 = vmatpush.msra.mxu0 %v1141
        %1258 = vmatpush.msra.mxu0 %v1140
        %1259 = vmatpush.msra.mxu0 %v1139
        %1260 = vmatpush.msra.mxu0 %v1138
        %1261 = vmatpush.msra.mxu0 %v1137
        %1262 = vmatmul.f32.gmra.mxu0 %v1201
        %v1263 = vpop.f32.mrf.mxu0
        %v1264 = vadd.f32 %v1235, %v1263
        %1265 = vmatmul.f32.gmra.mxu0 %v1202
        %v1266 = vpop.f32.mrf.mxu0
        %v1267 = vadd.f32 %v1238, %v1266
        %1268 = vmatmul.f32.gmra.mxu0 %v1203
        %v1269 = vpop.f32.mrf.mxu0
        %v1270 = vadd.f32 %v1241, %v1269
        %1271 = vmatmul.f32.gmra.mxu0 %v1204
        %v1272 = vpop.f32.mrf.mxu0
        %v1273 = vadd.f32 %v1244, %v1272
        %1274 = vdwg.mxu0
        %v1275 = vsel %vm662, %v1264, -inf
        %1276 = vmax.xlane.f32.xlu0 %v1275
        %v1277 = vpop.xlane.xlu0 %1276
        %v1278 = vsel %vm662, %v1267, -inf
        %1279 = vmax.xlane.f32.xlu0 %v1278
        %v1280 = vpop.xlane.xlu0 %1279
        %v1281 = vsel %vm662, %v1270, -inf
        %1282 = vmax.xlane.f32.xlu0 %v1281
        %v1283 = vpop.xlane.xlu0 %1282
        %v1284 = vsel %vm662, %v1273, -inf
        %1285 = vmax.xlane.f32.xlu0 %v1284
        %v1286 = vpop.xlane.xlu0 %1285
        %v1287 = vsub.f32 %v1277, %v1264
        %v1288 = vsub.f32 %v1280, %v1267
        %v1289 = vsub.f32 %v1283, %v1270
        %v1290 = vsub.f32 %v1286, %v1273
        %v1291 = vsel %vm662, %v1287, -inf
        %1292 = vmax.xlane.f32.xlu0 %v1291
        %v1293 = vpop.xlane.xlu0 %1292
        %v1294 = vsel %vm662, %v1288, -inf
        %1295 = vmax.xlane.f32.xlu0 %v1294
        %v1296 = vpop.xlane.xlu0 %1295
        %v1297 = vsel %vm662, %v1289, -inf
        %1298 = vmax.xlane.f32.xlu0 %v1297
        %v1299 = vpop.xlane.xlu0 %1298
        %v1300 = vsel %vm662, %v1290, -inf
        %1301 = vmax.xlane.f32.xlu0 %v1300
        %v1302 = vpop.xlane.xlu0 %1301
        %v1303 = vsub.f32 %v1287, %v1293
        %v1304 = vsub.f32 %v1288, %v1296
        %v1305 = vsub.f32 %v1289, %v1299
        %v1306 = vsub.f32 %v1290, %v1302
        %v1307 = vmul.f32 %v1303, 1.442695
        %v1308 = vpow.pop %v1307
        %v1309 = vmul.f32 %v1304, 1.442695
        %v1310 = vpow.pop %v1309
        %v1311 = vmul.f32 %v1305, 1.442695
        %v1312 = vpow.pop %v1311
        %v1313 = vmul.f32 %v1306, 1.442695
        %v1314 = vpow.pop %v1313
        %v1315 = vsel %vm662, %v1308, 0.0
        %1316 = vadd.xlane.f32.xlu0 %v1315
        %v1317 = vpop.xlane.xlu0 %1316
        %v1318 = vsel %vm662, %v1310, 0.0
        %1319 = vadd.xlane.f32.xlu0 %v1318
        %v1320 = vpop.xlane.xlu0 %1319
        %v1321 = vsel %vm662, %v1312, 0.0
        %1322 = vadd.xlane.f32.xlu0 %v1321
        %v1323 = vpop.xlane.xlu0 %1322
        %v1324 = vsel %vm662, %v1314, 0.0
        %1325 = vadd.xlane.f32.xlu0 %v1324
        %v1326 = vpop.xlane.xlu0 %1325
        %v1327 = vrcp.pop %v1317
        %v1328 = vrcp.pop %v1320
        %v1329 = vrcp.pop %v1323
        %v1330 = vrcp.pop %v1326
        %v1331 = vmul.f32 %v1308, %v1327
        %v1332 = vmul.f32 %v1310, %v1328
        %v1333 = vmul.f32 %v1312, %v1329
        %v1334 = vmul.f32 %v1314, %v1330
        %v1336 = vsel %vm662, %v1121, 0
        %v1339 = vsel %vm662, %v1122, 0
        %v1342 = vsel %vm662, %v1123, 0
        %v1345 = vsel %vm662, %v1124, 0
        %v1348 = vsel %vm662, %v1125, 0
        %v1351 = vsel %vm662, %v1126, 0
        %v1354 = vsel %vm662, %v1127, 0
        %v1357 = vsel %vm662, %v1128, 0
        %v1360 = vsel %vm662, %v1129, 0
        %v1363 = vsel %vm662, %v1130, 0
        %v1366 = vsel %vm662, %v1131, 0
        %v1369 = vsel %vm662, %v1132, 0
        %v1372 = vsel %vm662, %v1133, 0
        %v1375 = vsel %vm662, %v1134, 0
        %v1378 = vsel %vm662, %v1135, 0
        %v1381 = vsel %vm662, %v1136, 0
        %v1384 = vsel %vm662, %v1137, 0
        %v1387 = vsel %vm662, %v1138, 0
        %v1390 = vsel %vm662, %v1139, 0
        %v1393 = vsel %vm662, %v1140, 0
        %v1396 = vsel %vm662, %v1141, 0
        %v1399 = vsel %vm662, %v1142, 0
        %v1402 = vsel %vm662, %v1143, 0
        %v1405 = vsel %vm662, %v1144, 0
        %v1408 = vsel %vm662, %v1145, 0
        %v1411 = vsel %vm662, %v1146, 0
        %v1414 = vsel %vm662, %v1147, 0
        %v1417 = vsel %vm662, %v1148, 0
        %v1420 = vsel %vm662, %v1149, 0
        %v1423 = vsel %vm662, %v1150, 0
        %v1426 = vsel %vm662, %v1151, 0
        %v1429 = vsel %vm662, %v1152, 0
        %v1432 = vsel %vm662, %v1331, 0
        %v1435 = vsel %vm662, %v1332, 0
        %v1438 = vsel %vm662, %v1333, 0
        %v1441 = vsel %vm662, %v1334, 0
        %1443 = vmatpush.xpose.msra.mxu0 0.0
        %1444 = vmatpush.xpose.msra.mxu0 0.0
        %1445 = vmatpush.xpose.msra.mxu0 0.0
        %1446 = vmatpush.xpose.msra.mxu0 0.0
        %1447 = vmatpush.xpose.msra.mxu0 0.0
        %1448 = vmatpush.xpose.msra.mxu0 0.0
        %1449 = vmatpush.xpose.msra.mxu0 0.0
        %1450 = vmatpush.xpose.msra.mxu0 0.0
        %1451 = vmatpush.xpose.msra.mxu0 0.0
        %1452 = vmatpush.xpose.msra.mxu0 0.0
        %1453 = vmatpush.xpose.msra.mxu0 0.0
        %1454 = vmatpush.xpose.msra.mxu0 0.0
        %1455 = vmatpush.xpose.msra.mxu0 %v1441
        %1456 = vmatpush.xpose.msra.mxu0 %v1438
        %1457 = vmatpush.xpose.msra.mxu0 %v1435
        %1458 = vmatpush.xpose.msra.mxu0 %v1432
        %1459 = vmatmul.f32.gmra.mxu0 %v1336
        %v1460 = vpop.f32.mrf.mxu0
        %v1461 = vadd.f32 0.0, %v1460
        %1462 = vmatmul.f32.gmra.mxu0 %v1339
        %v1463 = vpop.f32.mrf.mxu0
        %v1464 = vadd.f32 0.0, %v1463
        %1465 = vmatmul.f32.gmra.mxu0 %v1342
        %v1466 = vpop.f32.mrf.mxu0
        %v1467 = vadd.f32 0.0, %v1466
        %1468 = vmatmul.f32.gmra.mxu0 %v1345
        %v1469 = vpop.f32.mrf.mxu0
        %v1470 = vadd.f32 0.0, %v1469
        %1471 = vmatmul.f32.gmra.mxu0 %v1348
        %v1472 = vpop.f32.mrf.mxu0
        %v1473 = vadd.f32 0.0, %v1472
        %1474 = vmatmul.f32.gmra.mxu0 %v1351
        %v1475 = vpop.f32.mrf.mxu0
        %v1476 = vadd.f32 0.0, %v1475
        %1477 = vmatmul.f32.gmra.mxu0 %v1354
        %v1478 = vpop.f32.mrf.mxu0
        %v1479 = vadd.f32 0.0, %v1478
        %1480 = vmatmul.f32.gmra.mxu0 %v1357
        %v1481 = vpop.f32.mrf.mxu0
        %v1482 = vadd.f32 0.0, %v1481
        %1483 = vmatmul.f32.gmra.mxu0 %v1360
        %v1484 = vpop.f32.mrf.mxu0
        %v1485 = vadd.f32 0.0, %v1484
        %1486 = vmatmul.f32.gmra.mxu0 %v1363
        %v1487 = vpop.f32.mrf.mxu0
        %v1488 = vadd.f32 0.0, %v1487
        %1489 = vmatmul.f32.gmra.mxu0 %v1366
        %v1490 = vpop.f32.mrf.mxu0
        %v1491 = vadd.f32 0.0, %v1490
        %1492 = vmatmul.f32.gmra.mxu0 %v1369
        %v1493 = vpop.f32.mrf.mxu0
        %v1494 = vadd.f32 0.0, %v1493
        %1495 = vmatmul.f32.gmra.mxu0 %v1372
        %v1496 = vpop.f32.mrf.mxu0
        %v1497 = vadd.f32 0.0, %v1496
        %1498 = vmatmul.f32.gmra.mxu0 %v1375
        %v1499 = vpop.f32.mrf.mxu0
        %v1500 = vadd.f32 0.0, %v1499
        %1501 = vmatmul.f32.gmra.mxu0 %v1378
        %v1502 = vpop.f32.mrf.mxu0
        %v1503 = vadd.f32 0.0, %v1502
        %1504 = vmatmul.f32.gmra.mxu0 %v1381
        %v1505 = vpop.f32.mrf.mxu0
        %v1506 = vadd.f32 0.0, %v1505
        %1507 = vmatmul.f32.gmra.mxu0 %v1384
        %v1508 = vpop.f32.mrf.mxu0
        %v1509 = vadd.f32 0.0, %v1508
        %1510 = vmatmul.f32.gmra.mxu0 %v1387
        %v1511 = vpop.f32.mrf.mxu0
        %v1512 = vadd.f32 0.0, %v1511
        %1513 = vmatmul.f32.gmra.mxu0 %v1390
        %v1514 = vpop.f32.mrf.mxu0
        %v1515 = vadd.f32 0.0, %v1514
        %1516 = vmatmul.f32.gmra.mxu0 %v1393
        %v1517 = vpop.f32.mrf.mxu0
        %v1518 = vadd.f32 0.0, %v1517
        %1519 = vmatmul.f32.gmra.mxu0 %v1396
        %v1520 = vpop.f32.mrf.mxu0
        %v1521 = vadd.f32 0.0, %v1520
        %1522 = vmatmul.f32.gmra.mxu0 %v1399
        %v1523 = vpop.f32.mrf.mxu0
        %v1524 = vadd.f32 0.0, %v1523
        %1525 = vmatmul.f32.gmra.mxu0 %v1402
        %v1526 = vpop.f32.mrf.mxu0
        %v1527 = vadd.f32 0.0, %v1526
        %1528 = vmatmul.f32.gmra.mxu0 %v1405
        %v1529 = vpop.f32.mrf.mxu0
        %v1530 = vadd.f32 0.0, %v1529
        %1531 = vmatmul.f32.gmra.mxu0 %v1408
        %v1532 = vpop.f32.mrf.mxu0
        %v1533 = vadd.f32 0.0, %v1532
        %1534 = vmatmul.f32.gmra.mxu0 %v1411
        %v1535 = vpop.f32.mrf.mxu0
        %v1536 = vadd.f32 0.0, %v1535
        %1537 = vmatmul.f32.gmra.mxu0 %v1414
        %v1538 = vpop.f32.mrf.mxu0
        %v1539 = vadd.f32 0.0, %v1538
        %1540 = vmatmul.f32.gmra.mxu0 %v1417
        %v1541 = vpop.f32.mrf.mxu0
        %v1542 = vadd.f32 0.0, %v1541
        %1543 = vmatmul.f32.gmra.mxu0 %v1420
        %v1544 = vpop.f32.mrf.mxu0
        %v1545 = vadd.f32 0.0, %v1544
        %1546 = vmatmul.f32.gmra.mxu0 %v1423
        %v1547 = vpop.f32.mrf.mxu0
        %v1548 = vadd.f32 0.0, %v1547
        %1549 = vmatmul.f32.gmra.mxu0 %v1426
        %v1550 = vpop.f32.mrf.mxu0
        %v1551 = vadd.f32 0.0, %v1550
        %1552 = vmatmul.f32.gmra.mxu0 %v1429
        %v1553 = vpop.f32.mrf.mxu0
        %v1554 = vadd.f32 0.0, %v1553
        %1555 = vdwg.mxu0
        %v1556 = vld [vmem:[#allocation4] sm:$0x1]
        %v1558 = vperm.slane %v1556, 0
        %1559 = vset.pattern.permute.xlu0 0
        %1560 = vperm.xlu0 %1559, %v1558
        %v1561 = vpop.permute.xlu0 %1560
        %v1563 = vmul.f32 %v1561, %v1461
        %v1564 = vmul.f32 %v1561, %v1464
        %v1565 = vmul.f32 %v1561, %v1467
        %v1566 = vmul.f32 %v1561, %v1470
        %v1567 = vmul.f32 %v1561, %v1473
        %v1568 = vmul.f32 %v1561, %v1476
        %v1569 = vmul.f32 %v1561, %v1479
        %v1570 = vmul.f32 %v1561, %v1482
        %v1571 = vmul.f32 %v1561, %v1485
        %v1572 = vmul.f32 %v1561, %v1488
        %v1573 = vmul.f32 %v1561, %v1491
        %v1574 = vmul.f32 %v1561, %v1494
        %v1575 = vmul.f32 %v1561, %v1497
        %v1576 = vmul.f32 %v1561, %v1500
        %v1577 = vmul.f32 %v1561, %v1503
        %v1578 = vmul.f32 %v1561, %v1506
        %v1579 = vmul.f32 %v1561, %v1509
        %v1580 = vmul.f32 %v1561, %v1512
        %v1581 = vmul.f32 %v1561, %v1515
        %v1582 = vmul.f32 %v1561, %v1518
        %v1583 = vmul.f32 %v1561, %v1521
        %v1584 = vmul.f32 %v1561, %v1524
        %v1585 = vmul.f32 %v1561, %v1527
        %v1586 = vmul.f32 %v1561, %v1530
        %v1587 = vmul.f32 %v1561, %v1533
        %v1588 = vmul.f32 %v1561, %v1536
        %v1589 = vmul.f32 %v1561, %v1539
        %v1590 = vmul.f32 %v1561, %v1542
        %v1591 = vmul.f32 %v1561, %v1545
        %v1592 = vmul.f32 %v1561, %v1548
        %v1593 = vmul.f32 %v1561, %v1551
        %v1594 = vmul.f32 %v1561, %v1554
        %v1595 = vadd.f32 %v1563, %v1121
        %v1596 = vadd.f32 %v1564, %v1122
        %v1597 = vadd.f32 %v1565, %v1123
        %v1598 = vadd.f32 %v1566, %v1124
        %v1599 = vadd.f32 %v1567, %v1125
        %v1600 = vadd.f32 %v1568, %v1126
        %v1601 = vadd.f32 %v1569, %v1127
        %v1602 = vadd.f32 %v1570, %v1128
        %v1603 = vadd.f32 %v1571, %v1129
        %v1604 = vadd.f32 %v1572, %v1130
        %v1605 = vadd.f32 %v1573, %v1131
        %v1606 = vadd.f32 %v1574, %v1132
        %v1607 = vadd.f32 %v1575, %v1133
        %v1608 = vadd.f32 %v1576, %v1134
        %v1609 = vadd.f32 %v1577, %v1135
        %v1610 = vadd.f32 %v1578, %v1136
        %v1611 = vadd.f32 %v1579, %v1137
        %v1612 = vadd.f32 %v1580, %v1138
        %v1613 = vadd.f32 %v1581, %v1139
        %v1614 = vadd.f32 %v1582, %v1140
        %v1615 = vadd.f32 %v1583, %v1141
        %v1616 = vadd.f32 %v1584, %v1142
        %v1617 = vadd.f32 %v1585, %v1143
        %v1618 = vadd.f32 %v1586, %v1144
        %v1619 = vadd.f32 %v1587, %v1145
        %v1620 = vadd.f32 %v1588, %v1146
        %v1621 = vadd.f32 %v1589, %v1147
        %v1622 = vadd.f32 %v1590, %v1148
        %v1623 = vadd.f32 %v1591, %v1149
        %v1624 = vadd.f32 %v1592, %v1150
        %v1625 = vadd.f32 %v1593, %v1151
        %v1626 = vadd.f32 %v1594, %v1152
        %v1627 = vld [vmem:[%s6] sm:$0xff]
        %v1628 = vld [vmem:[%s6 + $0x8] sm:$0xff]
        %v1629 = vld [vmem:[%s6 + $0x10] sm:$0xff]
        %v1630 = vld [vmem:[%s6 + $0x18] sm:$0xff]
        %v1631 = vld [vmem:[%s7] sm:$0x1]
        %v1633 = vperm.slane %v1631, 0
        %1635 = vmatpush.msra.mxu0 0.0
        %1636 = vmatpush.msra.mxu0 0.0
        %1637 = vmatpush.msra.mxu0 0.0
        %1638 = vmatpush.msra.mxu0 0.0
        %1639 = vmatpush.msra.mxu0 0.0
        %1640 = vmatpush.msra.mxu0 0.0
        %1641 = vmatpush.msra.mxu0 0.0
        %1642 = vmatpush.msra.mxu0 0.0
        %1643 = vmatpush.msra.mxu0 0.0
        %1644 = vmatpush.msra.mxu0 0.0
        %1645 = vmatpush.msra.mxu0 0.0
        %1646 = vmatpush.msra.mxu0 0.0
        %1647 = vmatpush.msra.mxu0 %v1630
        %1648 = vmatpush.msra.mxu0 %v1629
        %1649 = vmatpush.msra.mxu0 %v1628
        %1650 = vmatpush.msra.mxu0 %v1627
        %1651 = vmatmul.f32.gmra.mxu0 %v1336
        %v1652 = vpop.f32.mrf.mxu0
        %v1653 = vadd.f32 %v1633, %v1652
        %1654 = vmatmul.f32.gmra.mxu0 %v1339
        %v1655 = vpop.f32.mrf.mxu0
        %v1656 = vadd.f32 %v1633, %v1655
        %1657 = vmatmul.f32.gmra.mxu0 %v1342
        %v1658 = vpop.f32.mrf.mxu0
        %v1659 = vadd.f32 %v1633, %v1658
        %1660 = vmatmul.f32.gmra.mxu0 %v1345
        %v1661 = vpop.f32.mrf.mxu0
        %v1662 = vadd.f32 %v1633, %v1661
        %1663 = vmatmul.f32.gmra.mxu0 %v1348
        %v1664 = vpop.f32.mrf.mxu0
        %v1665 = vadd.f32 %v1633, %v1664
        %1666 = vmatmul.f32.gmra.mxu0 %v1351
        %v1667 = vpop.f32.mrf.mxu0
        %v1668 = vadd.f32 %v1633, %v1667
        %1669 = vmatmul.f32.gmra.mxu0 %v1354
        %v1670 = vpop.f32.mrf.mxu0
        %v1671 = vadd.f32 %v1633, %v1670
        %1672 = vmatmul.f32.gmra.mxu0 %v1357
        %v1673 = vpop.f32.mrf.mxu0
        %v1674 = vadd.f32 %v1633, %v1673
        %1675 = vmatmul.f32.gmra.mxu0 %v1360
        %v1676 = vpop.f32.mrf.mxu0
        %v1677 = vadd.f32 %v1633, %v1676
        %1678 = vmatmul.f32.gmra.mxu0 %v1363
        %v1679 = vpop.f32.mrf.mxu0
        %v1680 = vadd.f32 %v1633, %v1679
        %1681 = vmatmul.f32.gmra.mxu0 %v1366
        %v1682 = vpop.f32.mrf.mxu0
        %v1683 = vadd.f32 %v1633, %v1682
        %1684 = vmatmul.f32.gmra.mxu0 %v1369
        %v1685 = vpop.f32.mrf.mxu0
        %v1686 = vadd.f32 %v1633, %v1685
        %1687 = vmatmul.f32.gmra.mxu0 %v1372
        %v1688 = vpop.f32.mrf.mxu0
        %v1689 = vadd.f32 %v1633, %v1688
        %1690 = vmatmul.f32.gmra.mxu0 %v1375
        %v1691 = vpop.f32.mrf.mxu0
        %v1692 = vadd.f32 %v1633, %v1691
        %1693 = vmatmul.f32.gmra.mxu0 %v1378
        %v1694 = vpop.f32.mrf.mxu0
        %v1695 = vadd.f32 %v1633, %v1694
        %1696 = vmatmul.f32.gmra.mxu0 %v1381
        %v1697 = vpop.f32.mrf.mxu0
        %v1698 = vadd.f32 %v1633, %v1697
        %1699 = vmatmul.f32.gmra.mxu0 %v1384
        %v1700 = vpop.f32.mrf.mxu0
        %v1701 = vadd.f32 %v1633, %v1700
        %1702 = vmatmul.f32.gmra.mxu0 %v1387
        %v1703 = vpop.f32.mrf.mxu0
        %v1704 = vadd.f32 %v1633, %v1703
        %1705 = vmatmul.f32.gmra.mxu0 %v1390
        %v1706 = vpop.f32.mrf.mxu0
        %v1707 = vadd.f32 %v1633, %v1706
        %1708 = vmatmul.f32.gmra.mxu0 %v1393
        %v1709 = vpop.f32.mrf.mxu0
        %v1710 = vadd.f32 %v1633, %v1709
        %1711 = vmatmul.f32.gmra.mxu0 %v1396
        %v1712 = vpop.f32.mrf.mxu0
        %v1713 = vadd.f32 %v1633, %v1712
        %1714 = vmatmul.f32.gmra.mxu0 %v1399
        %v1715 = vpop.f32.mrf.mxu0
        %v1716 = vadd.f32 %v1633, %v1715
        %1717 = vmatmul.f32.gmra.mxu0 %v1402
        %v1718 = vpop.f32.mrf.mxu0
        %v1719 = vadd.f32 %v1633, %v1718
        %1720 = vmatmul.f32.gmra.mxu0 %v1405
        %v1721 = vpop.f32.mrf.mxu0
        %v1722 = vadd.f32 %v1633, %v1721
        %1723 = vmatmul.f32.gmra.mxu0 %v1408
        %v1724 = vpop.f32.mrf.mxu0
        %v1725 = vadd.f32 %v1633, %v1724
        %1726 = vmatmul.f32.gmra.mxu0 %v1411
        %v1727 = vpop.f32.mrf.mxu0
        %v1728 = vadd.f32 %v1633, %v1727
        %1729 = vmatmul.f32.gmra.mxu0 %v1414
        %v1730 = vpop.f32.mrf.mxu0
        %v1731 = vadd.f32 %v1633, %v1730
        %1732 = vmatmul.f32.gmra.mxu0 %v1417
        %v1733 = vpop.f32.mrf.mxu0
        %v1734 = vadd.f32 %v1633, %v1733
        %1735 = vmatmul.f32.gmra.mxu0 %v1420
        %v1736 = vpop.f32.mrf.mxu0
        %v1737 = vadd.f32 %v1633, %v1736
        %1738 = vmatmul.f32.gmra.mxu0 %v1423
        %v1739 = vpop.f32.mrf.mxu0
        %v1740 = vadd.f32 %v1633, %v1739
        %1741 = vmatmul.f32.gmra.mxu0 %v1426
        %v1742 = vpop.f32.mrf.mxu0
        %v1743 = vadd.f32 %v1633, %v1742
        %1744 = vmatmul.f32.gmra.mxu0 %v1429
        %v1745 = vpop.f32.mrf.mxu0
        %v1746 = vadd.f32 %v1633, %v1745
        %1747 = vdwg.mxu0
        %v1748 = vld [vmem:[%s8] sm:$0xff]
        %v1749 = vld [vmem:[%s8 + $0x8] sm:$0xff]
        %v1750 = vld [vmem:[%s8 + $0x10] sm:$0xff]
        %v1751 = vld [vmem:[%s8 + $0x18] sm:$0xff]
        %v1752 = vld [vmem:[%s9] sm:$0x1]
        %v1754 = vperm.slane %v1752, 0
        %1756 = vmatpush.msra.mxu0 0.0
        %1757 = vmatpush.msra.mxu0 0.0
        %1758 = vmatpush.msra.mxu0 0.0
        %1759 = vmatpush.msra.mxu0 0.0
        %1760 = vmatpush.msra.mxu0 0.0
        %1761 = vmatpush.msra.mxu0 0.0
        %1762 = vmatpush.msra.mxu0 0.0
        %1763 = vmatpush.msra.mxu0 0.0
        %1764 = vmatpush.msra.mxu0 0.0
        %1765 = vmatpush.msra.mxu0 0.0
        %1766 = vmatpush.msra.mxu0 0.0
        %1767 = vmatpush.msra.mxu0 0.0
        %1768 = vmatpush.msra.mxu0 %v1751
        %1769 = vmatpush.msra.mxu0 %v1750
        %1770 = vmatpush.msra.mxu0 %v1749
        %1771 = vmatpush.msra.mxu0 %v1748
        %1772 = vmatmul.f32.gmra.mxu0 %v1336
        %v1773 = vpop.f32.mrf.mxu0
        %v1774 = vadd.f32 %v1754, %v1773
        %1775 = vmatmul.f32.gmra.mxu0 %v1339
        %v1776 = vpop.f32.mrf.mxu0
        %v1777 = vadd.f32 %v1754, %v1776
        %1778 = vmatmul.f32.gmra.mxu0 %v1342
        %v1779 = vpop.f32.mrf.mxu0
        %v1780 = vadd.f32 %v1754, %v1779
        %1781 = vmatmul.f32.gmra.mxu0 %v1345
        %v1782 = vpop.f32.mrf.mxu0
        %v1783 = vadd.f32 %v1754, %v1782
        %1784 = vmatmul.f32.gmra.mxu0 %v1348
        %v1785 = vpop.f32.mrf.mxu0
        %v1786 = vadd.f32 %v1754, %v1785
        %1787 = vmatmul.f32.gmra.mxu0 %v1351
        %v1788 = vpop.f32.mrf.mxu0
        %v1789 = vadd.f32 %v1754, %v1788
        %1790 = vmatmul.f32.gmra.mxu0 %v1354
        %v1791 = vpop.f32.mrf.mxu0
        %v1792 = vadd.f32 %v1754, %v1791
        %1793 = vmatmul.f32.gmra.mxu0 %v1357
        %v1794 = vpop.f32.mrf.mxu0
        %v1795 = vadd.f32 %v1754, %v1794
        %1796 = vmatmul.f32.gmra.mxu0 %v1360
        %v1797 = vpop.f32.mrf.mxu0
        %v1798 = vadd.f32 %v1754, %v1797
        %1799 = vmatmul.f32.gmra.mxu0 %v1363
        %v1800 = vpop.f32.mrf.mxu0
        %v1801 = vadd.f32 %v1754, %v1800
        %1802 = vmatmul.f32.gmra.mxu0 %v1366
        %v1803 = vpop.f32.mrf.mxu0
        %v1804 = vadd.f32 %v1754, %v1803
        %1805 = vmatmul.f32.gmra.mxu0 %v1369
        %v1806 = vpop.f32.mrf.mxu0
        %v1807 = vadd.f32 %v1754, %v1806
        %1808 = vmatmul.f32.gmra.mxu0 %v1372
        %v1809 = vpop.f32.mrf.mxu0
        %v1810 = vadd.f32 %v1754, %v1809
        %1811 = vmatmul.f32.gmra.mxu0 %v1375
        %v1812 = vpop.f32.mrf.mxu0
        %v1813 = vadd.f32 %v1754, %v1812
        %1814 = vmatmul.f32.gmra.mxu0 %v1378
        %v1815 = vpop.f32.mrf.mxu0
        %v1816 = vadd.f32 %v1754, %v1815
        %1817 = vmatmul.f32.gmra.mxu0 %v1381
        %v1818 = vpop.f32.mrf.mxu0
        %v1819 = vadd.f32 %v1754, %v1818
        %1820 = vmatmul.f32.gmra.mxu0 %v1384
        %v1821 = vpop.f32.mrf.mxu0
        %v1822 = vadd.f32 %v1754, %v1821
        %1823 = vmatmul.f32.gmra.mxu0 %v1387
        %v1824 = vpop.f32.mrf.mxu0
        %v1825 = vadd.f32 %v1754, %v1824
        %1826 = vmatmul.f32.gmra.mxu0 %v1390
        %v1827 = vpop.f32.mrf.mxu0
        %v1828 = vadd.f32 %v1754, %v1827
        %1829 = vmatmul.f32.gmra.mxu0 %v1393
        %v1830 = vpop.f32.mrf.mxu0
        %v1831 = vadd.f32 %v1754, %v1830
        %1832 = vmatmul.f32.gmra.mxu0 %v1396
        %v1833 = vpop.f32.mrf.mxu0
        %v1834 = vadd.f32 %v1754, %v1833
        %1835 = vmatmul.f32.gmra.mxu0 %v1399
        %v1836 = vpop.f32.mrf.mxu0
        %v1837 = vadd.f32 %v1754, %v1836
        %1838 = vmatmul.f32.gmra.mxu0 %v1402
        %v1839 = vpop.f32.mrf.mxu0
        %v1840 = vadd.f32 %v1754, %v1839
        %1841 = vmatmul.f32.gmra.mxu0 %v1405
        %v1842 = vpop.f32.mrf.mxu0
        %v1843 = vadd.f32 %v1754, %v1842
        %1844 = vmatmul.f32.gmra.mxu0 %v1408
        %v1845 = vpop.f32.mrf.mxu0
        %v1846 = vadd.f32 %v1754, %v1845
        %1847 = vmatmul.f32.gmra.mxu0 %v1411
        %v1848 = vpop.f32.mrf.mxu0
        %v1849 = vadd.f32 %v1754, %v1848
        %1850 = vmatmul.f32.gmra.mxu0 %v1414
        %v1851 = vpop.f32.mrf.mxu0
        %v1852 = vadd.f32 %v1754, %v1851
        %1853 = vmatmul.f32.gmra.mxu0 %v1417
        %v1854 = vpop.f32.mrf.mxu0
        %v1855 = vadd.f32 %v1754, %v1854
        %1856 = vmatmul.f32.gmra.mxu0 %v1420
        %v1857 = vpop.f32.mrf.mxu0
        %v1858 = vadd.f32 %v1754, %v1857
        %1859 = vmatmul.f32.gmra.mxu0 %v1423
        %v1860 = vpop.f32.mrf.mxu0
        %v1861 = vadd.f32 %v1754, %v1860
        %1862 = vmatmul.f32.gmra.mxu0 %v1426
        %v1863 = vpop.f32.mrf.mxu0
        %v1864 = vadd.f32 %v1754, %v1863
        %1865 = vmatmul.f32.gmra.mxu0 %v1429
        %v1866 = vpop.f32.mrf.mxu0
        %v1867 = vadd.f32 %v1754, %v1866
        %1868 = vdwg.mxu0
        %v1869 = vld [vmem:[%s10] sm:$0xff]
        %v1870 = vld [vmem:[%s10 + $0x8] sm:$0xff]
        %v1871 = vld [vmem:[%s10 + $0x10] sm:$0xff]
        %v1872 = vld [vmem:[%s10 + $0x18] sm:$0xff]
        %v1873 = vld [vmem:[%s11] sm:$0x1]
        %v1875 = vperm.slane %v1873, 0
        %1877 = vmatpush.msra.mxu0 0.0
        %1878 = vmatpush.msra.mxu0 0.0
        %1879 = vmatpush.msra.mxu0 0.0
        %1880 = vmatpush.msra.mxu0 0.0
        %1881 = vmatpush.msra.mxu0 0.0
        %1882 = vmatpush.msra.mxu0 0.0
        %1883 = vmatpush.msra.mxu0 0.0
        %1884 = vmatpush.msra.mxu0 0.0
        %1885 = vmatpush.msra.mxu0 0.0
        %1886 = vmatpush.msra.mxu0 0.0
        %1887 = vmatpush.msra.mxu0 0.0
        %1888 = vmatpush.msra.mxu0 0.0
        %1889 = vmatpush.msra.mxu0 %v1872
        %1890 = vmatpush.msra.mxu0 %v1871
        %1891 = vmatpush.msra.mxu0 %v1870
        %1892 = vmatpush.msra.mxu0 %v1869
        %1893 = vmatmul.f32.gmra.mxu0 %v1336
        %v1894 = vpop.f32.mrf.mxu0
        %v1895 = vadd.f32 %v1875, %v1894
        %1896 = vmatmul.f32.gmra.mxu0 %v1339
        %v1897 = vpop.f32.mrf.mxu0
        %v1898 = vadd.f32 %v1875, %v1897
        %1899 = vmatmul.f32.gmra.mxu0 %v1342
        %v1900 = vpop.f32.mrf.mxu0
        %v1901 = vadd.f32 %v1875, %v1900
        %1902 = vmatmul.f32.gmra.mxu0 %v1345
        %v1903 = vpop.f32.mrf.mxu0
        %v1904 = vadd.f32 %v1875, %v1903
        %1905 = vmatmul.f32.gmra.mxu0 %v1348
        %v1906 = vpop.f32.mrf.mxu0
        %v1907 = vadd.f32 %v1875, %v1906
        %1908 = vmatmul.f32.gmra.mxu0 %v1351
        %v1909 = vpop.f32.mrf.mxu0
        %v1910 = vadd.f32 %v1875, %v1909
        %1911 = vmatmul.f32.gmra.mxu0 %v1354
        %v1912 = vpop.f32.mrf.mxu0
        %v1913 = vadd.f32 %v1875, %v1912
        %1914 = vmatmul.f32.gmra.mxu0 %v1357
        %v1915 = vpop.f32.mrf.mxu0
        %v1916 = vadd.f32 %v1875, %v1915
        %1917 = vmatmul.f32.gmra.mxu0 %v1360
        %v1918 = vpop.f32.mrf.mxu0
        %v1919 = vadd.f32 %v1875, %v1918
        %1920 = vmatmul.f32.gmra.mxu0 %v1363
        %v1921 = vpop.f32.mrf.mxu0
        %v1922 = vadd.f32 %v1875, %v1921
        %1923 = vmatmul.f32.gmra.mxu0 %v1366
        %v1924 = vpop.f32.mrf.mxu0
        %v1925 = vadd.f32 %v1875, %v1924
        %1926 = vmatmul.f32.gmra.mxu0 %v1369
        %v1927 = vpop.f32.mrf.mxu0
        %v1928 = vadd.f32 %v1875, %v1927
        %1929 = vmatmul.f32.gmra.mxu0 %v1372
        %v1930 = vpop.f32.mrf.mxu0
        %v1931 = vadd.f32 %v1875, %v1930
        %1932 = vmatmul.f32.gmra.mxu0 %v1375
        %v1933 = vpop.f32.mrf.mxu0
        %v1934 = vadd.f32 %v1875, %v1933
        %1935 = vmatmul.f32.gmra.mxu0 %v1378
        %v1936 = vpop.f32.mrf.mxu0
        %v1937 = vadd.f32 %v1875, %v1936
        %1938 = vmatmul.f32.gmra.mxu0 %v1381
        %v1939 = vpop.f32.mrf.mxu0
        %v1940 = vadd.f32 %v1875, %v1939
        %1941 = vmatmul.f32.gmra.mxu0 %v1384
        %v1942 = vpop.f32.mrf.mxu0
        %v1943 = vadd.f32 %v1875, %v1942
        %1944 = vmatmul.f32.gmra.mxu0 %v1387
        %v1945 = vpop.f32.mrf.mxu0
        %v1946 = vadd.f32 %v1875, %v1945
        %1947 = vmatmul.f32.gmra.mxu0 %v1390
        %v1948 = vpop.f32.mrf.mxu0
        %v1949 = vadd.f32 %v1875, %v1948
        %1950 = vmatmul.f32.gmra.mxu0 %v1393
        %v1951 = vpop.f32.mrf.mxu0
        %v1952 = vadd.f32 %v1875, %v1951
        %1953 = vmatmul.f32.gmra.mxu0 %v1396
        %v1954 = vpop.f32.mrf.mxu0
        %v1955 = vadd.f32 %v1875, %v1954
        %1956 = vmatmul.f32.gmra.mxu0 %v1399
        %v1957 = vpop.f32.mrf.mxu0
        %v1958 = vadd.f32 %v1875, %v1957
        %1959 = vmatmul.f32.gmra.mxu0 %v1402
        %v1960 = vpop.f32.mrf.mxu0
        %v1961 = vadd.f32 %v1875, %v1960
        %1962 = vmatmul.f32.gmra.mxu0 %v1405
        %v1963 = vpop.f32.mrf.mxu0
        %v1964 = vadd.f32 %v1875, %v1963
        %1965 = vmatmul.f32.gmra.mxu0 %v1408
        %v1966 = vpop.f32.mrf.mxu0
        %v1967 = vadd.f32 %v1875, %v1966
        %1968 = vmatmul.f32.gmra.mxu0 %v1411
        %v1969 = vpop.f32.mrf.mxu0
        %v1970 = vadd.f32 %v1875, %v1969
        %1971 = vmatmul.f32.gmra.mxu0 %v1414
        %v1972 = vpop.f32.mrf.mxu0
        %v1973 = vadd.f32 %v1875, %v1972
        %1974 = vmatmul.f32.gmra.mxu0 %v1417
        %v1975 = vpop.f32.mrf.mxu0
        %v1976 = vadd.f32 %v1875, %v1975
        %1977 = vmatmul.f32.gmra.mxu0 %v1420
        %v1978 = vpop.f32.mrf.mxu0
        %v1979 = vadd.f32 %v1875, %v1978
        %1980 = vmatmul.f32.gmra.mxu0 %v1423
        %v1981 = vpop.f32.mrf.mxu0
        %v1982 = vadd.f32 %v1875, %v1981
        %1983 = vmatmul.f32.gmra.mxu0 %v1426
        %v1984 = vpop.f32.mrf.mxu0
        %v1985 = vadd.f32 %v1875, %v1984
        %1986 = vmatmul.f32.gmra.mxu0 %v1429
        %v1987 = vpop.f32.mrf.mxu0
        %v1988 = vadd.f32 %v1875, %v1987
        %1989 = vdwg.mxu0
        %vm1990 = vcmask 31744
        %v1992 = vsel %vm1990, %v1653, 0
        %v1995 = vsel %vm1990, %v1656, 0
        %v1998 = vsel %vm1990, %v1659, 0
        %v2001 = vsel %vm1990, %v1662, 0
        %v2004 = vsel %vm1990, %v1665, 0
        %v2007 = vsel %vm1990, %v1668, 0
        %v2010 = vsel %vm1990, %v1671, 0
        %v2013 = vsel %vm1990, %v1674, 0
        %v2016 = vsel %vm1990, %v1677, 0
        %v2019 = vsel %vm1990, %v1680, 0
        %v2022 = vsel %vm1990, %v1683, 0
        %v2025 = vsel %vm1990, %v1686, 0
        %v2028 = vsel %vm1990, %v1689, 0
        %v2031 = vsel %vm1990, %v1692, 0
        %v2034 = vsel %vm1990, %v1695, 0
        %v2037 = vsel %vm1990, %v1698, 0
        %v2040 = vsel %vm1990, %v1701, 0
        %v2043 = vsel %vm1990, %v1704, 0
        %v2046 = vsel %vm1990, %v1707, 0
        %v2049 = vsel %vm1990, %v1710, 0
        %v2052 = vsel %vm1990, %v1713, 0
        %v2055 = vsel %vm1990, %v1716, 0
        %v2058 = vsel %vm1990, %v1719, 0
        %v2061 = vsel %vm1990, %v1722, 0
        %v2064 = vsel %vm1990, %v1725, 0
        %v2067 = vsel %vm1990, %v1728, 0
        %v2070 = vsel %vm1990, %v1731, 0
        %v2073 = vsel %vm1990, %v1734, 0
        %v2076 = vsel %vm1990, %v1737, 0
        %v2079 = vsel %vm1990, %v1740, 0
        %v2082 = vsel %vm1990, %v1743, 0
        %v2085 = vsel %vm1990, %v1746, 0
        %v2088 = vsel %vm1990, %v1774, 0
        %v2091 = vsel %vm1990, %v1777, 0
        %v2094 = vsel %vm1990, %v1780, 0
        %v2097 = vsel %vm1990, %v1783, 0
        %v2100 = vsel %vm1990, %v1786, 0
        %v2103 = vsel %vm1990, %v1789, 0
        %v2106 = vsel %vm1990, %v1792, 0
        %v2109 = vsel %vm1990, %v1795, 0
        %v2112 = vsel %vm1990, %v1798, 0
        %v2115 = vsel %vm1990, %v1801, 0
        %v2118 = vsel %vm1990, %v1804, 0
        %v2121 = vsel %vm1990, %v1807, 0
        %v2124 = vsel %vm1990, %v1810, 0
        %v2127 = vsel %vm1990, %v1813, 0
        %v2130 = vsel %vm1990, %v1816, 0
        %v2133 = vsel %vm1990, %v1819, 0
        %v2136 = vsel %vm1990, %v1822, 0
        %v2139 = vsel %vm1990, %v1825, 0
        %v2142 = vsel %vm1990, %v1828, 0
        %v2145 = vsel %vm1990, %v1831, 0
        %v2148 = vsel %vm1990, %v1834, 0
        %v2151 = vsel %vm1990, %v1837, 0
        %v2154 = vsel %vm1990, %v1840, 0
        %v2157 = vsel %vm1990, %v1843, 0
        %v2160 = vsel %vm1990, %v1846, 0
        %v2163 = vsel %vm1990, %v1849, 0
        %v2166 = vsel %vm1990, %v1852, 0
        %v2169 = vsel %vm1990, %v1855, 0
        %v2172 = vsel %vm1990, %v1858, 0
        %v2175 = vsel %vm1990, %v1861, 0
        %v2178 = vsel %vm1990, %v1864, 0
        %v2181 = vsel %vm1990, %v1867, 0
        %2183 = vmatpush.xpose.msra.mxu0 %v2133
        %2184 = vmatpush.xpose.msra.mxu0 %v2130
        %2185 = vmatpush.xpose.msra.mxu0 %v2127
        %2186 = vmatpush.xpose.msra.mxu0 %v2124
        %2187 = vmatpush.xpose.msra.mxu0 %v2121
        %2188 = vmatpush.xpose.msra.mxu0 %v2118
        %2189 = vmatpush.xpose.msra.mxu0 %v2115
        %2190 = vmatpush.xpose.msra.mxu0 %v2112
        %2191 = vmatpush.xpose.msra.mxu0 %v2109
        %2192 = vmatpush.xpose.msra.mxu0 %v2106
        %2193 = vmatpush.xpose.msra.mxu0 %v2103
        %2194 = vmatpush.xpose.msra.mxu0 %v2100
        %2195 = vmatpush.xpose.msra.mxu0 %v2097
        %2196 = vmatpush.xpose.msra.mxu0 %v2094
        %2197 = vmatpush.xpose.msra.mxu0 %v2091
        %2198 = vmatpush.xpose.msra.mxu0 %v2088
        %2199 = vmatmul.f32.gmra.mxu0 %v1992
        %v2200 = vpop.f32.mrf.mxu0
        %v2201 = vadd.f32 0.0, %v2200
        %2202 = vmatmul.f32.gmra.mxu0 %v1995
        %v2203 = vpop.f32.mrf.mxu0
        %v2204 = vadd.f32 0.0, %v2203
        %2205 = vmatmul.f32.gmra.mxu0 %v1998
        %v2206 = vpop.f32.mrf.mxu0
        %v2207 = vadd.f32 0.0, %v2206
        %2208 = vmatmul.f32.gmra.mxu0 %v2001
        %v2209 = vpop.f32.mrf.mxu0
        %v2210 = vadd.f32 0.0, %v2209
        %2211 = vmatmul.f32.gmra.mxu0 %v2004
        %v2212 = vpop.f32.mrf.mxu0
        %v2213 = vadd.f32 0.0, %v2212
        %2214 = vmatmul.f32.gmra.mxu0 %v2007
        %v2215 = vpop.f32.mrf.mxu0
        %v2216 = vadd.f32 0.0, %v2215
        %2217 = vmatmul.f32.gmra.mxu0 %v2010
        %v2218 = vpop.f32.mrf.mxu0
        %v2219 = vadd.f32 0.0, %v2218
        %2220 = vmatmul.f32.gmra.mxu0 %v2013
        %v2221 = vpop.f32.mrf.mxu0
        %v2222 = vadd.f32 0.0, %v2221
        %2223 = vmatmul.f32.gmra.mxu0 %v2016
        %v2224 = vpop.f32.mrf.mxu0
        %v2225 = vadd.f32 0.0, %v2224
        %2226 = vmatmul.f32.gmra.mxu0 %v2019
        %v2227 = vpop.f32.mrf.mxu0
        %v2228 = vadd.f32 0.0, %v2227
        %2229 = vmatmul.f32.gmra.mxu0 %v2022
        %v2230 = vpop.f32.mrf.mxu0
        %v2231 = vadd.f32 0.0, %v2230
        %2232 = vmatmul.f32.gmra.mxu0 %v2025
        %v2233 = vpop.f32.mrf.mxu0
        %v2234 = vadd.f32 0.0, %v2233
        %2235 = vmatmul.f32.gmra.mxu0 %v2028
        %v2236 = vpop.f32.mrf.mxu0
        %v2237 = vadd.f32 0.0, %v2236
        %2238 = vmatmul.f32.gmra.mxu0 %v2031
        %v2239 = vpop.f32.mrf.mxu0
        %v2240 = vadd.f32 0.0, %v2239
        %2241 = vmatmul.f32.gmra.mxu0 %v2034
        %v2242 = vpop.f32.mrf.mxu0
        %v2243 = vadd.f32 0.0, %v2242
        %2244 = vmatmul.f32.gmra.mxu0 %v2037
        %v2245 = vpop.f32.mrf.mxu0
        %v2246 = vadd.f32 0.0, %v2245
        %2247 = vmatmul.f32.gmra.mxu0 %v2040
        %v2248 = vpop.f32.mrf.mxu0
        %v2249 = vadd.f32 0.0, %v2248
        %2250 = vmatmul.f32.gmra.mxu0 %v2043
        %v2251 = vpop.f32.mrf.mxu0
        %v2252 = vadd.f32 0.0, %v2251
        %2253 = vmatmul.f32.gmra.mxu0 %v2046
        %v2254 = vpop.f32.mrf.mxu0
        %v2255 = vadd.f32 0.0, %v2254
        %2256 = vmatmul.f32.gmra.mxu0 %v2049
        %v2257 = vpop.f32.mrf.mxu0
        %v2258 = vadd.f32 0.0, %v2257
        %2259 = vmatmul.f32.gmra.mxu0 %v2052
        %v2260 = vpop.f32.mrf.mxu0
        %v2261 = vadd.f32 0.0, %v2260
        %2262 = vmatmul.f32.gmra.mxu0 %v2055
        %v2263 = vpop.f32.mrf.mxu0
        %v2264 = vadd.f32 0.0, %v2263
        %2265 = vmatmul.f32.gmra.mxu0 %v2058
        %v2266 = vpop.f32.mrf.mxu0
        %v2267 = vadd.f32 0.0, %v2266
        %2268 = vmatmul.f32.gmra.mxu0 %v2061
        %v2269 = vpop.f32.mrf.mxu0
        %v2270 = vadd.f32 0.0, %v2269
        %2271 = vmatmul.f32.gmra.mxu0 %v2064
        %v2272 = vpop.f32.mrf.mxu0
        %v2273 = vadd.f32 0.0, %v2272
        %2274 = vmatmul.f32.gmra.mxu0 %v2067
        %v2275 = vpop.f32.mrf.mxu0
        %v2276 = vadd.f32 0.0, %v2275
        %2277 = vmatmul.f32.gmra.mxu0 %v2070
        %v2278 = vpop.f32.mrf.mxu0
        %v2279 = vadd.f32 0.0, %v2278
        %2280 = vmatmul.f32.gmra.mxu0 %v2073
        %v2281 = vpop.f32.mrf.mxu0
        %v2282 = vadd.f32 0.0, %v2281
        %2283 = vmatmul.f32.gmra.mxu0 %v2076
        %v2284 = vpop.f32.mrf.mxu0
        %v2285 = vadd.f32 0.0, %v2284
        %2286 = vmatmul.f32.gmra.mxu0 %v2079
        %v2287 = vpop.f32.mrf.mxu0
        %v2288 = vadd.f32 0.0, %v2287
        %2289 = vmatmul.f32.gmra.mxu0 %v2082
        %v2290 = vpop.f32.mrf.mxu0
        %v2291 = vadd.f32 0.0, %v2290
        %2292 = vmatmul.f32.gmra.mxu0 %v2085
        %v2293 = vpop.f32.mrf.mxu0
        %v2294 = vadd.f32 0.0, %v2293
        %2295 = vdwg.mxu0
        %2296 = vmatpush.xpose.msra.mxu0 %v2181
        %2297 = vmatpush.xpose.msra.mxu0 %v2178
        %2298 = vmatpush.xpose.msra.mxu0 %v2175
        %2299 = vmatpush.xpose.msra.mxu0 %v2172
        %2300 = vmatpush.xpose.msra.mxu0 %v2169
        %2301 = vmatpush.xpose.msra.mxu0 %v2166
        %2302 = vmatpush.xpose.msra.mxu0 %v2163
        %2303 = vmatpush.xpose.msra.mxu0 %v2160
        %2304 = vmatpush.xpose.msra.mxu0 %v2157
        %2305 = vmatpush.xpose.msra.mxu0 %v2154
        %2306 = vmatpush.xpose.msra.mxu0 %v2151
        %2307 = vmatpush.xpose.msra.mxu0 %v2148
        %2308 = vmatpush.xpose.msra.mxu0 %v2145
        %2309 = vmatpush.xpose.msra.mxu0 %v2142
        %2310 = vmatpush.xpose.msra.mxu0 %v2139
        %2311 = vmatpush.xpose.msra.mxu0 %v2136
        %2312 = vmatmul.f32.gmra.mxu0 %v1992
        %v2313 = vpop.f32.mrf.mxu0
        %v2314 = vadd.f32 0.0, %v2313
        %2315 = vmatmul.f32.gmra.mxu0 %v1995
        %v2316 = vpop.f32.mrf.mxu0
        %v2317 = vadd.f32 0.0, %v2316
        %2318 = vmatmul.f32.gmra.mxu0 %v1998
        %v2319 = vpop.f32.mrf.mxu0
        %v2320 = vadd.f32 0.0, %v2319
        %2321 = vmatmul.f32.gmra.mxu0 %v2001
        %v2322 = vpop.f32.mrf.mxu0
        %v2323 = vadd.f32 0.0, %v2322
        %2324 = vmatmul.f32.gmra.mxu0 %v2004
        %v2325 = vpop.f32.mrf.mxu0
        %v2326 = vadd.f32 0.0, %v2325
        %2327 = vmatmul.f32.gmra.mxu0 %v2007
        %v2328 = vpop.f32.mrf.mxu0
        %v2329 = vadd.f32 0.0, %v2328
        %2330 = vmatmul.f32.gmra.mxu0 %v2010
        %v2331 = vpop.f32.mrf.mxu0
        %v2332 = vadd.f32 0.0, %v2331
        %2333 = vmatmul.f32.gmra.mxu0 %v2013
        %v2334 = vpop.f32.mrf.mxu0
        %v2335 = vadd.f32 0.0, %v2334
        %2336 = vmatmul.f32.gmra.mxu0 %v2016
        %v2337 = vpop.f32.mrf.mxu0
        %v2338 = vadd.f32 0.0, %v2337
        %2339 = vmatmul.f32.gmra.mxu0 %v2019
        %v2340 = vpop.f32.mrf.mxu0
        %v2341 = vadd.f32 0.0, %v2340
        %2342 = vmatmul.f32.gmra.mxu0 %v2022
        %v2343 = vpop.f32.mrf.mxu0
        %v2344 = vadd.f32 0.0, %v2343
        %2345 = vmatmul.f32.gmra.mxu0 %v2025
        %v2346 = vpop.f32.mrf.mxu0
        %v2347 = vadd.f32 0.0, %v2346
        %2348 = vmatmul.f32.gmra.mxu0 %v2028
        %v2349 = vpop.f32.mrf.mxu0
        %v2350 = vadd.f32 0.0, %v2349
        %2351 = vmatmul.f32.gmra.mxu0 %v2031
        %v2352 = vpop.f32.mrf.mxu0
        %v2353 = vadd.f32 0.0, %v2352
        %2354 = vmatmul.f32.gmra.mxu0 %v2034
        %v2355 = vpop.f32.mrf.mxu0
        %v2356 = vadd.f32 0.0, %v2355
        %2357 = vmatmul.f32.gmra.mxu0 %v2037
        %v2358 = vpop.f32.mrf.mxu0
        %v2359 = vadd.f32 0.0, %v2358
        %2360 = vmatmul.f32.gmra.mxu0 %v2040
        %v2361 = vpop.f32.mrf.mxu0
        %v2362 = vadd.f32 0.0, %v2361
        %2363 = vmatmul.f32.gmra.mxu0 %v2043
        %v2364 = vpop.f32.mrf.mxu0
        %v2365 = vadd.f32 0.0, %v2364
        %2366 = vmatmul.f32.gmra.mxu0 %v2046
        %v2367 = vpop.f32.mrf.mxu0
        %v2368 = vadd.f32 0.0, %v2367
        %2369 = vmatmul.f32.gmra.mxu0 %v2049
        %v2370 = vpop.f32.mrf.mxu0
        %v2371 = vadd.f32 0.0, %v2370
        %2372 = vmatmul.f32.gmra.mxu0 %v2052
        %v2373 = vpop.f32.mrf.mxu0
        %v2374 = vadd.f32 0.0, %v2373
        %2375 = vmatmul.f32.gmra.mxu0 %v2055
        %v2376 = vpop.f32.mrf.mxu0
        %v2377 = vadd.f32 0.0, %v2376
        %2378 = vmatmul.f32.gmra.mxu0 %v2058
        %v2379 = vpop.f32.mrf.mxu0
        %v2380 = vadd.f32 0.0, %v2379
        %2381 = vmatmul.f32.gmra.mxu0 %v2061
        %v2382 = vpop.f32.mrf.mxu0
        %v2383 = vadd.f32 0.0, %v2382
        %2384 = vmatmul.f32.gmra.mxu0 %v2064
        %v2385 = vpop.f32.mrf.mxu0
        %v2386 = vadd.f32 0.0, %v2385
        %2387 = vmatmul.f32.gmra.mxu0 %v2067
        %v2388 = vpop.f32.mrf.mxu0
        %v2389 = vadd.f32 0.0, %v2388
        %2390 = vmatmul.f32.gmra.mxu0 %v2070
        %v2391 = vpop.f32.mrf.mxu0
        %v2392 = vadd.f32 0.0, %v2391
        %2393 = vmatmul.f32.gmra.mxu0 %v2073
        %v2394 = vpop.f32.mrf.mxu0
        %v2395 = vadd.f32 0.0, %v2394
        %2396 = vmatmul.f32.gmra.mxu0 %v2076
        %v2397 = vpop.f32.mrf.mxu0
        %v2398 = vadd.f32 0.0, %v2397
        %2399 = vmatmul.f32.gmra.mxu0 %v2079
        %v2400 = vpop.f32.mrf.mxu0
        %v2401 = vadd.f32 0.0, %v2400
        %2402 = vmatmul.f32.gmra.mxu0 %v2082
        %v2403 = vpop.f32.mrf.mxu0
        %v2404 = vadd.f32 0.0, %v2403
        %2405 = vmatmul.f32.gmra.mxu0 %v2085
        %v2406 = vpop.f32.mrf.mxu0
        %v2407 = vadd.f32 0.0, %v2406
        %2408 = vdwg.mxu0
        %v2409 = vmax.f32 %v2201, %v2314
        %2410 = vmax.xlane.f32.xlu0 %v2409
        %v2411 = vpop.xlane.xlu0 %2410
        %v2412 = vmax.f32 %v2204, %v2317
        %2413 = vmax.xlane.f32.xlu0 %v2412
        %v2414 = vpop.xlane.xlu0 %2413
        %v2415 = vmax.f32 %v2207, %v2320
        %2416 = vmax.xlane.f32.xlu0 %v2415
        %v2417 = vpop.xlane.xlu0 %2416
        %v2418 = vmax.f32 %v2210, %v2323
        %2419 = vmax.xlane.f32.xlu0 %v2418
        %v2420 = vpop.xlane.xlu0 %2419
        %v2421 = vmax.f32 %v2213, %v2326
        %2422 = vmax.xlane.f32.xlu0 %v2421
        %v2423 = vpop.xlane.xlu0 %2422
        %v2424 = vmax.f32 %v2216, %v2329
        %2425 = vmax.xlane.f32.xlu0 %v2424
        %v2426 = vpop.xlane.xlu0 %2425
        %v2427 = vmax.f32 %v2219, %v2332
        %2428 = vmax.xlane.f32.xlu0 %v2427
        %v2429 = vpop.xlane.xlu0 %2428
        %v2430 = vmax.f32 %v2222, %v2335
        %2431 = vmax.xlane.f32.xlu0 %v2430
        %v2432 = vpop.xlane.xlu0 %2431
        %v2433 = vmax.f32 %v2225, %v2338
        %2434 = vmax.xlane.f32.xlu0 %v2433
        %v2435 = vpop.xlane.xlu0 %2434
        %v2436 = vmax.f32 %v2228, %v2341
        %2437 = vmax.xlane.f32.xlu0 %v2436
        %v2438 = vpop.xlane.xlu0 %2437
        %v2439 = vmax.f32 %v2231, %v2344
        %2440 = vmax.xlane.f32.xlu0 %v2439
        %v2441 = vpop.xlane.xlu0 %2440
        %v2442 = vmax.f32 %v2234, %v2347
        %2443 = vmax.xlane.f32.xlu0 %v2442
        %v2444 = vpop.xlane.xlu0 %2443
        %v2445 = vmax.f32 %v2237, %v2350
        %2446 = vmax.xlane.f32.xlu0 %v2445
        %v2447 = vpop.xlane.xlu0 %2446
        %v2448 = vmax.f32 %v2240, %v2353
        %2449 = vmax.xlane.f32.xlu0 %v2448
        %v2450 = vpop.xlane.xlu0 %2449
        %v2451 = vmax.f32 %v2243, %v2356
        %2452 = vmax.xlane.f32.xlu0 %v2451
        %v2453 = vpop.xlane.xlu0 %2452
        %v2454 = vmax.f32 %v2246, %v2359
        %2455 = vmax.xlane.f32.xlu0 %v2454
        %v2456 = vpop.xlane.xlu0 %2455
        %v2457 = vmax.f32 %v2249, %v2362
        %2458 = vmax.xlane.f32.xlu0 %v2457
        %v2459 = vpop.xlane.xlu0 %2458
        %v2460 = vmax.f32 %v2252, %v2365
        %2461 = vmax.xlane.f32.xlu0 %v2460
        %v2462 = vpop.xlane.xlu0 %2461
        %v2463 = vmax.f32 %v2255, %v2368
        %2464 = vmax.xlane.f32.xlu0 %v2463
        %v2465 = vpop.xlane.xlu0 %2464
        %v2466 = vmax.f32 %v2258, %v2371
        %2467 = vmax.xlane.f32.xlu0 %v2466
        %v2468 = vpop.xlane.xlu0 %2467
        %v2469 = vmax.f32 %v2261, %v2374
        %2470 = vmax.xlane.f32.xlu0 %v2469
        %v2471 = vpop.xlane.xlu0 %2470
        %v2472 = vmax.f32 %v2264, %v2377
        %2473 = vmax.xlane.f32.xlu0 %v2472
        %v2474 = vpop.xlane.xlu0 %2473
        %v2475 = vmax.f32 %v2267, %v2380
        %2476 = vmax.xlane.f32.xlu0 %v2475
        %v2477 = vpop.xlane.xlu0 %2476
        %v2478 = vmax.f32 %v2270, %v2383
        %2479 = vmax.xlane.f32.xlu0 %v2478
        %v2480 = vpop.xlane.xlu0 %2479
        %v2481 = vmax.f32 %v2273, %v2386
        %2482 = vmax.xlane.f32.xlu0 %v2481
        %v2483 = vpop.xlane.xlu0 %2482
        %v2484 = vmax.f32 %v2276, %v2389
        %2485 = vmax.xlane.f32.xlu0 %v2484
        %v2486 = vpop.xlane.xlu0 %2485
        %v2487 = vmax.f32 %v2279, %v2392
        %2488 = vmax.xlane.f32.xlu0 %v2487
        %v2489 = vpop.xlane.xlu0 %2488
        %v2490 = vmax.f32 %v2282, %v2395
        %2491 = vmax.xlane.f32.xlu0 %v2490
        %v2492 = vpop.xlane.xlu0 %2491
        %v2493 = vmax.f32 %v2285, %v2398
        %2494 = vmax.xlane.f32.xlu0 %v2493
        %v2495 = vpop.xlane.xlu0 %2494
        %v2496 = vmax.f32 %v2288, %v2401
        %2497 = vmax.xlane.f32.xlu0 %v2496
        %v2498 = vpop.xlane.xlu0 %2497
        %v2499 = vmax.f32 %v2291, %v2404
        %2500 = vmax.xlane.f32.xlu0 %v2499
        %v2501 = vpop.xlane.xlu0 %2500
        %v2502 = vmax.f32 %v2294, %v2407
        %2503 = vmax.xlane.f32.xlu0 %v2502
        %v2504 = vpop.xlane.xlu0 %2503
        %v2505 = vsub.f32 %v2201, %v2411
        %v2506 = vsub.f32 %v2314, %v2411
        %v2507 = vsub.f32 %v2204, %v2414
        %v2508 = vsub.f32 %v2317, %v2414
        %v2509 = vsub.f32 %v2207, %v2417
        %v2510 = vsub.f32 %v2320, %v2417
        %v2511 = vsub.f32 %v2210, %v2420
        %v2512 = vsub.f32 %v2323, %v2420
        %v2513 = vsub.f32 %v2213, %v2423
        %v2514 = vsub.f32 %v2326, %v2423
        %v2515 = vsub.f32 %v2216, %v2426
        %v2516 = vsub.f32 %v2329, %v2426
        %v2517 = vsub.f32 %v2219, %v2429
        %v2518 = vsub.f32 %v2332, %v2429
        %v2519 = vsub.f32 %v2222, %v2432
        %v2520 = vsub.f32 %v2335, %v2432
        %v2521 = vsub.f32 %v2225, %v2435
        %v2522 = vsub.f32 %v2338, %v2435
        %v2523 = vsub.f32 %v2228, %v2438
        %v2524 = vsub.f32 %v2341, %v2438
        %v2525 = vsub.f32 %v2231, %v2441
        %v2526 = vsub.f32 %v2344, %v2441
        %v2527 = vsub.f32 %v2234, %v2444
        %v2528 = vsub.f32 %v2347, %v2444
        %v2529 = vsub.f32 %v2237, %v2447
        %v2530 = vsub.f32 %v2350, %v2447
        %v2531 = vsub.f32 %v2240, %v2450
        %v2532 = vsub.f32 %v2353, %v2450
        %v2533 = vsub.f32 %v2243, %v2453
        %v2534 = vsub.f32 %v2356, %v2453
        %v2535 = vsub.f32 %v2246, %v2456
        %v2536 = vsub.f32 %v2359, %v2456
        %v2537 = vsub.f32 %v2249, %v2459
        %v2538 = vsub.f32 %v2362, %v2459
        %v2539 = vsub.f32 %v2252, %v2462
        %v2540 = vsub.f32 %v2365, %v2462
        %v2541 = vsub.f32 %v2255, %v2465
        %v2542 = vsub.f32 %v2368, %v2465
        %v2543 = vsub.f32 %v2258, %v2468
        %v2544 = vsub.f32 %v2371, %v2468
        %v2545 = vsub.f32 %v2261, %v2471
        %v2546 = vsub.f32 %v2374, %v2471
        %v2547 = vsub.f32 %v2264, %v2474
        %v2548 = vsub.f32 %v2377, %v2474
        %v2549 = vsub.f32 %v2267, %v2477
        %v2550 = vsub.f32 %v2380, %v2477
        %v2551 = vsub.f32 %v2270, %v2480
        %v2552 = vsub.f32 %v2383, %v2480
        %v2553 = vsub.f32 %v2273, %v2483
        %v2554 = vsub.f32 %v2386, %v2483
        %v2555 = vsub.f32 %v2276, %v2486
        %v2556 = vsub.f32 %v2389, %v2486
        %v2557 = vsub.f32 %v2279, %v2489
        %v2558 = vsub.f32 %v2392, %v2489
        %v2559 = vsub.f32 %v2282, %v2492
        %v2560 = vsub.f32 %v2395, %v2492
        %v2561 = vsub.f32 %v2285, %v2495
        %v2562 = vsub.f32 %v2398, %v2495
        %v2563 = vsub.f32 %v2288, %v2498
        %v2564 = vsub.f32 %v2401, %v2498
        %v2565 = vsub.f32 %v2291, %v2501
        %v2566 = vsub.f32 %v2404, %v2501
        %v2567 = vsub.f32 %v2294, %v2504
        %v2568 = vsub.f32 %v2407, %v2504
        %v2569 = vmul.f32 %v2505, 1.442695
        %v2570 = vpow.pop %v2569
        %v2571 = vmul.f32 %v2506, 1.442695
        %v2572 = vpow.pop %v2571
        %v2573 = vmul.f32 %v2507, 1.442695
        %v2574 = vpow.pop %v2573
        %v2575 = vmul.f32 %v2508, 1.442695
        %v2576 = vpow.pop %v2575
        %v2577 = vmul.f32 %v2509, 1.442695
        %v2578 = vpow.pop %v2577
        %v2579 = vmul.f32 %v2510, 1.442695
        %v2580 = vpow.pop %v2579
        %v2581 = vmul.f32 %v2511, 1.442695
        %v2582 = vpow.pop %v2581
        %v2583 = vmul.f32 %v2512, 1.442695
        %v2584 = vpow.pop %v2583
        %v2585 = vmul.f32 %v2513, 1.442695
        %v2586 = vpow.pop %v2585
        %v2587 = vmul.f32 %v2514, 1.442695
        %v2588 = vpow.pop %v2587
        %v2589 = vmul.f32 %v2515, 1.442695
        %v2590 = vpow.pop %v2589
        %v2591 = vmul.f32 %v2516, 1.442695
        %v2592 = vpow.pop %v2591
        %v2593 = vmul.f32 %v2517, 1.442695
        %v2594 = vpow.pop %v2593
        %v2595 = vmul.f32 %v2518, 1.442695
        %v2596 = vpow.pop %v2595
        %v2597 = vmul.f32 %v2519, 1.442695
        %v2598 = vpow.pop %v2597
        %v2599 = vmul.f32 %v2520, 1.442695
        %v2600 = vpow.pop %v2599
        %v2601 = vmul.f32 %v2521, 1.442695
        %v2602 = vpow.pop %v2601
        %v2603 = vmul.f32 %v2522, 1.442695
        %v2604 = vpow.pop %v2603
        %v2605 = vmul.f32 %v2523, 1.442695
        %v2606 = vpow.pop %v2605
        %v2607 = vmul.f32 %v2524, 1.442695
        %v2608 = vpow.pop %v2607
        %v2609 = vmul.f32 %v2525, 1.442695
        %v2610 = vpow.pop %v2609
        %v2611 = vmul.f32 %v2526, 1.442695
        %v2612 = vpow.pop %v2611
        %v2613 = vmul.f32 %v2527, 1.442695
        %v2614 = vpow.pop %v2613
        %v2615 = vmul.f32 %v2528, 1.442695
        %v2616 = vpow.pop %v2615
        %v2617 = vmul.f32 %v2529, 1.442695
        %v2618 = vpow.pop %v2617
        %v2619 = vmul.f32 %v2530, 1.442695
        %v2620 = vpow.pop %v2619
        %v2621 = vmul.f32 %v2531, 1.442695
        %v2622 = vpow.pop %v2621
        %v2623 = vmul.f32 %v2532, 1.442695
        %v2624 = vpow.pop %v2623
        %v2625 = vmul.f32 %v2533, 1.442695
        %v2626 = vpow.pop %v2625
        %v2627 = vmul.f32 %v2534, 1.442695
        %v2628 = vpow.pop %v2627
        %v2629 = vmul.f32 %v2535, 1.442695
        %v2630 = vpow.pop %v2629
        %v2631 = vmul.f32 %v2536, 1.442695
        %v2632 = vpow.pop %v2631
        %v2633 = vmul.f32 %v2537, 1.442695
        %v2634 = vpow.pop %v2633
        %v2635 = vmul.f32 %v2538, 1.442695
        %v2636 = vpow.pop %v2635
        %v2637 = vmul.f32 %v2539, 1.442695
        %v2638 = vpow.pop %v2637
        %v2639 = vmul.f32 %v2540, 1.442695
        %v2640 = vpow.pop %v2639
        %v2641 = vmul.f32 %v2541, 1.442695
        %v2642 = vpow.pop %v2641
        %v2643 = vmul.f32 %v2542, 1.442695
        %v2644 = vpow.pop %v2643
        %v2645 = vmul.f32 %v2543, 1.442695
        %v2646 = vpow.pop %v2645
        %v2647 = vmul.f32 %v2544, 1.442695
        %v2648 = vpow.pop %v2647
        %v2649 = vmul.f32 %v2545, 1.442695
        %v2650 = vpow.pop %v2649
        %v2651 = vmul.f32 %v2546, 1.442695
        %v2652 = vpow.pop %v2651
        %v2653 = vmul.f32 %v2547, 1.442695
        %v2654 = vpow.pop %v2653
        %v2655 = vmul.f32 %v2548, 1.442695
        %v2656 = vpow.pop %v2655
        %v2657 = vmul.f32 %v2549, 1.442695
        %v2658 = vpow.pop %v2657
        %v2659 = vmul.f32 %v2550, 1.442695
        %v2660 = vpow.pop %v2659
        %v2661 = vmul.f32 %v2551, 1.442695
        %v2662 = vpow.pop %v2661
        %v2663 = vmul.f32 %v2552, 1.442695
        %v2664 = vpow.pop %v2663
        %v2665 = vmul.f32 %v2553, 1.442695
        %v2666 = vpow.pop %v2665
        %v2667 = vmul.f32 %v2554, 1.442695
        %v2668 = vpow.pop %v2667
        %v2669 = vmul.f32 %v2555, 1.442695
        %v2670 = vpow.pop %v2669
        %v2671 = vmul.f32 %v2556, 1.442695
        %v2672 = vpow.pop %v2671
        %v2673 = vmul.f32 %v2557, 1.442695
        %v2674 = vpow.pop %v2673
        %v2675 = vmul.f32 %v2558, 1.442695
        %v2676 = vpow.pop %v2675
        %v2677 = vmul.f32 %v2559, 1.442695
        %v2678 = vpow.pop %v2677
        %v2679 = vmul.f32 %v2560, 1.442695
        %v2680 = vpow.pop %v2679
        %v2681 = vmul.f32 %v2561, 1.442695
        %v2682 = vpow.pop %v2681
        %v2683 = vmul.f32 %v2562, 1.442695
        %v2684 = vpow.pop %v2683
        %v2685 = vmul.f32 %v2563, 1.442695
        %v2686 = vpow.pop %v2685
        %v2687 = vmul.f32 %v2564, 1.442695
        %v2688 = vpow.pop %v2687
        %v2689 = vmul.f32 %v2565, 1.442695
        %v2690 = vpow.pop %v2689
        %v2691 = vmul.f32 %v2566, 1.442695
        %v2692 = vpow.pop %v2691
        %v2693 = vmul.f32 %v2567, 1.442695
        %v2694 = vpow.pop %v2693
        %v2695 = vmul.f32 %v2568, 1.442695
        %v2696 = vpow.pop %v2695
        %v2697 = vadd.f32 %v2570, %v2572
        %2698 = vadd.xlane.f32.xlu0 %v2697
        %v2699 = vpop.xlane.xlu0 %2698
        %v2700 = vadd.f32 %v2574, %v2576
        %2701 = vadd.xlane.f32.xlu0 %v2700
        %v2702 = vpop.xlane.xlu0 %2701
        %v2703 = vadd.f32 %v2578, %v2580
        %2704 = vadd.xlane.f32.xlu0 %v2703
        %v2705 = vpop.xlane.xlu0 %2704
        %v2706 = vadd.f32 %v2582, %v2584
        %2707 = vadd.xlane.f32.xlu0 %v2706
        %v2708 = vpop.xlane.xlu0 %2707
        %v2709 = vadd.f32 %v2586, %v2588
        %2710 = vadd.xlane.f32.xlu0 %v2709
        %v2711 = vpop.xlane.xlu0 %2710
        %v2712 = vadd.f32 %v2590, %v2592
        %2713 = vadd.xlane.f32.xlu0 %v2712
        %v2714 = vpop.xlane.xlu0 %2713
        %v2715 = vadd.f32 %v2594, %v2596
        %2716 = vadd.xlane.f32.xlu0 %v2715
        %v2717 = vpop.xlane.xlu0 %2716
        %v2718 = vadd.f32 %v2598, %v2600
        %2719 = vadd.xlane.f32.xlu0 %v2718
        %v2720 = vpop.xlane.xlu0 %2719
        %v2721 = vadd.f32 %v2602, %v2604
        %2722 = vadd.xlane.f32.xlu0 %v2721
        %v2723 = vpop.xlane.xlu0 %2722
        %v2724 = vadd.f32 %v2606, %v2608
        %2725 = vadd.xlane.f32.xlu0 %v2724
        %v2726 = vpop.xlane.xlu0 %2725
        %v2727 = vadd.f32 %v2610, %v2612
        %2728 = vadd.xlane.f32.xlu0 %v2727
        %v2729 = vpop.xlane.xlu0 %2728
        %v2730 = vadd.f32 %v2614, %v2616
        %2731 = vadd.xlane.f32.xlu0 %v2730
        %v2732 = vpop.xlane.xlu0 %2731
        %v2733 = vadd.f32 %v2618, %v2620
        %2734 = vadd.xlane.f32.xlu0 %v2733
        %v2735 = vpop.xlane.xlu0 %2734
        %v2736 = vadd.f32 %v2622, %v2624
        %2737 = vadd.xlane.f32.xlu0 %v2736
        %v2738 = vpop.xlane.xlu0 %2737
        %v2739 = vadd.f32 %v2626, %v2628
        %2740 = vadd.xlane.f32.xlu0 %v2739
        %v2741 = vpop.xlane.xlu0 %2740
        %v2742 = vadd.f32 %v2630, %v2632
        %2743 = vadd.xlane.f32.xlu0 %v2742
        %v2744 = vpop.xlane.xlu0 %2743
        %v2745 = vadd.f32 %v2634, %v2636
        %2746 = vadd.xlane.f32.xlu0 %v2745
        %v2747 = vpop.xlane.xlu0 %2746
        %v2748 = vadd.f32 %v2638, %v2640
        %2749 = vadd.xlane.f32.xlu0 %v2748
        %v2750 = vpop.xlane.xlu0 %2749
        %v2751 = vadd.f32 %v2642, %v2644
        %2752 = vadd.xlane.f32.xlu0 %v2751
        %v2753 = vpop.xlane.xlu0 %2752
        %v2754 = vadd.f32 %v2646, %v2648
        %2755 = vadd.xlane.f32.xlu0 %v2754
        %v2756 = vpop.xlane.xlu0 %2755
        %v2757 = vadd.f32 %v2650, %v2652
        %2758 = vadd.xlane.f32.xlu0 %v2757
        %v2759 = vpop.xlane.xlu0 %2758
        %v2760 = vadd.f32 %v2654, %v2656
        %2761 = vadd.xlane.f32.xlu0 %v2760
        %v2762 = vpop.xlane.xlu0 %2761
        %v2763 = vadd.f32 %v2658, %v2660
        %2764 = vadd.xlane.f32.xlu0 %v2763
        %v2765 = vpop.xlane.xlu0 %2764
        %v2766 = vadd.f32 %v2662, %v2664
        %2767 = vadd.xlane.f32.xlu0 %v2766
        %v2768 = vpop.xlane.xlu0 %2767
        %v2769 = vadd.f32 %v2666, %v2668
        %2770 = vadd.xlane.f32.xlu0 %v2769
        %v2771 = vpop.xlane.xlu0 %2770
        %v2772 = vadd.f32 %v2670, %v2672
        %2773 = vadd.xlane.f32.xlu0 %v2772
        %v2774 = vpop.xlane.xlu0 %2773
        %v2775 = vadd.f32 %v2674, %v2676
        %2776 = vadd.xlane.f32.xlu0 %v2775
        %v2777 = vpop.xlane.xlu0 %2776
        %v2778 = vadd.f32 %v2678, %v2680
        %2779 = vadd.xlane.f32.xlu0 %v2778
        %v2780 = vpop.xlane.xlu0 %2779
        %v2781 = vadd.f32 %v2682, %v2684
        %2782 = vadd.xlane.f32.xlu0 %v2781
        %v2783 = vpop.xlane.xlu0 %2782
        %v2784 = vadd.f32 %v2686, %v2688
        %2785 = vadd.xlane.f32.xlu0 %v2784
        %v2786 = vpop.xlane.xlu0 %2785
        %v2787 = vadd.f32 %v2690, %v2692
        %2788 = vadd.xlane.f32.xlu0 %v2787
        %v2789 = vpop.xlane.xlu0 %2788
        %v2790 = vadd.f32 %v2694, %v2696
        %2791 = vadd.xlane.f32.xlu0 %v2790
        %v2792 = vpop.xlane.xlu0 %2791
        %v2793 = vrcp.pop %v2699
        %v2794 = vrcp.pop %v2702
        %v2795 = vrcp.pop %v2705
        %v2796 = vrcp.pop %v2708
        %v2797 = vrcp.pop %v2711
        %v2798 = vrcp.pop %v2714
        %v2799 = vrcp.pop %v2717
        %v2800 = vrcp.pop %v2720
        %v2801 = vrcp.pop %v2723
        %v2802 = vrcp.pop %v2726
        %v2803 = vrcp.pop %v2729
        %v2804 = vrcp.pop %v2732
        %v2805 = vrcp.pop %v2735
        %v2806 = vrcp.pop %v2738
        %v2807 = vrcp.pop %v2741
        %v2808 = vrcp.pop %v2744
        %v2809 = vrcp.pop %v2747
        %v2810 = vrcp.pop %v2750
        %v2811 = vrcp.pop %v2753
        %v2812 = vrcp.pop %v2756
        %v2813 = vrcp.pop %v2759
        %v2814 = vrcp.pop %v2762
        %v2815 = vrcp.pop %v2765
        %v2816 = vrcp.pop %v2768
        %v2817 = vrcp.pop %v2771
        %v2818 = vrcp.pop %v2774
        %v2819 = vrcp.pop %v2777
        %v2820 = vrcp.pop %v2780
        %v2821 = vrcp.pop %v2783
        %v2822 = vrcp.pop %v2786
        %v2823 = vrcp.pop %v2789
        %v2824 = vrcp.pop %v2792
        %v2825 = vmul.f32 %v2570, %v2793
        %v2826 = vmul.f32 %v2572, %v2793
        %v2827 = vmul.f32 %v2574, %v2794
        %v2828 = vmul.f32 %v2576, %v2794
        %v2829 = vmul.f32 %v2578, %v2795
        %v2830 = vmul.f32 %v2580, %v2795
        %v2831 = vmul.f32 %v2582, %v2796
        %v2832 = vmul.f32 %v2584, %v2796
        %v2833 = vmul.f32 %v2586, %v2797
        %v2834 = vmul.f32 %v2588, %v2797
        %v2835 = vmul.f32 %v2590, %v2798
        %v2836 = vmul.f32 %v2592, %v2798
        %v2837 = vmul.f32 %v2594, %v2799
        %v2838 = vmul.f32 %v2596, %v2799
        %v2839 = vmul.f32 %v2598, %v2800
        %v2840 = vmul.f32 %v2600, %v2800
        %v2841 = vmul.f32 %v2602, %v2801
        %v2842 = vmul.f32 %v2604, %v2801
        %v2843 = vmul.f32 %v2606, %v2802
        %v2844 = vmul.f32 %v2608, %v2802
        %v2845 = vmul.f32 %v2610, %v2803
        %v2846 = vmul.f32 %v2612, %v2803
        %v2847 = vmul.f32 %v2614, %v2804
        %v2848 = vmul.f32 %v2616, %v2804
        %v2849 = vmul.f32 %v2618, %v2805
        %v2850 = vmul.f32 %v2620, %v2805
        %v2851 = vmul.f32 %v2622, %v2806
        %v2852 = vmul.f32 %v2624, %v2806
        %v2853 = vmul.f32 %v2626, %v2807
        %v2854 = vmul.f32 %v2628, %v2807
        %v2855 = vmul.f32 %v2630, %v2808
        %v2856 = vmul.f32 %v2632, %v2808
        %v2857 = vmul.f32 %v2634, %v2809
        %v2858 = vmul.f32 %v2636, %v2809
        %v2859 = vmul.f32 %v2638, %v2810
        %v2860 = vmul.f32 %v2640, %v2810
        %v2861 = vmul.f32 %v2642, %v2811
        %v2862 = vmul.f32 %v2644, %v2811
        %v2863 = vmul.f32 %v2646, %v2812
        %v2864 = vmul.f32 %v2648, %v2812
        %v2865 = vmul.f32 %v2650, %v2813
        %v2866 = vmul.f32 %v2652, %v2813
        %v2867 = vmul.f32 %v2654, %v2814
        %v2868 = vmul.f32 %v2656, %v2814
        %v2869 = vmul.f32 %v2658, %v2815
        %v2870 = vmul.f32 %v2660, %v2815
        %v2871 = vmul.f32 %v2662, %v2816
        %v2872 = vmul.f32 %v2664, %v2816
        %v2873 = vmul.f32 %v2666, %v2817
        %v2874 = vmul.f32 %v2668, %v2817
        %v2875 = vmul.f32 %v2670, %v2818
        %v2876 = vmul.f32 %v2672, %v2818
        %v2877 = vmul.f32 %v2674, %v2819
        %v2878 = vmul.f32 %v2676, %v2819
        %v2879 = vmul.f32 %v2678, %v2820
        %v2880 = vmul.f32 %v2680, %v2820
        %v2881 = vmul.f32 %v2682, %v2821
        %v2882 = vmul.f32 %v2684, %v2821
        %v2883 = vmul.f32 %v2686, %v2822
        %v2884 = vmul.f32 %v2688, %v2822
        %v2885 = vmul.f32 %v2690, %v2823
        %v2886 = vmul.f32 %v2692, %v2823
        %v2887 = vmul.f32 %v2694, %v2824
        %v2888 = vmul.f32 %v2696, %v2824
        %2889 = vmatpush.msra.mxu0 %v1940
        %2890 = vmatpush.msra.mxu0 %v1937
        %2891 = vmatpush.msra.mxu0 %v1934
        %2892 = vmatpush.msra.mxu0 %v1931
        %2893 = vmatpush.msra.mxu0 %v1928
        %2894 = vmatpush.msra.mxu0 %v1925
        %2895 = vmatpush.msra.mxu0 %v1922
        %2896 = vmatpush.msra.mxu0 %v1919
        %2897 = vmatpush.msra.mxu0 %v1916
        %2898 = vmatpush.msra.mxu0 %v1913
        %2899 = vmatpush.msra.mxu0 %v1910
        %2900 = vmatpush.msra.mxu0 %v1907
        %2901 = vmatpush.msra.mxu0 %v1904
        %2902 = vmatpush.msra.mxu0 %v1901
        %2903 = vmatpush.msra.mxu0 %v1898
        %2904 = vmatpush.msra.mxu0 %v1895
        %2905 = vmatmul.f32.gmra.mxu0 %v2825
        %v2906 = vpop.f32.mrf.mxu0
        %v2907 = vadd.f32 0.0, %v2906
        %2908 = vmatmul.f32.gmra.mxu0 %v2827
        %v2909 = vpop.f32.mrf.mxu0
        %v2910 = vadd.f32 0.0, %v2909
        %2911 = vmatmul.f32.gmra.mxu0 %v2829
        %v2912 = vpop.f32.mrf.mxu0
        %v2913 = vadd.f32 0.0, %v2912
        %2914 = vmatmul.f32.gmra.mxu0 %v2831
        %v2915 = vpop.f32.mrf.mxu0
        %v2916 = vadd.f32 0.0, %v2915
        %2917 = vmatmul.f32.gmra.mxu0 %v2833
        %v2918 = vpop.f32.mrf.mxu0
        %v2919 = vadd.f32 0.0, %v2918
        %2920 = vmatmul.f32.gmra.mxu0 %v2835
        %v2921 = vpop.f32.mrf.mxu0
        %v2922 = vadd.f32 0.0, %v2921
        %2923 = vmatmul.f32.gmra.mxu0 %v2837
        %v2924 = vpop.f32.mrf.mxu0
        %v2925 = vadd.f32 0.0, %v2924
        %2926 = vmatmul.f32.gmra.mxu0 %v2839
        %v2927 = vpop.f32.mrf.mxu0
        %v2928 = vadd.f32 0.0, %v2927
        %2929 = vmatmul.f32.gmra.mxu0 %v2841
        %v2930 = vpop.f32.mrf.mxu0
        %v2931 = vadd.f32 0.0, %v2930
        %2932 = vmatmul.f32.gmra.mxu0 %v2843
        %v2933 = vpop.f32.mrf.mxu0
        %v2934 = vadd.f32 0.0, %v2933
        %2935 = vmatmul.f32.gmra.mxu0 %v2845
        %v2936 = vpop.f32.mrf.mxu0
        %v2937 = vadd.f32 0.0, %v2936
        %2938 = vmatmul.f32.gmra.mxu0 %v2847
        %v2939 = vpop.f32.mrf.mxu0
        %v2940 = vadd.f32 0.0, %v2939
        %2941 = vmatmul.f32.gmra.mxu0 %v2849
        %v2942 = vpop.f32.mrf.mxu0
        %v2943 = vadd.f32 0.0, %v2942
        %2944 = vmatmul.f32.gmra.mxu0 %v2851
        %v2945 = vpop.f32.mrf.mxu0
        %v2946 = vadd.f32 0.0, %v2945
        %2947 = vmatmul.f32.gmra.mxu0 %v2853
        %v2948 = vpop.f32.mrf.mxu0
        %v2949 = vadd.f32 0.0, %v2948
        %2950 = vmatmul.f32.gmra.mxu0 %v2855
        %v2951 = vpop.f32.mrf.mxu0
        %v2952 = vadd.f32 0.0, %v2951
        %2953 = vmatmul.f32.gmra.mxu0 %v2857
        %v2954 = vpop.f32.mrf.mxu0
        %v2955 = vadd.f32 0.0, %v2954
        %2956 = vmatmul.f32.gmra.mxu0 %v2859
        %v2957 = vpop.f32.mrf.mxu0
        %v2958 = vadd.f32 0.0, %v2957
        %2959 = vmatmul.f32.gmra.mxu0 %v2861
        %v2960 = vpop.f32.mrf.mxu0
        %v2961 = vadd.f32 0.0, %v2960
        %2962 = vmatmul.f32.gmra.mxu0 %v2863
        %v2963 = vpop.f32.mrf.mxu0
        %v2964 = vadd.f32 0.0, %v2963
        %2965 = vmatmul.f32.gmra.mxu0 %v2865
        %v2966 = vpop.f32.mrf.mxu0
        %v2967 = vadd.f32 0.0, %v2966
        %2968 = vmatmul.f32.gmra.mxu0 %v2867
        %v2969 = vpop.f32.mrf.mxu0
        %v2970 = vadd.f32 0.0, %v2969
        %2971 = vmatmul.f32.gmra.mxu0 %v2869
        %v2972 = vpop.f32.mrf.mxu0
        %v2973 = vadd.f32 0.0, %v2972
        %2974 = vmatmul.f32.gmra.mxu0 %v2871
        %v2975 = vpop.f32.mrf.mxu0
        %v2976 = vadd.f32 0.0, %v2975
        %2977 = vmatmul.f32.gmra.mxu0 %v2873
        %v2978 = vpop.f32.mrf.mxu0
        %v2979 = vadd.f32 0.0, %v2978
        %2980 = vmatmul.f32.gmra.mxu0 %v2875
        %v2981 = vpop.f32.mrf.mxu0
        %v2982 = vadd.f32 0.0, %v2981
        %2983 = vmatmul.f32.gmra.mxu0 %v2877
        %v2984 = vpop.f32.mrf.mxu0
        %v2985 = vadd.f32 0.0, %v2984
        %2986 = vmatmul.f32.gmra.mxu0 %v2879
        %v2987 = vpop.f32.mrf.mxu0
        %v2988 = vadd.f32 0.0, %v2987
        %2989 = vmatmul.f32.gmra.mxu0 %v2881
        %v2990 = vpop.f32.mrf.mxu0
        %v2991 = vadd.f32 0.0, %v2990
        %2992 = vmatmul.f32.gmra.mxu0 %v2883
        %v2993 = vpop.f32.mrf.mxu0
        %v2994 = vadd.f32 0.0, %v2993
        %2995 = vmatmul.f32.gmra.mxu0 %v2885
        %v2996 = vpop.f32.mrf.mxu0
        %v2997 = vadd.f32 0.0, %v2996
        %2998 = vmatmul.f32.gmra.mxu0 %v2887
        %v2999 = vpop.f32.mrf.mxu0
        %v3000 = vadd.f32 0.0, %v2999
        %3001 = vdwg.mxu0
        %3002 = vmatpush.msra.mxu0 %v1988
        %3003 = vmatpush.msra.mxu0 %v1985
        %3004 = vmatpush.msra.mxu0 %v1982
        %3005 = vmatpush.msra.mxu0 %v1979
        %3006 = vmatpush.msra.mxu0 %v1976
        %3007 = vmatpush.msra.mxu0 %v1973
        %3008 = vmatpush.msra.mxu0 %v1970
        %3009 = vmatpush.msra.mxu0 %v1967
        %3010 = vmatpush.msra.mxu0 %v1964
        %3011 = vmatpush.msra.mxu0 %v1961
        %3012 = vmatpush.msra.mxu0 %v1958
        %3013 = vmatpush.msra.mxu0 %v1955
        %3014 = vmatpush.msra.mxu0 %v1952
        %3015 = vmatpush.msra.mxu0 %v1949
        %3016 = vmatpush.msra.mxu0 %v1946
        %3017 = vmatpush.msra.mxu0 %v1943
        %3018 = vmatmul.f32.gmra.mxu0 %v2826
        %v3019 = vpop.f32.mrf.mxu0
        %v3020 = vadd.f32 %v2907, %v3019
        %3021 = vmatmul.f32.gmra.mxu0 %v2828
        %v3022 = vpop.f32.mrf.mxu0
        %v3023 = vadd.f32 %v2910, %v3022
        %3024 = vmatmul.f32.gmra.mxu0 %v2830
        %v3025 = vpop.f32.mrf.mxu0
        %v3026 = vadd.f32 %v2913, %v3025
        %3027 = vmatmul.f32.gmra.mxu0 %v2832
        %v3028 = vpop.f32.mrf.mxu0
        %v3029 = vadd.f32 %v2916, %v3028
        %3030 = vmatmul.f32.gmra.mxu0 %v2834
        %v3031 = vpop.f32.mrf.mxu0
        %v3032 = vadd.f32 %v2919, %v3031
        %3033 = vmatmul.f32.gmra.mxu0 %v2836
        %v3034 = vpop.f32.mrf.mxu0
        %v3035 = vadd.f32 %v2922, %v3034
        %3036 = vmatmul.f32.gmra.mxu0 %v2838
        %v3037 = vpop.f32.mrf.mxu0
        %v3038 = vadd.f32 %v2925, %v3037
        %3039 = vmatmul.f32.gmra.mxu0 %v2840
        %v3040 = vpop.f32.mrf.mxu0
        %v3041 = vadd.f32 %v2928, %v3040
        %3042 = vmatmul.f32.gmra.mxu0 %v2842
        %v3043 = vpop.f32.mrf.mxu0
        %v3044 = vadd.f32 %v2931, %v3043
        %3045 = vmatmul.f32.gmra.mxu0 %v2844
        %v3046 = vpop.f32.mrf.mxu0
        %v3047 = vadd.f32 %v2934, %v3046
        %3048 = vmatmul.f32.gmra.mxu0 %v2846
        %v3049 = vpop.f32.mrf.mxu0
        %v3050 = vadd.f32 %v2937, %v3049
        %3051 = vmatmul.f32.gmra.mxu0 %v2848
        %v3052 = vpop.f32.mrf.mxu0
        %v3053 = vadd.f32 %v2940, %v3052
        %3054 = vmatmul.f32.gmra.mxu0 %v2850
        %v3055 = vpop.f32.mrf.mxu0
        %v3056 = vadd.f32 %v2943, %v3055
        %3057 = vmatmul.f32.gmra.mxu0 %v2852
        %v3058 = vpop.f32.mrf.mxu0
        %v3059 = vadd.f32 %v2946, %v3058
        %3060 = vmatmul.f32.gmra.mxu0 %v2854
        %v3061 = vpop.f32.mrf.mxu0
        %v3062 = vadd.f32 %v2949, %v3061
        %3063 = vmatmul.f32.gmra.mxu0 %v2856
        %v3064 = vpop.f32.mrf.mxu0
        %v3065 = vadd.f32 %v2952, %v3064
        %3066 = vmatmul.f32.gmra.mxu0 %v2858
        %v3067 = vpop.f32.mrf.mxu0
        %v3068 = vadd.f32 %v2955, %v3067
        %3069 = vmatmul.f32.gmra.mxu0 %v2860
        %v3070 = vpop.f32.mrf.mxu0
        %v3071 = vadd.f32 %v2958, %v3070
        %3072 = vmatmul.f32.gmra.mxu0 %v2862
        %v3073 = vpop.f32.mrf.mxu0
        %v3074 = vadd.f32 %v2961, %v3073
        %3075 = vmatmul.f32.gmra.mxu0 %v2864
        %v3076 = vpop.f32.mrf.mxu0
        %v3077 = vadd.f32 %v2964, %v3076
        %3078 = vmatmul.f32.gmra.mxu0 %v2866
        %v3079 = vpop.f32.mrf.mxu0
        %v3080 = vadd.f32 %v2967, %v3079
        %3081 = vmatmul.f32.gmra.mxu0 %v2868
        %v3082 = vpop.f32.mrf.mxu0
        %v3083 = vadd.f32 %v2970, %v3082
        %3084 = vmatmul.f32.gmra.mxu0 %v2870
        %v3085 = vpop.f32.mrf.mxu0
        %v3086 = vadd.f32 %v2973, %v3085
        %3087 = vmatmul.f32.gmra.mxu0 %v2872
        %v3088 = vpop.f32.mrf.mxu0
        %v3089 = vadd.f32 %v2976, %v3088
        %3090 = vmatmul.f32.gmra.mxu0 %v2874
        %v3091 = vpop.f32.mrf.mxu0
        %v3092 = vadd.f32 %v2979, %v3091
        %3093 = vmatmul.f32.gmra.mxu0 %v2876
        %v3094 = vpop.f32.mrf.mxu0
        %v3095 = vadd.f32 %v2982, %v3094
        %3096 = vmatmul.f32.gmra.mxu0 %v2878
        %v3097 = vpop.f32.mrf.mxu0
        %v3098 = vadd.f32 %v2985, %v3097
        %3099 = vmatmul.f32.gmra.mxu0 %v2880
        %v3100 = vpop.f32.mrf.mxu0
        %v3101 = vadd.f32 %v2988, %v3100
        %3102 = vmatmul.f32.gmra.mxu0 %v2882
        %v3103 = vpop.f32.mrf.mxu0
        %v3104 = vadd.f32 %v2991, %v3103
        %3105 = vmatmul.f32.gmra.mxu0 %v2884
        %v3106 = vpop.f32.mrf.mxu0
        %v3107 = vadd.f32 %v2994, %v3106
        %3108 = vmatmul.f32.gmra.mxu0 %v2886
        %v3109 = vpop.f32.mrf.mxu0
        %v3110 = vadd.f32 %v2997, %v3109
        %3111 = vmatmul.f32.gmra.mxu0 %v2888
        %v3112 = vpop.f32.mrf.mxu0
        %v3113 = vadd.f32 %v3000, %v3112
        %3114 = vdwg.mxu0
        %v3115 = vld [vmem:[#allocation3] sm:$0x1]
        %v3117 = vperm.slane %v3115, 0
        %3118 = vset.pattern.permute.xlu0 0
        %3119 = vperm.xlu0 %3118, %v3117
        %v3120 = vpop.permute.xlu0 %3119
        %v3122 = vmul.f32 %v3120, %v3020
        %v3123 = vmul.f32 %v3120, %v3023
        %v3124 = vmul.f32 %v3120, %v3026
        %v3125 = vmul.f32 %v3120, %v3029
        %v3126 = vmul.f32 %v3120, %v3032
        %v3127 = vmul.f32 %v3120, %v3035
        %v3128 = vmul.f32 %v3120, %v3038
        %v3129 = vmul.f32 %v3120, %v3041
        %v3130 = vmul.f32 %v3120, %v3044
        %v3131 = vmul.f32 %v3120, %v3047
        %v3132 = vmul.f32 %v3120, %v3050
        %v3133 = vmul.f32 %v3120, %v3053
        %v3134 = vmul.f32 %v3120, %v3056
        %v3135 = vmul.f32 %v3120, %v3059
        %v3136 = vmul.f32 %v3120, %v3062
        %v3137 = vmul.f32 %v3120, %v3065
        %v3138 = vmul.f32 %v3120, %v3068
        %v3139 = vmul.f32 %v3120, %v3071
        %v3140 = vmul.f32 %v3120, %v3074
        %v3141 = vmul.f32 %v3120, %v3077
        %v3142 = vmul.f32 %v3120, %v3080
        %v3143 = vmul.f32 %v3120, %v3083
        %v3144 = vmul.f32 %v3120, %v3086
        %v3145 = vmul.f32 %v3120, %v3089
        %v3146 = vmul.f32 %v3120, %v3092
        %v3147 = vmul.f32 %v3120, %v3095
        %v3148 = vmul.f32 %v3120, %v3098
        %v3149 = vmul.f32 %v3120, %v3101
        %v3150 = vmul.f32 %v3120, %v3104
        %v3151 = vmul.f32 %v3120, %v3107
        %v3152 = vmul.f32 %v3120, %v3110
        %v3153 = vmul.f32 %v3120, %v3113
        %v3154 = vadd.f32 %v3122, %v1121
        %v3155 = vadd.f32 %v3123, %v1122
        %v3156 = vadd.f32 %v3124, %v1123
        %v3157 = vadd.f32 %v3125, %v1124
        %v3158 = vadd.f32 %v3126, %v1125
        %v3159 = vadd.f32 %v3127, %v1126
        %v3160 = vadd.f32 %v3128, %v1127
        %v3161 = vadd.f32 %v3129, %v1128
        %v3162 = vadd.f32 %v3130, %v1129
        %v3163 = vadd.f32 %v3131, %v1130
        %v3164 = vadd.f32 %v3132, %v1131
        %v3165 = vadd.f32 %v3133, %v1132
        %v3166 = vadd.f32 %v3134, %v1133
        %v3167 = vadd.f32 %v3135, %v1134
        %v3168 = vadd.f32 %v3136, %v1135
        %v3169 = vadd.f32 %v3137, %v1136
        %v3170 = vadd.f32 %v3138, %v1137
        %v3171 = vadd.f32 %v3139, %v1138
        %v3172 = vadd.f32 %v3140, %v1139
        %v3173 = vadd.f32 %v3141, %v1140
        %v3174 = vadd.f32 %v3142, %v1141
        %v3175 = vadd.f32 %v3143, %v1142
        %v3176 = vadd.f32 %v3144, %v1143
        %v3177 = vadd.f32 %v3145, %v1144
        %v3178 = vadd.f32 %v3146, %v1145
        %v3179 = vadd.f32 %v3147, %v1146
        %v3180 = vadd.f32 %v3148, %v1147
        %v3181 = vadd.f32 %v3149, %v1148
        %v3182 = vadd.f32 %v3150, %v1149
        %v3183 = vadd.f32 %v3151, %v1150
        %v3184 = vadd.f32 %v3152, %v1151
        %v3185 = vadd.f32 %v3153, %v1152
        %v3186 = vmul.f32 %v1595, %v3154
        %v3187 = vmul.f32 %v1596, %v3155
        %v3188 = vmul.f32 %v1597, %v3156
        %v3189 = vmul.f32 %v1598, %v3157
        %v3190 = vmul.f32 %v1599, %v3158
        %v3191 = vmul.f32 %v1600, %v3159
        %v3192 = vmul.f32 %v1601, %v3160
        %v3193 = vmul.f32 %v1602, %v3161
        %v3194 = vmul.f32 %v1603, %v3162
        %v3195 = vmul.f32 %v1604, %v3163
        %v3196 = vmul.f32 %v1605, %v3164
        %v3197 = vmul.f32 %v1606, %v3165
        %v3198 = vmul.f32 %v1607, %v3166
        %v3199 = vmul.f32 %v1608, %v3167
        %v3200 = vmul.f32 %v1609, %v3168
        %v3201 = vmul.f32 %v1610, %v3169
        %v3202 = vmul.f32 %v1611, %v3170
        %v3203 = vmul.f32 %v1612, %v3171
        %v3204 = vmul.f32 %v1613, %v3172
        %v3205 = vmul.f32 %v1614, %v3173
        %v3206 = vmul.f32 %v1615, %v3174
        %v3207 = vmul.f32 %v1616, %v3175
        %v3208 = vmul.f32 %v1617, %v3176
        %v3209 = vmul.f32 %v1618, %v3177
        %v3210 = vmul.f32 %v1619, %v3178
        %v3211 = vmul.f32 %v1620, %v3179
        %v3212 = vmul.f32 %v1621, %v3180
        %v3213 = vmul.f32 %v1622, %v3181
        %v3214 = vmul.f32 %v1623, %v3182
        %v3215 = vmul.f32 %v1624, %v3183
        %v3216 = vmul.f32 %v1625, %v3184
        %v3217 = vmul.f32 %v1626, %v3185
        %v3218 = vld [vmem:[%s12] sm:$0xff]
        %v3219 = vld [vmem:[%s12 + $0x8] sm:$0xff]
        %v3220 = vld [vmem:[%s12 + $0x10] sm:$0xff]
        %v3221 = vld [vmem:[%s12 + $0x18] sm:$0xff]
        %v3222 = vld [vmem:[#allocation2] sm:$0x1]
        %v3224 = vperm.slane %v3222, 0
        %v3227 = vsel %vm662, %v3186, 0
        %v3230 = vsel %vm662, %v3187, 0
        %v3233 = vsel %vm662, %v3188, 0
        %v3236 = vsel %vm662, %v3189, 0
        %v3239 = vsel %vm662, %v3190, 0
        %v3242 = vsel %vm662, %v3191, 0
        %v3245 = vsel %vm662, %v3192, 0
        %v3248 = vsel %vm662, %v3193, 0
        %v3251 = vsel %vm662, %v3194, 0
        %v3254 = vsel %vm662, %v3195, 0
        %v3257 = vsel %vm662, %v3196, 0
        %v3260 = vsel %vm662, %v3197, 0
        %v3263 = vsel %vm662, %v3198, 0
        %v3266 = vsel %vm662, %v3199, 0
        %v3269 = vsel %vm662, %v3200, 0
        %v3272 = vsel %vm662, %v3201, 0
        %v3275 = vsel %vm662, %v3202, 0
        %v3278 = vsel %vm662, %v3203, 0
        %v3281 = vsel %vm662, %v3204, 0
        %v3284 = vsel %vm662, %v3205, 0
        %v3287 = vsel %vm662, %v3206, 0
        %v3290 = vsel %vm662, %v3207, 0
        %v3293 = vsel %vm662, %v3208, 0
        %v3296 = vsel %vm662, %v3209, 0
        %v3299 = vsel %vm662, %v3210, 0
        %v3302 = vsel %vm662, %v3211, 0
        %v3305 = vsel %vm662, %v3212, 0
        %v3308 = vsel %vm662, %v3213, 0
        %v3311 = vsel %vm662, %v3214, 0
        %v3314 = vsel %vm662, %v3215, 0
        %v3317 = vsel %vm662, %v3216, 0
        %v3320 = vsel %vm662, %v3217, 0
        %3322 = vmatpush.msra.mxu0 0.0
        %3323 = vmatpush.msra.mxu0 0.0
        %3324 = vmatpush.msra.mxu0 0.0
        %3325 = vmatpush.msra.mxu0 0.0
        %3326 = vmatpush.msra.mxu0 0.0
        %3327 = vmatpush.msra.mxu0 0.0
        %3328 = vmatpush.msra.mxu0 0.0
        %3329 = vmatpush.msra.mxu0 0.0
        %3330 = vmatpush.msra.mxu0 0.0
        %3331 = vmatpush.msra.mxu0 0.0
        %3332 = vmatpush.msra.mxu0 0.0
        %3333 = vmatpush.msra.mxu0 0.0
        %3334 = vmatpush.msra.mxu0 %v3221
        %3335 = vmatpush.msra.mxu0 %v3220
        %3336 = vmatpush.msra.mxu0 %v3219
        %3337 = vmatpush.msra.mxu0 %v3218
        %3338 = vmatmul.f32.gmra.mxu0 %v3227
        %v3339 = vpop.f32.mrf.mxu0
        %v3340 = vadd.f32 %v3224, %v3339
        %3341 = vmatmul.f32.gmra.mxu0 %v3230
        %v3342 = vpop.f32.mrf.mxu0
        %v3343 = vadd.f32 %v3224, %v3342
        %3344 = vmatmul.f32.gmra.mxu0 %v3233
        %v3345 = vpop.f32.mrf.mxu0
        %v3346 = vadd.f32 %v3224, %v3345
        %3347 = vmatmul.f32.gmra.mxu0 %v3236
        %v3348 = vpop.f32.mrf.mxu0
        %v3349 = vadd.f32 %v3224, %v3348
        %3350 = vmatmul.f32.gmra.mxu0 %v3239
        %v3351 = vpop.f32.mrf.mxu0
        %v3352 = vadd.f32 %v3224, %v3351
        %3353 = vmatmul.f32.gmra.mxu0 %v3242
        %v3354 = vpop.f32.mrf.mxu0
        %v3355 = vadd.f32 %v3224, %v3354
        %3356 = vmatmul.f32.gmra.mxu0 %v3245
        %v3357 = vpop.f32.mrf.mxu0
        %v3358 = vadd.f32 %v3224, %v3357
        %3359 = vmatmul.f32.gmra.mxu0 %v3248
        %v3360 = vpop.f32.mrf.mxu0
        %v3361 = vadd.f32 %v3224, %v3360
        %3362 = vmatmul.f32.gmra.mxu0 %v3251
        %v3363 = vpop.f32.mrf.mxu0
        %v3364 = vadd.f32 %v3224, %v3363
        %3365 = vmatmul.f32.gmra.mxu0 %v3254
        %v3366 = vpop.f32.mrf.mxu0
        %v3367 = vadd.f32 %v3224, %v3366
        %3368 = vmatmul.f32.gmra.mxu0 %v3257
        %v3369 = vpop.f32.mrf.mxu0
        %v3370 = vadd.f32 %v3224, %v3369
        %3371 = vmatmul.f32.gmra.mxu0 %v3260
        %v3372 = vpop.f32.mrf.mxu0
        %v3373 = vadd.f32 %v3224, %v3372
        %3374 = vmatmul.f32.gmra.mxu0 %v3263
        %v3375 = vpop.f32.mrf.mxu0
        %v3376 = vadd.f32 %v3224, %v3375
        %3377 = vmatmul.f32.gmra.mxu0 %v3266
        %v3378 = vpop.f32.mrf.mxu0
        %v3379 = vadd.f32 %v3224, %v3378
        %3380 = vmatmul.f32.gmra.mxu0 %v3269
        %v3381 = vpop.f32.mrf.mxu0
        %v3382 = vadd.f32 %v3224, %v3381
        %3383 = vmatmul.f32.gmra.mxu0 %v3272
        %v3384 = vpop.f32.mrf.mxu0
        %v3385 = vadd.f32 %v3224, %v3384
        %3386 = vmatmul.f32.gmra.mxu0 %v3275
        %v3387 = vpop.f32.mrf.mxu0
        %v3388 = vadd.f32 %v3224, %v3387
        %3389 = vmatmul.f32.gmra.mxu0 %v3278
        %v3390 = vpop.f32.mrf.mxu0
        %v3391 = vadd.f32 %v3224, %v3390
        %3392 = vmatmul.f32.gmra.mxu0 %v3281
        %v3393 = vpop.f32.mrf.mxu0
        %v3394 = vadd.f32 %v3224, %v3393
        %3395 = vmatmul.f32.gmra.mxu0 %v3284
        %v3396 = vpop.f32.mrf.mxu0
        %v3397 = vadd.f32 %v3224, %v3396
        %3398 = vmatmul.f32.gmra.mxu0 %v3287
        %v3399 = vpop.f32.mrf.mxu0
        %v3400 = vadd.f32 %v3224, %v3399
        %3401 = vmatmul.f32.gmra.mxu0 %v3290
        %v3402 = vpop.f32.mrf.mxu0
        %v3403 = vadd.f32 %v3224, %v3402
        %3404 = vmatmul.f32.gmra.mxu0 %v3293
        %v3405 = vpop.f32.mrf.mxu0
        %v3406 = vadd.f32 %v3224, %v3405
        %3407 = vmatmul.f32.gmra.mxu0 %v3296
        %v3408 = vpop.f32.mrf.mxu0
        %v3409 = vadd.f32 %v3224, %v3408
        %3410 = vmatmul.f32.gmra.mxu0 %v3299
        %v3411 = vpop.f32.mrf.mxu0
        %v3412 = vadd.f32 %v3224, %v3411
        %3413 = vmatmul.f32.gmra.mxu0 %v3302
        %v3414 = vpop.f32.mrf.mxu0
        %v3415 = vadd.f32 %v3224, %v3414
        %3416 = vmatmul.f32.gmra.mxu0 %v3305
        %v3417 = vpop.f32.mrf.mxu0
        %v3418 = vadd.f32 %v3224, %v3417
        %3419 = vmatmul.f32.gmra.mxu0 %v3308
        %v3420 = vpop.f32.mrf.mxu0
        %v3421 = vadd.f32 %v3224, %v3420
        %3422 = vmatmul.f32.gmra.mxu0 %v3311
        %v3423 = vpop.f32.mrf.mxu0
        %v3424 = vadd.f32 %v3224, %v3423
        %3425 = vmatmul.f32.gmra.mxu0 %v3314
        %v3426 = vpop.f32.mrf.mxu0
        %v3427 = vadd.f32 %v3224, %v3426
        %3428 = vmatmul.f32.gmra.mxu0 %v3317
        %v3429 = vpop.f32.mrf.mxu0
        %v3430 = vadd.f32 %v3224, %v3429
        %3431 = vmatmul.f32.gmra.mxu0 %v3320
        %v3432 = vpop.f32.mrf.mxu0
        %v3433 = vadd.f32 %v3224, %v3432
        %3434 = vdwg.mxu0
        %v3435 = vsub.f32 0.0, %v3340
        %v3436 = vsub.f32 0.0, %v3343
        %v3437 = vsub.f32 0.0, %v3346
        %v3438 = vsub.f32 0.0, %v3349
        %v3439 = vsub.f32 0.0, %v3352
        %v3440 = vsub.f32 0.0, %v3355
        %v3441 = vsub.f32 0.0, %v3358
        %v3442 = vsub.f32 0.0, %v3361
        %v3443 = vsub.f32 0.0, %v3364
        %v3444 = vsub.f32 0.0, %v3367
        %v3445 = vsub.f32 0.0, %v3370
        %v3446 = vsub.f32 0.0, %v3373
        %v3447 = vsub.f32 0.0, %v3376
        %v3448 = vsub.f32 0.0, %v3379
        %v3449 = vsub.f32 0.0, %v3382
        %v3450 = vsub.f32 0.0, %v3385
        %v3451 = vsub.f32 0.0, %v3388
        %v3452 = vsub.f32 0.0, %v3391
        %v3453 = vsub.f32 0.0, %v3394
        %v3454 = vsub.f32 0.0, %v3397
        %v3455 = vsub.f32 0.0, %v3400
        %v3456 = vsub.f32 0.0, %v3403
        %v3457 = vsub.f32 0.0, %v3406
        %v3458 = vsub.f32 0.0, %v3409
        %v3459 = vsub.f32 0.0, %v3412
        %v3460 = vsub.f32 0.0, %v3415
        %v3461 = vsub.f32 0.0, %v3418
        %v3462 = vsub.f32 0.0, %v3421
        %v3463 = vsub.f32 0.0, %v3424
        %v3464 = vsub.f32 0.0, %v3427
        %v3465 = vsub.f32 0.0, %v3430
        %v3466 = vsub.f32 0.0, %v3433
        %v3467 = vmul.f32 %v3435, 1.442695
        %v3468 = vpow.pop %v3467
        %v3469 = vmul.f32 %v3436, 1.442695
        %v3470 = vpow.pop %v3469
        %v3471 = vmul.f32 %v3437, 1.442695
        %v3472 = vpow.pop %v3471
        %v3473 = vmul.f32 %v3438, 1.442695
        %v3474 = vpow.pop %v3473
        %v3475 = vmul.f32 %v3439, 1.442695
        %v3476 = vpow.pop %v3475
        %v3477 = vmul.f32 %v3440, 1.442695
        %v3478 = vpow.pop %v3477
        %v3479 = vmul.f32 %v3441, 1.442695
        %v3480 = vpow.pop %v3479
        %v3481 = vmul.f32 %v3442, 1.442695
        %v3482 = vpow.pop %v3481
        %v3483 = vmul.f32 %v3443, 1.442695
        %v3484 = vpow.pop %v3483
        %v3485 = vmul.f32 %v3444, 1.442695
        %v3486 = vpow.pop %v3485
        %v3487 = vmul.f32 %v3445, 1.442695
        %v3488 = vpow.pop %v3487
        %v3489 = vmul.f32 %v3446, 1.442695
        %v3490 = vpow.pop %v3489
        %v3491 = vmul.f32 %v3447, 1.442695
        %v3492 = vpow.pop %v3491
        %v3493 = vmul.f32 %v3448, 1.442695
        %v3494 = vpow.pop %v3493
        %v3495 = vmul.f32 %v3449, 1.442695
        %v3496 = vpow.pop %v3495
        %v3497 = vmul.f32 %v3450, 1.442695
        %v3498 = vpow.pop %v3497
        %v3499 = vmul.f32 %v3451, 1.442695
        %v3500 = vpow.pop %v3499
        %v3501 = vmul.f32 %v3452, 1.442695
        %v3502 = vpow.pop %v3501
        %v3503 = vmul.f32 %v3453, 1.442695
        %v3504 = vpow.pop %v3503
        %v3505 = vmul.f32 %v3454, 1.442695
        %v3506 = vpow.pop %v3505
        %v3507 = vmul.f32 %v3455, 1.442695
        %v3508 = vpow.pop %v3507
        %v3509 = vmul.f32 %v3456, 1.442695
        %v3510 = vpow.pop %v3509
        %v3511 = vmul.f32 %v3457, 1.442695
        %v3512 = vpow.pop %v3511
        %v3513 = vmul.f32 %v3458, 1.442695
        %v3514 = vpow.pop %v3513
        %v3515 = vmul.f32 %v3459, 1.442695
        %v3516 = vpow.pop %v3515
        %v3517 = vmul.f32 %v3460, 1.442695
        %v3518 = vpow.pop %v3517
        %v3519 = vmul.f32 %v3461, 1.442695
        %v3520 = vpow.pop %v3519
        %v3521 = vmul.f32 %v3462, 1.442695
        %v3522 = vpow.pop %v3521
        %v3523 = vmul.f32 %v3463, 1.442695
        %v3524 = vpow.pop %v3523
        %v3525 = vmul.f32 %v3464, 1.442695
        %v3526 = vpow.pop %v3525
        %v3527 = vmul.f32 %v3465, 1.442695
        %v3528 = vpow.pop %v3527
        %v3529 = vmul.f32 %v3466, 1.442695
        %v3530 = vpow.pop %v3529
        %v3531 = vadd.f32 %v3468, 1.0
        %v3532 = vadd.f32 %v3470, 1.0
        %v3533 = vadd.f32 %v3472, 1.0
        %v3534 = vadd.f32 %v3474, 1.0
        %v3535 = vadd.f32 %v3476, 1.0
        %v3536 = vadd.f32 %v3478, 1.0
        %v3537 = vadd.f32 %v3480, 1.0
        %v3538 = vadd.f32 %v3482, 1.0
        %v3539 = vadd.f32 %v3484, 1.0
        %v3540 = vadd.f32 %v3486, 1.0
        %v3541 = vadd.f32 %v3488, 1.0
        %v3542 = vadd.f32 %v3490, 1.0
        %v3543 = vadd.f32 %v3492, 1.0
        %v3544 = vadd.f32 %v3494, 1.0
        %v3545 = vadd.f32 %v3496, 1.0
        %v3546 = vadd.f32 %v3498, 1.0
        %v3547 = vadd.f32 %v3500, 1.0
        %v3548 = vadd.f32 %v3502, 1.0
        %v3549 = vadd.f32 %v3504, 1.0
        %v3550 = vadd.f32 %v3506, 1.0
        %v3551 = vadd.f32 %v3508, 1.0
        %v3552 = vadd.f32 %v3510, 1.0
        %v3553 = vadd.f32 %v3512, 1.0
        %v3554 = vadd.f32 %v3514, 1.0
        %v3555 = vadd.f32 %v3516, 1.0
        %v3556 = vadd.f32 %v3518, 1.0
        %v3557 = vadd.f32 %v3520, 1.0
        %v3558 = vadd.f32 %v3522, 1.0
        %v3559 = vadd.f32 %v3524, 1.0
        %v3560 = vadd.f32 %v3526, 1.0
        %v3561 = vadd.f32 %v3528, 1.0
        %v3562 = vadd.f32 %v3530, 1.0
        %v3563 = vrcp.pop %v3531
        %v3564 = vmul.f32 %v3531, %v3563
        %v3565 = vsub.f32 1.0, %v3564
        %v3566 = vmul.f32 %v3563, %v3565
        %v3567 = vadd.f32 %v3563, %v3566
        %vm3568 = vweird.f32 %v3531
        %vm3569 = vweird.f32 %v3563
        %vm3570 = vmor %vm3568, %vm3569
        %v3571 = vsel %vm3570, %v3563, %v3567
        %v3572 = vand.u32 2147483647, %v3531
        %vm3573 = vcmp.eq.f32.partialorder %v3572, 8.507059e+37
        %v3574 = vand.u32 %v3531, 2147483648
        %v3575 = vor.u32 1.1754944e-38, %v3574
        %v3576 = vsel %vm3573, %v3575, %v3571
        %v3577 = vmul.f32 1.0, %v3576
        %v3578 = vrcp.pop %v3532
        %v3579 = vmul.f32 %v3532, %v3578
        %v3580 = vsub.f32 1.0, %v3579
        %v3581 = vmul.f32 %v3578, %v3580
        %v3582 = vadd.f32 %v3578, %v3581
        %vm3583 = vweird.f32 %v3532
        %vm3584 = vweird.f32 %v3578
        %vm3585 = vmor %vm3583, %vm3584
        %v3586 = vsel %vm3585, %v3578, %v3582
        %v3587 = vand.u32 2147483647, %v3532
        %vm3588 = vcmp.eq.f32.partialorder %v3587, 8.507059e+37
        %v3589 = vand.u32 %v3532, 2147483648
        %v3590 = vor.u32 1.1754944e-38, %v3589
        %v3591 = vsel %vm3588, %v3590, %v3586
        %v3592 = vmul.f32 1.0, %v3591
        %v3593 = vrcp.pop %v3533
        %v3594 = vmul.f32 %v3533, %v3593
        %v3595 = vsub.f32 1.0, %v3594
        %v3596 = vmul.f32 %v3593, %v3595
        %v3597 = vadd.f32 %v3593, %v3596
        %vm3598 = vweird.f32 %v3533
        %vm3599 = vweird.f32 %v3593
        %vm3600 = vmor %vm3598, %vm3599
        %v3601 = vsel %vm3600, %v3593, %v3597
        %v3602 = vand.u32 2147483647, %v3533
        %vm3603 = vcmp.eq.f32.partialorder %v3602, 8.507059e+37
        %v3604 = vand.u32 %v3533, 2147483648
        %v3605 = vor.u32 1.1754944e-38, %v3604
        %v3606 = vsel %vm3603, %v3605, %v3601
        %v3607 = vmul.f32 1.0, %v3606
        %v3608 = vrcp.pop %v3534
        %v3609 = vmul.f32 %v3534, %v3608
        %v3610 = vsub.f32 1.0, %v3609
        %v3611 = vmul.f32 %v3608, %v3610
        %v3612 = vadd.f32 %v3608, %v3611
        %vm3613 = vweird.f32 %v3534
        %vm3614 = vweird.f32 %v3608
        %vm3615 = vmor %vm3613, %vm3614
        %v3616 = vsel %vm3615, %v3608, %v3612
        %v3617 = vand.u32 2147483647, %v3534
        %vm3618 = vcmp.eq.f32.partialorder %v3617, 8.507059e+37
        %v3619 = vand.u32 %v3534, 2147483648
        %v3620 = vor.u32 1.1754944e-38, %v3619
        %v3621 = vsel %vm3618, %v3620, %v3616
        %v3622 = vmul.f32 1.0, %v3621
        %v3623 = vrcp.pop %v3535
        %v3624 = vmul.f32 %v3535, %v3623
        %v3625 = vsub.f32 1.0, %v3624
        %v3626 = vmul.f32 %v3623, %v3625
        %v3627 = vadd.f32 %v3623, %v3626
        %vm3628 = vweird.f32 %v3535
        %vm3629 = vweird.f32 %v3623
        %vm3630 = vmor %vm3628, %vm3629
        %v3631 = vsel %vm3630, %v3623, %v3627
        %v3632 = vand.u32 2147483647, %v3535
        %vm3633 = vcmp.eq.f32.partialorder %v3632, 8.507059e+37
        %v3634 = vand.u32 %v3535, 2147483648
        %v3635 = vor.u32 1.1754944e-38, %v3634
        %v3636 = vsel %vm3633, %v3635, %v3631
        %v3637 = vmul.f32 1.0, %v3636
        %v3638 = vrcp.pop %v3536
        %v3639 = vmul.f32 %v3536, %v3638
        %v3640 = vsub.f32 1.0, %v3639
        %v3641 = vmul.f32 %v3638, %v3640
        %v3642 = vadd.f32 %v3638, %v3641
        %vm3643 = vweird.f32 %v3536
        %vm3644 = vweird.f32 %v3638
        %vm3645 = vmor %vm3643, %vm3644
        %v3646 = vsel %vm3645, %v3638, %v3642
        %v3647 = vand.u32 2147483647, %v3536
        %vm3648 = vcmp.eq.f32.partialorder %v3647, 8.507059e+37
        %v3649 = vand.u32 %v3536, 2147483648
        %v3650 = vor.u32 1.1754944e-38, %v3649
        %v3651 = vsel %vm3648, %v3650, %v3646
        %v3652 = vmul.f32 1.0, %v3651
        %v3653 = vrcp.pop %v3537
        %v3654 = vmul.f32 %v3537, %v3653
        %v3655 = vsub.f32 1.0, %v3654
        %v3656 = vmul.f32 %v3653, %v3655
        %v3657 = vadd.f32 %v3653, %v3656
        %vm3658 = vweird.f32 %v3537
        %vm3659 = vweird.f32 %v3653
        %vm3660 = vmor %vm3658, %vm3659
        %v3661 = vsel %vm3660, %v3653, %v3657
        %v3662 = vand.u32 2147483647, %v3537
        %vm3663 = vcmp.eq.f32.partialorder %v3662, 8.507059e+37
        %v3664 = vand.u32 %v3537, 2147483648
        %v3665 = vor.u32 1.1754944e-38, %v3664
        %v3666 = vsel %vm3663, %v3665, %v3661
        %v3667 = vmul.f32 1.0, %v3666
        %v3668 = vrcp.pop %v3538
        %v3669 = vmul.f32 %v3538, %v3668
        %v3670 = vsub.f32 1.0, %v3669
        %v3671 = vmul.f32 %v3668, %v3670
        %v3672 = vadd.f32 %v3668, %v3671
        %vm3673 = vweird.f32 %v3538
        %vm3674 = vweird.f32 %v3668
        %vm3675 = vmor %vm3673, %vm3674
        %v3676 = vsel %vm3675, %v3668, %v3672
        %v3677 = vand.u32 2147483647, %v3538
        %vm3678 = vcmp.eq.f32.partialorder %v3677, 8.507059e+37
        %v3679 = vand.u32 %v3538, 2147483648
        %v3680 = vor.u32 1.1754944e-38, %v3679
        %v3681 = vsel %vm3678, %v3680, %v3676
        %v3682 = vmul.f32 1.0, %v3681
        %v3683 = vrcp.pop %v3539
        %v3684 = vmul.f32 %v3539, %v3683
        %v3685 = vsub.f32 1.0, %v3684
        %v3686 = vmul.f32 %v3683, %v3685
        %v3687 = vadd.f32 %v3683, %v3686
        %vm3688 = vweird.f32 %v3539
        %vm3689 = vweird.f32 %v3683
        %vm3690 = vmor %vm3688, %vm3689
        %v3691 = vsel %vm3690, %v3683, %v3687
        %v3692 = vand.u32 2147483647, %v3539
        %vm3693 = vcmp.eq.f32.partialorder %v3692, 8.507059e+37
        %v3694 = vand.u32 %v3539, 2147483648
        %v3695 = vor.u32 1.1754944e-38, %v3694
        %v3696 = vsel %vm3693, %v3695, %v3691
        %v3697 = vmul.f32 1.0, %v3696
        %v3698 = vrcp.pop %v3540
        %v3699 = vmul.f32 %v3540, %v3698
        %v3700 = vsub.f32 1.0, %v3699
        %v3701 = vmul.f32 %v3698, %v3700
        %v3702 = vadd.f32 %v3698, %v3701
        %vm3703 = vweird.f32 %v3540
        %vm3704 = vweird.f32 %v3698
        %vm3705 = vmor %vm3703, %vm3704
        %v3706 = vsel %vm3705, %v3698, %v3702
        %v3707 = vand.u32 2147483647, %v3540
        %vm3708 = vcmp.eq.f32.partialorder %v3707, 8.507059e+37
        %v3709 = vand.u32 %v3540, 2147483648
        %v3710 = vor.u32 1.1754944e-38, %v3709
        %v3711 = vsel %vm3708, %v3710, %v3706
        %v3712 = vmul.f32 1.0, %v3711
        %v3713 = vrcp.pop %v3541
        %v3714 = vmul.f32 %v3541, %v3713
        %v3715 = vsub.f32 1.0, %v3714
        %v3716 = vmul.f32 %v3713, %v3715
        %v3717 = vadd.f32 %v3713, %v3716
        %vm3718 = vweird.f32 %v3541
        %vm3719 = vweird.f32 %v3713
        %vm3720 = vmor %vm3718, %vm3719
        %v3721 = vsel %vm3720, %v3713, %v3717
        %v3722 = vand.u32 2147483647, %v3541
        %vm3723 = vcmp.eq.f32.partialorder %v3722, 8.507059e+37
        %v3724 = vand.u32 %v3541, 2147483648
        %v3725 = vor.u32 1.1754944e-38, %v3724
        %v3726 = vsel %vm3723, %v3725, %v3721
        %v3727 = vmul.f32 1.0, %v3726
        %v3728 = vrcp.pop %v3542
        %v3729 = vmul.f32 %v3542, %v3728
        %v3730 = vsub.f32 1.0, %v3729
        %v3731 = vmul.f32 %v3728, %v3730
        %v3732 = vadd.f32 %v3728, %v3731
        %vm3733 = vweird.f32 %v3542
        %vm3734 = vweird.f32 %v3728
        %vm3735 = vmor %vm3733, %vm3734
        %v3736 = vsel %vm3735, %v3728, %v3732
        %v3737 = vand.u32 2147483647, %v3542
        %vm3738 = vcmp.eq.f32.partialorder %v3737, 8.507059e+37
        %v3739 = vand.u32 %v3542, 2147483648
        %v3740 = vor.u32 1.1754944e-38, %v3739
        %v3741 = vsel %vm3738, %v3740, %v3736
        %v3742 = vmul.f32 1.0, %v3741
        %v3743 = vrcp.pop %v3543
        %v3744 = vmul.f32 %v3543, %v3743
        %v3745 = vsub.f32 1.0, %v3744
        %v3746 = vmul.f32 %v3743, %v3745
        %v3747 = vadd.f32 %v3743, %v3746
        %vm3748 = vweird.f32 %v3543
        %vm3749 = vweird.f32 %v3743
        %vm3750 = vmor %vm3748, %vm3749
        %v3751 = vsel %vm3750, %v3743, %v3747
        %v3752 = vand.u32 2147483647, %v3543
        %vm3753 = vcmp.eq.f32.partialorder %v3752, 8.507059e+37
        %v3754 = vand.u32 %v3543, 2147483648
        %v3755 = vor.u32 1.1754944e-38, %v3754
        %v3756 = vsel %vm3753, %v3755, %v3751
        %v3757 = vmul.f32 1.0, %v3756
        %v3758 = vrcp.pop %v3544
        %v3759 = vmul.f32 %v3544, %v3758
        %v3760 = vsub.f32 1.0, %v3759
        %v3761 = vmul.f32 %v3758, %v3760
        %v3762 = vadd.f32 %v3758, %v3761
        %vm3763 = vweird.f32 %v3544
        %vm3764 = vweird.f32 %v3758
        %vm3765 = vmor %vm3763, %vm3764
        %v3766 = vsel %vm3765, %v3758, %v3762
        %v3767 = vand.u32 2147483647, %v3544
        %vm3768 = vcmp.eq.f32.partialorder %v3767, 8.507059e+37
        %v3769 = vand.u32 %v3544, 2147483648
        %v3770 = vor.u32 1.1754944e-38, %v3769
        %v3771 = vsel %vm3768, %v3770, %v3766
        %v3772 = vmul.f32 1.0, %v3771
        %v3773 = vrcp.pop %v3545
        %v3774 = vmul.f32 %v3545, %v3773
        %v3775 = vsub.f32 1.0, %v3774
        %v3776 = vmul.f32 %v3773, %v3775
        %v3777 = vadd.f32 %v3773, %v3776
        %vm3778 = vweird.f32 %v3545
        %vm3779 = vweird.f32 %v3773
        %vm3780 = vmor %vm3778, %vm3779
        %v3781 = vsel %vm3780, %v3773, %v3777
        %v3782 = vand.u32 2147483647, %v3545
        %vm3783 = vcmp.eq.f32.partialorder %v3782, 8.507059e+37
        %v3784 = vand.u32 %v3545, 2147483648
        %v3785 = vor.u32 1.1754944e-38, %v3784
        %v3786 = vsel %vm3783, %v3785, %v3781
        %v3787 = vmul.f32 1.0, %v3786
        %v3788 = vrcp.pop %v3546
        %v3789 = vmul.f32 %v3546, %v3788
        %v3790 = vsub.f32 1.0, %v3789
        %v3791 = vmul.f32 %v3788, %v3790
        %v3792 = vadd.f32 %v3788, %v3791
        %vm3793 = vweird.f32 %v3546
        %vm3794 = vweird.f32 %v3788
        %vm3795 = vmor %vm3793, %vm3794
        %v3796 = vsel %vm3795, %v3788, %v3792
        %v3797 = vand.u32 2147483647, %v3546
        %vm3798 = vcmp.eq.f32.partialorder %v3797, 8.507059e+37
        %v3799 = vand.u32 %v3546, 2147483648
        %v3800 = vor.u32 1.1754944e-38, %v3799
        %v3801 = vsel %vm3798, %v3800, %v3796
        %v3802 = vmul.f32 1.0, %v3801
        %v3803 = vrcp.pop %v3547
        %v3804 = vmul.f32 %v3547, %v3803
        %v3805 = vsub.f32 1.0, %v3804
        %v3806 = vmul.f32 %v3803, %v3805
        %v3807 = vadd.f32 %v3803, %v3806
        %vm3808 = vweird.f32 %v3547
        %vm3809 = vweird.f32 %v3803
        %vm3810 = vmor %vm3808, %vm3809
        %v3811 = vsel %vm3810, %v3803, %v3807
        %v3812 = vand.u32 2147483647, %v3547
        %vm3813 = vcmp.eq.f32.partialorder %v3812, 8.507059e+37
        %v3814 = vand.u32 %v3547, 2147483648
        %v3815 = vor.u32 1.1754944e-38, %v3814
        %v3816 = vsel %vm3813, %v3815, %v3811
        %v3817 = vmul.f32 1.0, %v3816
        %v3818 = vrcp.pop %v3548
        %v3819 = vmul.f32 %v3548, %v3818
        %v3820 = vsub.f32 1.0, %v3819
        %v3821 = vmul.f32 %v3818, %v3820
        %v3822 = vadd.f32 %v3818, %v3821
        %vm3823 = vweird.f32 %v3548
        %vm3824 = vweird.f32 %v3818
        %vm3825 = vmor %vm3823, %vm3824
        %v3826 = vsel %vm3825, %v3818, %v3822
        %v3827 = vand.u32 2147483647, %v3548
        %vm3828 = vcmp.eq.f32.partialorder %v3827, 8.507059e+37
        %v3829 = vand.u32 %v3548, 2147483648
        %v3830 = vor.u32 1.1754944e-38, %v3829
        %v3831 = vsel %vm3828, %v3830, %v3826
        %v3832 = vmul.f32 1.0, %v3831
        %v3833 = vrcp.pop %v3549
        %v3834 = vmul.f32 %v3549, %v3833
        %v3835 = vsub.f32 1.0, %v3834
        %v3836 = vmul.f32 %v3833, %v3835
        %v3837 = vadd.f32 %v3833, %v3836
        %vm3838 = vweird.f32 %v3549
        %vm3839 = vweird.f32 %v3833
        %vm3840 = vmor %vm3838, %vm3839
        %v3841 = vsel %vm3840, %v3833, %v3837
        %v3842 = vand.u32 2147483647, %v3549
        %vm3843 = vcmp.eq.f32.partialorder %v3842, 8.507059e+37
        %v3844 = vand.u32 %v3549, 2147483648
        %v3845 = vor.u32 1.1754944e-38, %v3844
        %v3846 = vsel %vm3843, %v3845, %v3841
        %v3847 = vmul.f32 1.0, %v3846
        %v3848 = vrcp.pop %v3550
        %v3849 = vmul.f32 %v3550, %v3848
        %v3850 = vsub.f32 1.0, %v3849
        %v3851 = vmul.f32 %v3848, %v3850
        %v3852 = vadd.f32 %v3848, %v3851
        %vm3853 = vweird.f32 %v3550
        %vm3854 = vweird.f32 %v3848
        %vm3855 = vmor %vm3853, %vm3854
        %v3856 = vsel %vm3855, %v3848, %v3852
        %v3857 = vand.u32 2147483647, %v3550
        %vm3858 = vcmp.eq.f32.partialorder %v3857, 8.507059e+37
        %v3859 = vand.u32 %v3550, 2147483648
        %v3860 = vor.u32 1.1754944e-38, %v3859
        %v3861 = vsel %vm3858, %v3860, %v3856
        %v3862 = vmul.f32 1.0, %v3861
        %v3863 = vrcp.pop %v3551
        %v3864 = vmul.f32 %v3551, %v3863
        %v3865 = vsub.f32 1.0, %v3864
        %v3866 = vmul.f32 %v3863, %v3865
        %v3867 = vadd.f32 %v3863, %v3866
        %vm3868 = vweird.f32 %v3551
        %vm3869 = vweird.f32 %v3863
        %vm3870 = vmor %vm3868, %vm3869
        %v3871 = vsel %vm3870, %v3863, %v3867
        %v3872 = vand.u32 2147483647, %v3551
        %vm3873 = vcmp.eq.f32.partialorder %v3872, 8.507059e+37
        %v3874 = vand.u32 %v3551, 2147483648
        %v3875 = vor.u32 1.1754944e-38, %v3874
        %v3876 = vsel %vm3873, %v3875, %v3871
        %v3877 = vmul.f32 1.0, %v3876
        %v3878 = vrcp.pop %v3552
        %v3879 = vmul.f32 %v3552, %v3878
        %v3880 = vsub.f32 1.0, %v3879
        %v3881 = vmul.f32 %v3878, %v3880
        %v3882 = vadd.f32 %v3878, %v3881
        %vm3883 = vweird.f32 %v3552
        %vm3884 = vweird.f32 %v3878
        %vm3885 = vmor %vm3883, %vm3884
        %v3886 = vsel %vm3885, %v3878, %v3882
        %v3887 = vand.u32 2147483647, %v3552
        %vm3888 = vcmp.eq.f32.partialorder %v3887, 8.507059e+37
        %v3889 = vand.u32 %v3552, 2147483648
        %v3890 = vor.u32 1.1754944e-38, %v3889
        %v3891 = vsel %vm3888, %v3890, %v3886
        %v3892 = vmul.f32 1.0, %v3891
        %v3893 = vrcp.pop %v3553
        %v3894 = vmul.f32 %v3553, %v3893
        %v3895 = vsub.f32 1.0, %v3894
        %v3896 = vmul.f32 %v3893, %v3895
        %v3897 = vadd.f32 %v3893, %v3896
        %vm3898 = vweird.f32 %v3553
        %vm3899 = vweird.f32 %v3893
        %vm3900 = vmor %vm3898, %vm3899
        %v3901 = vsel %vm3900, %v3893, %v3897
        %v3902 = vand.u32 2147483647, %v3553
        %vm3903 = vcmp.eq.f32.partialorder %v3902, 8.507059e+37
        %v3904 = vand.u32 %v3553, 2147483648
        %v3905 = vor.u32 1.1754944e-38, %v3904
        %v3906 = vsel %vm3903, %v3905, %v3901
        %v3907 = vmul.f32 1.0, %v3906
        %v3908 = vrcp.pop %v3554
        %v3909 = vmul.f32 %v3554, %v3908
        %v3910 = vsub.f32 1.0, %v3909
        %v3911 = vmul.f32 %v3908, %v3910
        %v3912 = vadd.f32 %v3908, %v3911
        %vm3913 = vweird.f32 %v3554
        %vm3914 = vweird.f32 %v3908
        %vm3915 = vmor %vm3913, %vm3914
        %v3916 = vsel %vm3915, %v3908, %v3912
        %v3917 = vand.u32 2147483647, %v3554
        %vm3918 = vcmp.eq.f32.partialorder %v3917, 8.507059e+37
        %v3919 = vand.u32 %v3554, 2147483648
        %v3920 = vor.u32 1.1754944e-38, %v3919
        %v3921 = vsel %vm3918, %v3920, %v3916
        %v3922 = vmul.f32 1.0, %v3921
        %v3923 = vrcp.pop %v3555
        %v3924 = vmul.f32 %v3555, %v3923
        %v3925 = vsub.f32 1.0, %v3924
        %v3926 = vmul.f32 %v3923, %v3925
        %v3927 = vadd.f32 %v3923, %v3926
        %vm3928 = vweird.f32 %v3555
        %vm3929 = vweird.f32 %v3923
        %vm3930 = vmor %vm3928, %vm3929
        %v3931 = vsel %vm3930, %v3923, %v3927
        %v3932 = vand.u32 2147483647, %v3555
        %vm3933 = vcmp.eq.f32.partialorder %v3932, 8.507059e+37
        %v3934 = vand.u32 %v3555, 2147483648
        %v3935 = vor.u32 1.1754944e-38, %v3934
        %v3936 = vsel %vm3933, %v3935, %v3931
        %v3937 = vmul.f32 1.0, %v3936
        %v3938 = vrcp.pop %v3556
        %v3939 = vmul.f32 %v3556, %v3938
        %v3940 = vsub.f32 1.0, %v3939
        %v3941 = vmul.f32 %v3938, %v3940
        %v3942 = vadd.f32 %v3938, %v3941
        %vm3943 = vweird.f32 %v3556
        %vm3944 = vweird.f32 %v3938
        %vm3945 = vmor %vm3943, %vm3944
        %v3946 = vsel %vm3945, %v3938, %v3942
        %v3947 = vand.u32 2147483647, %v3556
        %vm3948 = vcmp.eq.f32.partialorder %v3947, 8.507059e+37
        %v3949 = vand.u32 %v3556, 2147483648
        %v3950 = vor.u32 1.1754944e-38, %v3949
        %v3951 = vsel %vm3948, %v3950, %v3946
        %v3952 = vmul.f32 1.0, %v3951
        %v3953 = vrcp.pop %v3557
        %v3954 = vmul.f32 %v3557, %v3953
        %v3955 = vsub.f32 1.0, %v3954
        %v3956 = vmul.f32 %v3953, %v3955
        %v3957 = vadd.f32 %v3953, %v3956
        %vm3958 = vweird.f32 %v3557
        %vm3959 = vweird.f32 %v3953
        %vm3960 = vmor %vm3958, %vm3959
        %v3961 = vsel %vm3960, %v3953, %v3957
        %v3962 = vand.u32 2147483647, %v3557
        %vm3963 = vcmp.eq.f32.partialorder %v3962, 8.507059e+37
        %v3964 = vand.u32 %v3557, 2147483648
        %v3965 = vor.u32 1.1754944e-38, %v3964
        %v3966 = vsel %vm3963, %v3965, %v3961
        %v3967 = vmul.f32 1.0, %v3966
        %v3968 = vrcp.pop %v3558
        %v3969 = vmul.f32 %v3558, %v3968
        %v3970 = vsub.f32 1.0, %v3969
        %v3971 = vmul.f32 %v3968, %v3970
        %v3972 = vadd.f32 %v3968, %v3971
        %vm3973 = vweird.f32 %v3558
        %vm3974 = vweird.f32 %v3968
        %vm3975 = vmor %vm3973, %vm3974
        %v3976 = vsel %vm3975, %v3968, %v3972
        %v3977 = vand.u32 2147483647, %v3558
        %vm3978 = vcmp.eq.f32.partialorder %v3977, 8.507059e+37
        %v3979 = vand.u32 %v3558, 2147483648
        %v3980 = vor.u32 1.1754944e-38, %v3979
        %v3981 = vsel %vm3978, %v3980, %v3976
        %v3982 = vmul.f32 1.0, %v3981
        %v3983 = vrcp.pop %v3559
        %v3984 = vmul.f32 %v3559, %v3983
        %v3985 = vsub.f32 1.0, %v3984
        %v3986 = vmul.f32 %v3983, %v3985
        %v3987 = vadd.f32 %v3983, %v3986
        %vm3988 = vweird.f32 %v3559
        %vm3989 = vweird.f32 %v3983
        %vm3990 = vmor %vm3988, %vm3989
        %v3991 = vsel %vm3990, %v3983, %v3987
        %v3992 = vand.u32 2147483647, %v3559
        %vm3993 = vcmp.eq.f32.partialorder %v3992, 8.507059e+37
        %v3994 = vand.u32 %v3559, 2147483648
        %v3995 = vor.u32 1.1754944e-38, %v3994
        %v3996 = vsel %vm3993, %v3995, %v3991
        %v3997 = vmul.f32 1.0, %v3996
        %v3998 = vrcp.pop %v3560
        %v3999 = vmul.f32 %v3560, %v3998
        %v4000 = vsub.f32 1.0, %v3999
        %v4001 = vmul.f32 %v3998, %v4000
        %v4002 = vadd.f32 %v3998, %v4001
        %vm4003 = vweird.f32 %v3560
        %vm4004 = vweird.f32 %v3998
        %vm4005 = vmor %vm4003, %vm4004
        %v4006 = vsel %vm4005, %v3998, %v4002
        %v4007 = vand.u32 2147483647, %v3560
        %vm4008 = vcmp.eq.f32.partialorder %v4007, 8.507059e+37
        %v4009 = vand.u32 %v3560, 2147483648
        %v4010 = vor.u32 1.1754944e-38, %v4009
        %v4011 = vsel %vm4008, %v4010, %v4006
        %v4012 = vmul.f32 1.0, %v4011
        %v4013 = vrcp.pop %v3561
        %v4014 = vmul.f32 %v3561, %v4013
        %v4015 = vsub.f32 1.0, %v4014
        %v4016 = vmul.f32 %v4013, %v4015
        %v4017 = vadd.f32 %v4013, %v4016
        %vm4018 = vweird.f32 %v3561
        %vm4019 = vweird.f32 %v4013
        %vm4020 = vmor %vm4018, %vm4019
        %v4021 = vsel %vm4020, %v4013, %v4017
        %v4022 = vand.u32 2147483647, %v3561
        %vm4023 = vcmp.eq.f32.partialorder %v4022, 8.507059e+37
        %v4024 = vand.u32 %v3561, 2147483648
        %v4025 = vor.u32 1.1754944e-38, %v4024
        %v4026 = vsel %vm4023, %v4025, %v4021
        %v4027 = vmul.f32 1.0, %v4026
        %v4028 = vrcp.pop %v3562
        %v4029 = vmul.f32 %v3562, %v4028
        %v4030 = vsub.f32 1.0, %v4029
        %v4031 = vmul.f32 %v4028, %v4030
        %v4032 = vadd.f32 %v4028, %v4031
        %vm4033 = vweird.f32 %v3562
        %vm4034 = vweird.f32 %v4028
        %vm4035 = vmor %vm4033, %vm4034
        %v4036 = vsel %vm4035, %v4028, %v4032
        %v4037 = vand.u32 2147483647, %v3562
        %vm4038 = vcmp.eq.f32.partialorder %v4037, 8.507059e+37
        %v4039 = vand.u32 %v3562, 2147483648
        %v4040 = vor.u32 1.1754944e-38, %v4039
        %v4041 = vsel %vm4038, %v4040, %v4036
        %v4042 = vmul.f32 1.0, %v4041
        %4044 = vset.pattern.permute.xlu0 0
        %4045 = vperm.xlu0 %4044, %v3577
        %v4046 = vpop.permute.xlu0 %4045
        %4049 = vset.pattern.permute.xlu0 0
        %4050 = vperm.xlu0 %4049, %v3592
        %v4051 = vpop.permute.xlu0 %4050
        %4054 = vset.pattern.permute.xlu0 0
        %4055 = vperm.xlu0 %4054, %v3607
        %v4056 = vpop.permute.xlu0 %4055
        %4059 = vset.pattern.permute.xlu0 0
        %4060 = vperm.xlu0 %4059, %v3622
        %v4061 = vpop.permute.xlu0 %4060
        %4064 = vset.pattern.permute.xlu0 0
        %4065 = vperm.xlu0 %4064, %v3637
        %v4066 = vpop.permute.xlu0 %4065
        %4069 = vset.pattern.permute.xlu0 0
        %4070 = vperm.xlu0 %4069, %v3652
        %v4071 = vpop.permute.xlu0 %4070
        %4074 = vset.pattern.permute.xlu0 0
        %4075 = vperm.xlu0 %4074, %v3667
        %v4076 = vpop.permute.xlu0 %4075
        %4079 = vset.pattern.permute.xlu0 0
        %4080 = vperm.xlu0 %4079, %v3682
        %v4081 = vpop.permute.xlu0 %4080
        %4084 = vset.pattern.permute.xlu0 0
        %4085 = vperm.xlu0 %4084, %v3697
        %v4086 = vpop.permute.xlu0 %4085
        %4089 = vset.pattern.permute.xlu0 0
        %4090 = vperm.xlu0 %4089, %v3712
        %v4091 = vpop.permute.xlu0 %4090
        %4094 = vset.pattern.permute.xlu0 0
        %4095 = vperm.xlu0 %4094, %v3727
        %v4096 = vpop.permute.xlu0 %4095
        %4099 = vset.pattern.permute.xlu0 0
        %4100 = vperm.xlu0 %4099, %v3742
        %v4101 = vpop.permute.xlu0 %4100
        %4104 = vset.pattern.permute.xlu0 0
        %4105 = vperm.xlu0 %4104, %v3757
        %v4106 = vpop.permute.xlu0 %4105
        %4109 = vset.pattern.permute.xlu0 0
        %4110 = vperm.xlu0 %4109, %v3772
        %v4111 = vpop.permute.xlu0 %4110
        %4114 = vset.pattern.permute.xlu0 0
        %4115 = vperm.xlu0 %4114, %v3787
        %v4116 = vpop.permute.xlu0 %4115
        %4119 = vset.pattern.permute.xlu0 0
        %4120 = vperm.xlu0 %4119, %v3802
        %v4121 = vpop.permute.xlu0 %4120
        %4124 = vset.pattern.permute.xlu0 0
        %4125 = vperm.xlu0 %4124, %v3817
        %v4126 = vpop.permute.xlu0 %4125
        %4129 = vset.pattern.permute.xlu0 0
        %4130 = vperm.xlu0 %4129, %v3832
        %v4131 = vpop.permute.xlu0 %4130
        %4134 = vset.pattern.permute.xlu0 0
        %4135 = vperm.xlu0 %4134, %v3847
        %v4136 = vpop.permute.xlu0 %4135
        %4139 = vset.pattern.permute.xlu0 0
        %4140 = vperm.xlu0 %4139, %v3862
        %v4141 = vpop.permute.xlu0 %4140
        %4144 = vset.pattern.permute.xlu0 0
        %4145 = vperm.xlu0 %4144, %v3877
        %v4146 = vpop.permute.xlu0 %4145
        %4149 = vset.pattern.permute.xlu0 0
        %4150 = vperm.xlu0 %4149, %v3892
        %v4151 = vpop.permute.xlu0 %4150
        %4154 = vset.pattern.permute.xlu0 0
        %4155 = vperm.xlu0 %4154, %v3907
        %v4156 = vpop.permute.xlu0 %4155
        %4159 = vset.pattern.permute.xlu0 0
        %4160 = vperm.xlu0 %4159, %v3922
        %v4161 = vpop.permute.xlu0 %4160
        %4164 = vset.pattern.permute.xlu0 0
        %4165 = vperm.xlu0 %4164, %v3937
        %v4166 = vpop.permute.xlu0 %4165
        %4169 = vset.pattern.permute.xlu0 0
        %4170 = vperm.xlu0 %4169, %v3952
        %v4171 = vpop.permute.xlu0 %4170
        %4174 = vset.pattern.permute.xlu0 0
        %4175 = vperm.xlu0 %4174, %v3967
        %v4176 = vpop.permute.xlu0 %4175
        %4179 = vset.pattern.permute.xlu0 0
        %4180 = vperm.xlu0 %4179, %v3982
        %v4181 = vpop.permute.xlu0 %4180
        %4184 = vset.pattern.permute.xlu0 0
        %4185 = vperm.xlu0 %4184, %v3997
        %v4186 = vpop.permute.xlu0 %4185
        %4189 = vset.pattern.permute.xlu0 0
        %4190 = vperm.xlu0 %4189, %v4012
        %v4191 = vpop.permute.xlu0 %4190
        %4194 = vset.pattern.permute.xlu0 0
        %4195 = vperm.xlu0 %4194, %v4027
        %v4196 = vpop.permute.xlu0 %4195
        %4199 = vset.pattern.permute.xlu0 0
        %4200 = vperm.xlu0 %4199, %v4042
        %v4201 = vpop.permute.xlu0 %4200
        %v4203 = vmul.f32 %v622, %v4046
        %v4204 = vmul.f32 %v623, %v4051
        %v4205 = vmul.f32 %v624, %v4056
        %v4206 = vmul.f32 %v625, %v4061
        %v4207 = vmul.f32 %v626, %v4066
        %v4208 = vmul.f32 %v627, %v4071
        %v4209 = vmul.f32 %v628, %v4076
        %v4210 = vmul.f32 %v629, %v4081
        %v4211 = vmul.f32 %v630, %v4086
        %v4212 = vmul.f32 %v631, %v4091
        %v4213 = vmul.f32 %v632, %v4096
        %v4214 = vmul.f32 %v633, %v4101
        %v4215 = vmul.f32 %v634, %v4106
        %v4216 = vmul.f32 %v635, %v4111
        %v4217 = vmul.f32 %v636, %v4116
        %v4218 = vmul.f32 %v637, %v4121
        %v4219 = vmul.f32 %v638, %v4126
        %v4220 = vmul.f32 %v639, %v4131
        %v4221 = vmul.f32 %v640, %v4136
        %v4222 = vmul.f32 %v641, %v4141
        %v4223 = vmul.f32 %v642, %v4146
        %v4224 = vmul.f32 %v643, %v4151
        %v4225 = vmul.f32 %v644, %v4156
        %v4226 = vmul.f32 %v645, %v4161
        %v4227 = vmul.f32 %v646, %v4166
        %v4228 = vmul.f32 %v647, %v4171
        %v4229 = vmul.f32 %v648, %v4176
        %v4230 = vmul.f32 %v649, %v4181
        %v4231 = vmul.f32 %v650, %v4186
        %v4232 = vmul.f32 %v651, %v4191
        %v4233 = vmul.f32 %v652, %v4196
        %v4234 = vmul.f32 %v653, %v4201
        %4235 = vst.msk [vmem:[%s589] sm:$0xff] %vm662, %v4203
        %4236 = vst.msk [vmem:[%s589 + $0x8] sm:$0xff] %vm662, %v4204
        %4237 = vst.msk [vmem:[%s589 + $0x10] sm:$0xff] %vm662, %v4205
        %4238 = vst.msk [vmem:[%s589 + $0x18] sm:$0xff] %vm662, %v4206
        %4239 = vst.msk [vmem:[%s589 + $0x20] sm:$0xff] %vm662, %v4207
        %4240 = vst.msk [vmem:[%s589 + $0x28] sm:$0xff] %vm662, %v4208
        %4241 = vst.msk [vmem:[%s589 + $0x30] sm:$0xff] %vm662, %v4209
        %4242 = vst.msk [vmem:[%s589 + $0x38] sm:$0xff] %vm662, %v4210
        %4243 = vst.msk [vmem:[%s589 + $0x40] sm:$0xff] %vm662, %v4211
        %4244 = vst.msk [vmem:[%s589 + $0x48] sm:$0xff] %vm662, %v4212
        %4245 = vst.msk [vmem:[%s589 + $0x50] sm:$0xff] %vm662, %v4213
        %4246 = vst.msk [vmem:[%s589 + $0x58] sm:$0xff] %vm662, %v4214
        %4247 = vst.msk [vmem:[%s589 + $0x60] sm:$0xff] %vm662, %v4215
        %4248 = vst.msk [vmem:[%s589 + $0x68] sm:$0xff] %vm662, %v4216
        %4249 = vst.msk [vmem:[%s589 + $0x70] sm:$0xff] %vm662, %v4217
        %4250 = vst.msk [vmem:[%s589 + $0x78] sm:$0xff] %vm662, %v4218
        %4251 = vst.msk [vmem:[%s589 + $0x80] sm:$0xff] %vm662, %v4219
        %4252 = vst.msk [vmem:[%s589 + $0x88] sm:$0xff] %vm662, %v4220
        %4253 = vst.msk [vmem:[%s589 + $0x90] sm:$0xff] %vm662, %v4221
        %4254 = vst.msk [vmem:[%s589 + $0x98] sm:$0xff] %vm662, %v4222
        %4255 = vst.msk [vmem:[%s589 + $0xa0] sm:$0xff] %vm662, %v4223
        %4256 = vst.msk [vmem:[%s589 + $0xa8] sm:$0xff] %vm662, %v4224
        %4257 = vst.msk [vmem:[%s589 + $0xb0] sm:$0xff] %vm662, %v4225
        %4258 = vst.msk [vmem:[%s589 + $0xb8] sm:$0xff] %vm662, %v4226
        %4259 = vst.msk [vmem:[%s589 + $0xc0] sm:$0xff] %vm662, %v4227
        %4260 = vst.msk [vmem:[%s589 + $0xc8] sm:$0xff] %vm662, %v4228
        %4261 = vst.msk [vmem:[%s589 + $0xd0] sm:$0xff] %vm662, %v4229
        %4262 = vst.msk [vmem:[%s589 + $0xd8] sm:$0xff] %vm662, %v4230
        %4263 = vst.msk [vmem:[%s589 + $0xe0] sm:$0xff] %vm662, %v4231
        %4264 = vst.msk [vmem:[%s589 + $0xe8] sm:$0xff] %vm662, %v4232
        %4265 = vst.msk [vmem:[%s589 + $0xf0] sm:$0xff] %vm662, %v4233
        %4266 = vst.msk [vmem:[%s589 + $0xf8] sm:$0xff] %vm662, %v4234
        %s4267 = sand.u32 %s396, 1
        %s4268 = scalar_lea.sflag [#allocation7], %s4267
        %s4269 = sand.u32 %s396, 1
        %s4270 = smul.addr %s4269, 256
        %s4271 = scalar_lea.vmem [#allocation10], %s4270
        // Predicated region
        $region93: #{danet_forward.1} parent=83 // pred_check
          %p4272 = pneg %p406
        $region94: #{danet_forward.1} parent=83 // pred_check_branch
          %4274 = sbr.rel (%p4272) target = $region96
        $region95: #{danet_forward.1} parent=83 // pred_region
          %4276 = vsyncadd %s4268, 0
          %s4277 = smul.addr %s42, 32
          %s4278 = smul.addr %s4277, 8
          %s4279 = scalar_lea.hbm %s16, %s4278
          %s4280 = sshll.u32 %s4271, 4
          %s4281 = int_to_ptr.vmem [resolvable:$true] %s4280
          %s4282 = sshll.u32 %s4279, 4
          %s4283 = int_to_ptr.hbm [resolvable:$true] %s4282
          %4288 = dma.vmem_to_hbm [thread:$0]  %s4281, 4096, %s4283, %s4268, 128, 128, 8
        $region96: #{danet_forward.1} parent=83 // pred_fallthru
          _
      $region84: #{danet_forward.1} parent=5 // pred_fallthru
        _
      %p4289 = scmp.le.s32.totalorder 2, %s37
      // Predicated region
      $region97: #{danet_forward.1} parent=5 // pred_check
        %p4290 = pneg %p4289
      $region98: #{danet_forward.1} parent=5 // pred_check_branch
        %4292 = sbr.rel (%p4290) target = $region100
      $region99: #{danet_forward.1} parent=5 // pred_region
        %s4293 = ssub.s32 %s37, 2
        // Predicated region
        $region101: #{danet_forward.1} parent=99 // pred_check
          %p4294 = pneg %p412
        $region102: #{danet_forward.1} parent=99 // pred_check_branch
          %4296 = sbr.rel (%p4294) target = $region104
        $region103: #{danet_forward.1} parent=99 // pred_region
          %s4297 = sand.u32 %s397, 1
          %s4298 = scalar_lea.sflag [#allocation7], %s4297
          %s4299 = sand.u32 %s397, 1
          %s4300 = smul.addr %s4299, 256
          %s4301 = scalar_lea.vmem [#allocation10], %s4300
          %4303 = dma.done %s4298, 4096
        $region104: #{danet_forward.1} parent=99 // pred_fallthru
          _
      $region100: #{danet_forward.1} parent=5 // pred_fallthru
        _
    $region6: #{danet_forward.1} parent=1 // loop_footer
      %s41 = sadd.s32 1, %s37
    $region7: #{danet_forward.1} parent=1 // loop_footer_branch
      %36 = sbr.rel target = $region3
    $region8: #{danet_forward.1} parent=1 // loop_exit
      _
    %4304 = vsyncpa [#allocation6], 1
    %s4305 = scalar_lea.sflag [#allocation6], 1
    %4306 = vsyncpa %s4305, 1
    %4307 = vsyncpa [#allocation9], 1
    %s4308 = scalar_lea.sflag [#allocation9], 1
    %4309 = vsyncpa %s4308, 1
    %4310 = vsyncpa [#allocation7], 1
    %s4311 = scalar_lea.sflag [#allocation7], 1
    %4312 = vsyncpa %s4311, 1

</llo_original>
